<compile_context>
chip_gen: v5e
topology: v5e:2x2
jax: 0.10.0
libtpu: 0.0.40
codegen_flags: <defaults>
</compile_context>

<pallas_src>
import functools

import jax
import jax.numpy as jnp
from jax.experimental import pallas as pl
from jax.experimental.pallas import tpu as pltpu


def _round_up(x, m):
    return ((x + m - 1) // m) * m


# ----------------------------- Pallas kernel --------------------------------
def _fused_embed_kernel(id_idx_ref, cat_idx_ref, pos_idx_ref,
                        id_tab_ref, cat_tab_ref, pos_tab_ref,
                        w_ref, b_ref, gamma_ref, beta_ref,
                        o_ref, *, eps):
    # id/cat/pos_idx_ref: [TILE_M, 1] int32   -- ids for this M-tile (only per-row HBM stream)
    # *_tab_ref:          [V,  E]     bf16    -- embedding tables, VMEM-resident across grid
    # w_ref:              [3E, H]     bf16    -- linear weight, VMEM-resident
    # b/gamma/beta_ref:   [1, H]      f32
    # o_ref:              [TILE_M, H] (bf16 by default)
    tile_m = o_ref.shape[0]

    def gather(idx_ref, tab_ref):
        # Exact row gather via one-hot matmul on the MXU: onehot has a single 1.0 per
        # row, so the f32-accumulated product reproduces the bf16 table row exactly.
        # (Chosen over a dynamic sublane gather for guaranteed lowering; MXU flops are
        # free while the kernel is HBM-bandwidth-bound.  Small-table path only.)
        tab = tab_ref[...]                                        # [V, E] bf16
        v = tab.shape[0]
        sel = idx_ref[...]                                        # [TILE_M, 1] int32
        lanes = jax.lax.broadcasted_iota(jnp.int32, (tile_m, v), 1)
        onehot = jnp.where(lanes == sel, 1.0, 0.0).astype(tab.dtype)
        rows = jnp.dot(onehot, tab, preferred_element_type=jnp.float32)
        return rows.astype(tab.dtype)                             # exact bf16 rows

    # concat(id, cat, pos) in VMEM -> single K=3E matmul (fills 256-deep MXU on v6e/v7x)
    x = jnp.concatenate([gather(id_idx_ref, id_tab_ref),
                         gather(cat_idx_ref, cat_tab_ref),
                         gather(pos_idx_ref, pos_tab_ref)], axis=-1)   # [TILE_M, 3E] bf16

    h = jnp.dot(x, w_ref[...], preferred_element_type=jnp.float32) + b_ref[...]

    # One-pass LayerNorm statistics in f32 over the hidden dim.
    inv_h = 1.0 / h.shape[-1]
    s1 = jnp.sum(h, axis=-1, keepdims=True)
    s2 = jnp.sum(h * h, axis=-1, keepdims=True)
    mean = s1 * inv_h
    var = jnp.maximum(s2 * inv_h - mean * mean, 0.0)
    normed = (h - mean) * jax.lax.rsqrt(var + eps)
    o_ref[...] = (normed * gamma_ref[...] + beta_ref[...]).astype(o_ref.dtype)
    # TODO(synk): training-mode dropout would use pltpu.prng_seed + pltpu.stateful_bernoulli
    # here; eval mode is identity so it is a no-op.


def _fused_forward(id_idx, cat_idx, pos_idx, id_tab, cat_tab, pos_tab,
                   w, b, gamma, beta, *, eps, tile_m, out_dtype):
    Mp = id_idx.shape[0]
    E3, H = w.shape
    num_tiles = Mp // tile_m
    kernel = functools.partial(_fused_embed_kernel, eps=eps)

    idx_spec = pl.BlockSpec((tile_m, 1), lambda i: (i, 0))

    def resident_spec(shape):   # constant index_map -> stays in VMEM across the grid
        return pl.BlockSpec(shape, lambda i: (0, 0))

    vec_spec = resident_spec((1, H))

    return pl.pallas_call(
        kernel,
        out_shape=jax.ShapeDtypeStruct((Mp, H), out_dtype),
        grid=(num_tiles,),
        in_specs=[idx_spec, idx_spec, idx_spec,
                  resident_spec(id_tab.shape),
                  resident_spec(cat_tab.shape),
                  resident_spec(pos_tab.shape),
                  resident_spec((E3, H)),
                  vec_spec, vec_spec, vec_spec],
        out_specs=pl.BlockSpec((tile_m, H), lambda i: (i, 0)),
        compiler_params=pltpu.CompilerParams(
            # Shards M-tiles across v7x's 2 TensorCores (needs num_tiles >= 2);
            # neutral on v5e/v6e.  For scaled-up E/H also set vmem_limit_bytes and
            # consider pipeline_mode=pl.Buffered(1) on the static table/weight specs.
            dimension_semantics=("parallel",),
        ),
    )(id_idx, cat_idx, pos_idx, id_tab, cat_tab, pos_tab, w, b, gamma, beta)


# ----------------------------- Module wrapper --------------------------------
def init_params(key, vocab_size, category_size, max_position_embeddings,
                embedding_size, hidden_size, pad_token_id=0):
    ks = jax.random.split(key, 5)
    id_emb = jax.random.normal(ks[0], (vocab_size, embedding_size), jnp.float32) * 0.02
    cat_emb = jax.random.normal(ks[1], (category_size, embedding_size), jnp.float32) * 0.02
    pos_emb = jax.random.normal(ks[2], (max_position_embeddings, embedding_size), jnp.float32) * 0.02
    # nn.Embedding padding_idx zeroes that row
    id_emb = id_emb.at[pad_token_id].set(0.0)
    cat_emb = cat_emb.at[pad_token_id].set(0.0)

    k_in = embedding_size * 3
    bound = 1.0 / float(jnp.sqrt(float(k_in)))
    # stored as [in, out] (transpose of torch's [out, in]) so the kernel does x @ W
    w = jax.random.uniform(ks[3], (k_in, hidden_size), jnp.float32, -bound, bound)
    b = jax.random.uniform(ks[4], (hidden_size,), jnp.float32, -bound, bound)
    gamma = jnp.ones((hidden_size,), jnp.float32)
    beta = jnp.zeros((hidden_size,), jnp.float32)
    return dict(id_emb=id_emb, cat_emb=cat_emb, pos_emb=pos_emb,
                w=w, b=b, gamma=gamma, beta=beta)


def encoder_embeddings(params, input_ids, category_ids, position_ids,
                       eps=1e-12, tile_m=512,
                       compute_dtype=jnp.bfloat16, out_dtype=jnp.bfloat16):
    """Forward pass of EncoderEmbeddings (eval mode: dropout is identity)."""
    H = params["w"].shape[1]
    B, S = input_ids.shape
    M = B * S

    # Tables: cast to bf16 once, pad rows to a multiple of 16 (bf16 sublane granule).
    # Padded rows are never selected (ids < vocab) so results are unaffected.
    def prep_table(t):
        t = t.astype(compute_dtype)
        pad = _round_up(t.shape[0], 16) - t.shape[0]
        return jnp.pad(t, ((0, pad), (0, 0))) if pad else t

    id_tab = prep_table(params["id_emb"])
    cat_tab = prep_table(params["cat_emb"])
    pos_tab = prep_table(params["pos_emb"])

    w = params["w"].astype(compute_dtype)                     # [3E, H]
    b = params["b"].reshape(1, H).astype(jnp.float32)
    gamma = params["gamma"].reshape(1, H).astype(jnp.float32)
    beta = params["beta"].reshape(1, H).astype(jnp.float32)

    # Tile over M = batch*seq.  Clamp to >=16 (bf16 min sublane tile) for tiny M.
    tile_m = max(16, _round_up(min(tile_m, M), 16))
    Mp = _round_up(M, tile_m)

    # Only the tiny int32 id streams are padded now (4 B/row); padded rows gather
    # row 0 and are sliced off below.
    def prep_idx(ids):
        idx = ids.reshape(M, 1).astype(jnp.int32)
        return jnp.pad(idx, ((0, Mp - M), (0, 0))) if Mp != M else idx

    out = _fused_forward(prep_idx(input_ids), prep_idx(category_ids), prep_idx(position_ids),
                         id_tab, cat_tab, pos_tab, w, b, gamma, beta,
                         eps=eps, tile_m=tile_m, out_dtype=out_dtype)
    return out[:M].reshape(B, S, H)


# Pure-JAX reference (mirrors the torch forward: gather -> concat -> linear -> LayerNorm;
# same bf16 activation/weight casting, f32 accumulation + LN, f32 output)
def encoder_embeddings_ref(params, input_ids, category_ids, position_ids,
                           eps=1e-12, compute_dtype=jnp.bfloat16):
    id_e = jnp.take(params["id_emb"], input_ids, axis=0).astype(compute_dtype)
    cat_e = jnp.take(params["cat_emb"], category_ids, axis=0).astype(compute_dtype)
    pos_e = jnp.take(params["pos_emb"], position_ids, axis=0).astype(compute_dtype)
    x = jnp.concatenate([id_e, cat_e, pos_e], axis=-1)
    h = jnp.dot(x, params["w"].astype(compute_dtype),
                preferred_element_type=jnp.float32) + params["b"]
    mean = jnp.mean(h, axis=-1, keepdims=True)
    var = jnp.mean((h - mean) ** 2, axis=-1, keepdims=True)
    normed = (h - mean) * jax.lax.rsqrt(var + eps)
    return normed * params["gamma"] + params["beta"]


if __name__ == "__main__":
    # Small synthetic config (lane-dense E and H: multiples of 128)
    vocab_size = 64
    category_size = 16
    max_position_embeddings = 128
    embedding_size = 128
    hidden_size = 256
    pad_token_id = 0
    layer_norm_eps = 1e-12
    batch, seq = 8, 128        # M = 1024 -> 2 tiles of 512 (>=2 so v7x can use both TCs)

    key = jax.random.PRNGKey(0)
    pkey, k1, k2 = jax.random.split(key, 3)
    params = init_params(pkey, vocab_size, category_size, max_position_embeddings,
                         embedding_size, hidden_size, pad_token_id)

    input_ids = jax.random.randint(k1, (batch, seq), 0, vocab_size, dtype=jnp.int32)
    category_ids = jax.random.randint(k2, (batch, seq), 0, category_size, dtype=jnp.int32)
    position_ids = jnp.broadcast_to(jnp.arange(seq, dtype=jnp.int32), (batch, seq))

    fwd = jax.jit(functools.partial(encoder_embeddings, eps=layer_norm_eps, tile_m=512))
    out = fwd(params, input_ids, category_ids, position_ids)
    out = jax.block_until_ready(out)

    ref = encoder_embeddings_ref(params, input_ids, category_ids, position_ids,
                                 eps=layer_norm_eps)
    assert out.shape == (batch, seq, hidden_size)
    assert out.dtype == jnp.bfloat16
    # bf16 output -> compare in f32 with bf16-appropriate tolerance
    assert jnp.allclose(out.astype(jnp.float32), ref, atol=3e-2, rtol=3e-2), "mismatch vs reference"

    print("KERNEL_OK")
</pallas_src>

<mosaic_0001>
module attributes {stable_mosaic.version = 11 : i64} {
  func.func @_fused_embed_kernel(%arg0: i32, %arg1: memref<512x1xi32, #tpu.memory_space<vmem>>, %arg2: memref<512x1xi32, #tpu.memory_space<vmem>>, %arg3: memref<512x1xi32, #tpu.memory_space<vmem>>, %arg4: memref<64x128xbf16, #tpu.memory_space<vmem>>, %arg5: memref<16x128xbf16, #tpu.memory_space<vmem>>, %arg6: memref<128x128xbf16, #tpu.memory_space<vmem>>, %arg7: memref<384x256xbf16, #tpu.memory_space<vmem>>, %arg8: memref<1x256xf32, #tpu.memory_space<vmem>>, %arg9: memref<1x256xf32, #tpu.memory_space<vmem>>, %arg10: memref<1x256xf32, #tpu.memory_space<vmem>>, %arg11: memref<512x256xbf16, #tpu.memory_space<vmem>>) attributes {dimension_semantics = [#tpu.dimension_semantics<parallel>], iteration_bounds = array<i64: 2>, scalar_prefetch = 0 : i64, scratch_operands = 0 : i64, tpu.core_type = #tpu.core_type<tc>, window_params = [{transform_indices = @transform_0, window_bounds = array<i64: 512, 1>}, {transform_indices = @transform_1, window_bounds = array<i64: 512, 1>}, {transform_indices = @transform_2, window_bounds = array<i64: 512, 1>}, {pipeline_mode = #tpu.pipeline_mode<synchronous>, transform_indices = @transform_3, window_bounds = array<i64: 64, 128>}, {pipeline_mode = #tpu.pipeline_mode<synchronous>, transform_indices = @transform_4, window_bounds = array<i64: 16, 128>}, {pipeline_mode = #tpu.pipeline_mode<synchronous>, transform_indices = @transform_5, window_bounds = array<i64: 128, 128>}, {pipeline_mode = #tpu.pipeline_mode<synchronous>, transform_indices = @transform_6, window_bounds = array<i64: 384, 256>}, {pipeline_mode = #tpu.pipeline_mode<synchronous>, transform_indices = @transform_7, window_bounds = array<i64: 1, 256>}, {pipeline_mode = #tpu.pipeline_mode<synchronous>, transform_indices = @transform_8, window_bounds = array<i64: 1, 256>}, {pipeline_mode = #tpu.pipeline_mode<synchronous>, transform_indices = @transform_9, window_bounds = array<i64: 1, 256>}, {transform_indices = @transform_10, window_bounds = array<i64: 512, 256>}]} {
    %c0 = arith.constant 0 : index
    %c0_0 = arith.constant 0 : index
    %0 = vector.load %arg4[%c0, %c0_0] : memref<64x128xbf16, #tpu.memory_space<vmem>>, vector<64x128xbf16>
    %c0_1 = arith.constant 0 : index
    %c0_2 = arith.constant 0 : index
    %1 = vector.load %arg1[%c0_1, %c0_2] : memref<512x1xi32, #tpu.memory_space<vmem>>, vector<512x1xi32>
    %2 = tpu.iota {dimensions = array<i32: 1>} : vector<512x64xi32>
    %3 = vector.broadcast %1 : vector<512x1xi32> to vector<512x64xi32>
    %4 = arith.cmpi eq, %2, %3 : vector<512x64xi32>
    %cst = arith.constant 1.000000e+00 : f32
    %cst_3 = arith.constant 0.000000e+00 : f32
    %5 = vector.broadcast %cst : f32 to vector<512x64xf32>
    %6 = vector.broadcast %cst_3 : f32 to vector<512x64xf32>
    %7 = arith.select %4, %5, %6 : vector<512x64xi1>, vector<512x64xf32>
    %8 = arith.truncf %7 : vector<512x64xf32> to vector<512x64xbf16>
    %cst_4 = arith.constant dense<0.000000e+00> : vector<512x128xf32>
    %9 = tpu.matmul %8, %0, %cst_4 {dimension_numbers = #tpu.dot_dimension_numbers<[1], [0], [0], [1], [0, 0, 1, 1], [], []>} : vector<512x64xbf16>, vector<64x128xbf16>, vector<512x128xf32> -> vector<512x128xf32>
    %10 = arith.truncf %9 : vector<512x128xf32> to vector<512x128xbf16>
    %c0_5 = arith.constant 0 : index
    %c0_6 = arith.constant 0 : index
    %11 = vector.load %arg5[%c0_5, %c0_6] : memref<16x128xbf16, #tpu.memory_space<vmem>>, vector<16x128xbf16>
    %c0_7 = arith.constant 0 : index
    %c0_8 = arith.constant 0 : index
    %12 = vector.load %arg2[%c0_7, %c0_8] : memref<512x1xi32, #tpu.memory_space<vmem>>, vector<512x1xi32>
    %13 = tpu.iota {dimensions = array<i32: 1>} : vector<512x16xi32>
    %14 = vector.broadcast %12 : vector<512x1xi32> to vector<512x16xi32>
    %15 = arith.cmpi eq, %13, %14 : vector<512x16xi32>
    %cst_9 = arith.constant 1.000000e+00 : f32
    %cst_10 = arith.constant 0.000000e+00 : f32
    %16 = vector.broadcast %cst_9 : f32 to vector<512x16xf32>
    %17 = vector.broadcast %cst_10 : f32 to vector<512x16xf32>
    %18 = arith.select %15, %16, %17 : vector<512x16xi1>, vector<512x16xf32>
    %19 = arith.truncf %18 : vector<512x16xf32> to vector<512x16xbf16>
    %cst_11 = arith.constant dense<0.000000e+00> : vector<512x128xf32>
    %20 = tpu.matmul %19, %11, %cst_11 {dimension_numbers = #tpu.dot_dimension_numbers<[1], [0], [0], [1], [0, 0, 1, 1], [], []>} : vector<512x16xbf16>, vector<16x128xbf16>, vector<512x128xf32> -> vector<512x128xf32>
    %21 = arith.truncf %20 : vector<512x128xf32> to vector<512x128xbf16>
    %c0_12 = arith.constant 0 : index
    %c0_13 = arith.constant 0 : index
    %22 = vector.load %arg6[%c0_12, %c0_13] : memref<128x128xbf16, #tpu.memory_space<vmem>>, vector<128x128xbf16>
    %c0_14 = arith.constant 0 : index
    %c0_15 = arith.constant 0 : index
    %23 = vector.load %arg3[%c0_14, %c0_15] : memref<512x1xi32, #tpu.memory_space<vmem>>, vector<512x1xi32>
    %24 = tpu.iota {dimensions = array<i32: 1>} : vector<512x128xi32>
    %25 = vector.broadcast %23 : vector<512x1xi32> to vector<512x128xi32>
    %26 = arith.cmpi eq, %24, %25 : vector<512x128xi32>
    %cst_16 = arith.constant 1.000000e+00 : f32
    %cst_17 = arith.constant 0.000000e+00 : f32
    %27 = vector.broadcast %cst_16 : f32 to vector<512x128xf32>
    %28 = vector.broadcast %cst_17 : f32 to vector<512x128xf32>
    %29 = arith.select %26, %27, %28 : vector<512x128xi1>, vector<512x128xf32>
    %30 = arith.truncf %29 : vector<512x128xf32> to vector<512x128xbf16>
    %cst_18 = arith.constant dense<0.000000e+00> : vector<512x128xf32>
    %31 = tpu.matmul %30, %22, %cst_18 {dimension_numbers = #tpu.dot_dimension_numbers<[1], [0], [0], [1], [0, 0, 1, 1], [], []>} : vector<512x128xbf16>, vector<128x128xbf16>, vector<512x128xf32> -> vector<512x128xf32>
    %32 = arith.truncf %31 : vector<512x128xf32> to vector<512x128xbf16>
    %33 = tpu.concatenate %10, %21, %32 in 1 : vector<512x128xbf16>, vector<512x128xbf16>, vector<512x128xbf16> -> vector<512x384xbf16>
    %c0_19 = arith.constant 0 : index
    %c0_20 = arith.constant 0 : index
    %34 = vector.load %arg7[%c0_19, %c0_20] : memref<384x256xbf16, #tpu.memory_space<vmem>>, vector<384x256xbf16>
    %cst_21 = arith.constant dense<0.000000e+00> : vector<512x256xf32>
    %35 = tpu.matmul %33, %34, %cst_21 {dimension_numbers = #tpu.dot_dimension_numbers<[1], [0], [0], [1], [0, 0, 1, 1], [], []>} : vector<512x384xbf16>, vector<384x256xbf16>, vector<512x256xf32> -> vector<512x256xf32>
    %c0_22 = arith.constant 0 : index
    %c0_23 = arith.constant 0 : index
    %36 = vector.load %arg8[%c0_22, %c0_23] : memref<1x256xf32, #tpu.memory_space<vmem>>, vector<1x256xf32>
    %37 = vector.broadcast %36 : vector<1x256xf32> to vector<512x256xf32>
    %38 = arith.addf %35, %37 : vector<512x256xf32>
    %cst_24 = arith.constant dense<0.000000e+00> : vector<512xf32>
    %39 = vector.multi_reduction <add>, %38, %cst_24 [1] : vector<512x256xf32> to vector<512xf32>
    %40 = vector.shape_cast %39 : vector<512xf32> to vector<512x1xf32>
    %41 = arith.mulf %38, %38 : vector<512x256xf32>
    %cst_25 = arith.constant dense<0.000000e+00> : vector<512xf32>
    %42 = vector.multi_reduction <add>, %41, %cst_25 [1] : vector<512x256xf32> to vector<512xf32>
    %43 = vector.shape_cast %42 : vector<512xf32> to vector<512x1xf32>
    %cst_26 = arith.constant 3.906250e-03 : f32
    %44 = vector.broadcast %cst_26 : f32 to vector<512x1xf32>
    %45 = arith.mulf %40, %44 : vector<512x1xf32>
    %cst_27 = arith.constant 3.906250e-03 : f32
    %46 = vector.broadcast %cst_27 : f32 to vector<512x1xf32>
    %47 = arith.mulf %43, %46 : vector<512x1xf32>
    %48 = arith.mulf %45, %45 : vector<512x1xf32>
    %49 = arith.subf %47, %48 : vector<512x1xf32>
    %cst_28 = arith.constant 0.000000e+00 : f32
    %50 = vector.broadcast %cst_28 : f32 to vector<512x1xf32>
    %51 = arith.maximumf %49, %50 : vector<512x1xf32>
    %52 = vector.broadcast %45 : vector<512x1xf32> to vector<512x256xf32>
    %53 = arith.subf %38, %52 : vector<512x256xf32>
    %cst_29 = arith.constant 9.99999996E-13 : f32
    %54 = vector.broadcast %cst_29 : f32 to vector<512x1xf32>
    %55 = arith.addf %51, %54 : vector<512x1xf32>
    %56 = math.rsqrt %55 : vector<512x1xf32>
    %57 = vector.broadcast %56 : vector<512x1xf32> to vector<512x256xf32>
    %58 = arith.mulf %53, %57 : vector<512x256xf32>
    %c0_30 = arith.constant 0 : index
    %c0_31 = arith.constant 0 : index
    %59 = vector.load %arg9[%c0_30, %c0_31] : memref<1x256xf32, #tpu.memory_space<vmem>>, vector<1x256xf32>
    %60 = vector.broadcast %59 : vector<1x256xf32> to vector<512x256xf32>
    %61 = arith.mulf %58, %60 : vector<512x256xf32>
    %c0_32 = arith.constant 0 : index
    %c0_33 = arith.constant 0 : index
    %62 = vector.load %arg10[%c0_32, %c0_33] : memref<1x256xf32, #tpu.memory_space<vmem>>, vector<1x256xf32>
    %63 = vector.broadcast %62 : vector<1x256xf32> to vector<512x256xf32>
    %64 = arith.addf %61, %63 : vector<512x256xf32>
    %65 = arith.truncf %64 : vector<512x256xf32> to vector<512x256xbf16>
    %c0_34 = arith.constant 0 : index
    %c0_35 = arith.constant 0 : index
    %66 = vector.load %arg11[%c0_34, %c0_35] : memref<512x256xbf16, #tpu.memory_space<vmem>>, vector<512x256xbf16>
    tpu.vector_store %arg11[%c0_34, %c0_35], %65 {strides = array<i32>} : memref<512x256xbf16, #tpu.memory_space<vmem>>, vector<512x256xbf16>,
    return
  }
  func.func @transform_0(%arg0: i32) -> (i32, i32) {
    %c0_i32 = arith.constant 0 : i32
    %c0_i32_0 = arith.constant 0 : i32
    return %arg0, %c0_i32 : i32, i32
  }
  func.func @transform_1(%arg0: i32) -> (i32, i32) {
    %c0_i32 = arith.constant 0 : i32
    %c0_i32_0 = arith.constant 0 : i32
    return %arg0, %c0_i32 : i32, i32
  }
  func.func @transform_2(%arg0: i32) -> (i32, i32) {
    %c0_i32 = arith.constant 0 : i32
    %c0_i32_0 = arith.constant 0 : i32
    return %arg0, %c0_i32 : i32, i32
  }
  func.func @transform_3(%arg0: i32) -> (i32, i32) {
    %c0_i32 = arith.constant 0 : i32
    %c0_i32_0 = arith.constant 0 : i32
    %c0_i32_1 = arith.constant 0 : i32
    return %c0_i32, %c0_i32_0 : i32, i32
  }
  func.func @transform_4(%arg0: i32) -> (i32, i32) {
    %c0_i32 = arith.constant 0 : i32
    %c0_i32_0 = arith.constant 0 : i32
    %c0_i32_1 = arith.constant 0 : i32
    return %c0_i32, %c0_i32_0 : i32, i32
  }
  func.func @transform_5(%arg0: i32) -> (i32, i32) {
    %c0_i32 = arith.constant 0 : i32
    %c0_i32_0 = arith.constant 0 : i32
    %c0_i32_1 = arith.constant 0 : i32
    return %c0_i32, %c0_i32_0 : i32, i32
  }
  func.func @transform_6(%arg0: i32) -> (i32, i32) {
    %c0_i32 = arith.constant 0 : i32
    %c0_i32_0 = arith.constant 0 : i32
    %c0_i32_1 = arith.constant 0 : i32
    return %c0_i32, %c0_i32_0 : i32, i32
  }
  func.func @transform_7(%arg0: i32) -> (i32, i32) {
    %c0_i32 = arith.constant 0 : i32
    %c0_i32_0 = arith.constant 0 : i32
    %c0_i32_1 = arith.constant 0 : i32
    return %c0_i32, %c0_i32_0 : i32, i32
  }
  func.func @transform_8(%arg0: i32) -> (i32, i32) {
    %c0_i32 = arith.constant 0 : i32
    %c0_i32_0 = arith.constant 0 : i32
    %c0_i32_1 = arith.constant 0 : i32
    return %c0_i32, %c0_i32_0 : i32, i32
  }
  func.func @transform_9(%arg0: i32) -> (i32, i32) {
    %c0_i32 = arith.constant 0 : i32
    %c0_i32_0 = arith.constant 0 : i32
    %c0_i32_1 = arith.constant 0 : i32
    return %c0_i32, %c0_i32_0 : i32, i32
  }
  func.func @transform_10(%arg0: i32) -> (i32, i32) {
    %c0_i32 = arith.constant 0 : i32
    %c0_i32_0 = arith.constant 0 : i32
    return %arg0, %c0_i32 : i32, i32
  }
}

</mosaic_0001>

<llo_original>
// kernel: encoder_embeddings.1
$region0: #{encoder_embeddings.1}
  #allocation0 [shape = 'u32[]', space=smem, size = 0x4, offset = 0x4, fixed_abs, tag = 'smem constant byte address 0x4 - core index']
  #allocation1 [shape = 'u32[72,128]{1,0:T(1,128)}', space=vmem, size = 0x9000, scoped, tag = 'internal scratch']
  %s0 = inlined_call_operand.vmem [shape: s32[1024,1], index: 0, kind: input, shape index: {}]
  %s1 = inlined_call_operand.vmem [shape: s32[1024,1], index: 1, kind: input, shape index: {}]
  %s2 = inlined_call_operand.vmem [shape: s32[1024,1], index: 2, kind: input, shape index: {}]
  %s3 = inlined_call_operand.vmem [shape: bf16[64,128], index: 3, kind: input, shape index: {}]
  %s4 = inlined_call_operand.vmem [shape: bf16[16,128], index: 4, kind: input, shape index: {}]
  %s5 = inlined_call_operand.vmem [shape: bf16[128,128], index: 5, kind: input, shape index: {}]
  %s6 = inlined_call_operand.vmem [shape: bf16[384,256], index: 6, kind: input, shape index: {}]
  %s7 = inlined_call_operand.vmem [shape: f32[1,256], index: 7, kind: input, shape index: {}]
  %s8 = inlined_call_operand.vmem [shape: f32[1,256], index: 8, kind: input, shape index: {}]
  %s9 = inlined_call_operand.vmem [shape: f32[1,256], index: 9, kind: input, shape index: {}]
  %s10 = inlined_call_operand.hbm [shape: bf16[1024,256], index: 10, kind: output, shape index: {}]
  %s11 = sld [smem:[#allocation0]]
  $region73: #{encoder_embeddings.1} parent=0
    _
  %s13 = ssub.s32 1, %s11
  %s14 = scalar_select 0, %s13, %s11
  $region1: #{encoder_embeddings.1} parent=0
    #allocation2 [shape = 'u8[524288]{0}', space=vmem, size = 0x80000, scoped, tag = 'output window, operand 0']
    #allocation3 [shape = 's32[2]{0}', space=sflag, size = 0x8, scoped, tag = 'scoped memory for encoder_embeddings.1']
    %15 = vsyncpa [#allocation3], 0
    %s16 = scalar_lea.sflag [#allocation3], 1
    %17 = vsyncpa %s16, 0
    loop: start=0, step=1, limit=4
    $region2: #{encoder_embeddings.1} parent=1 // loop_pre_header
      _
    $region3: #{encoder_embeddings.1} parent=1 // loop_header
      %s19 = sphi 0, %s23
      %p20 = scmp.ge.s32.totalorder %s19, 4
      %s29 = sphi 0, %s31
      %s32 = sphi 0, %s29
      %s33 = sphi 0, %s32
      %s49 = sphi 0, %s33
      %s55 = sphi 0, %s57
      %s58 = sphi 0, %s55
      %s59 = sphi 0, %s58
      %s75 = sphi 0, %s59
      %s81 = sphi 0, %s83
      %s84 = sphi 0, %s81
      %s85 = sphi 0, %s84
      %s101 = sphi 0, %s85
      %s105 = sphi 0, %s105
      %s107 = sphi 0, %s105
      %s108 = sphi 0, %s107
      %s122 = sphi 0, %s108
      %s126 = sphi 0, %s126
      %s128 = sphi 0, %s126
      %s129 = sphi 0, %s128
      %s143 = sphi 0, %s129
      %s147 = sphi 0, %s147
      %s149 = sphi 0, %s147
      %s150 = sphi 0, %s149
      %s164 = sphi 0, %s150
      %s168 = sphi 0, %s168
      %s170 = sphi 0, %s168
      %s171 = sphi 0, %s170
      %s185 = sphi 0, %s171
      %s189 = sphi 0, %s189
      %s191 = sphi 0, %s189
      %s192 = sphi 0, %s191
      %s206 = sphi 0, %s192
      %s210 = sphi 0, %s210
      %s212 = sphi 0, %s210
      %s213 = sphi 0, %s212
      %s227 = sphi 0, %s213
      %s231 = sphi 0, %s231
      %s233 = sphi 0, %s231
      %s234 = sphi 0, %s233
      %s248 = sphi 0, %s234
      %s254 = sphi 0, %s256
      %s257 = sphi 0, %s254
      %s258 = sphi 0, %s257
      %s274 = sphi 0, %s258
    $region4: #{encoder_embeddings.1} parent=1 // loop_header_branch
      %22 = sbr.rel (%p20) target = $region8
    $region5: #{encoder_embeddings.1} parent=1 // loop_body
      %s24 = ssub.s32 %s19, 1
      %s25 = ssub.s32 %s19, 2
      %s26 = sadd.s32 %s19, 1
      %s27 = ssub.s32 %s19, %s26
      %p28 = scmp.eq.s32.totalorder %s27, 0
      %s30 = sadd.s32 %s29, 1
      %s31 = scalar_select %p28, %s29, %s30
      %p34 = pneg %p28
      %p35 = scmp.eq.s32.totalorder %s19, 1
      %p36 = por %p34, %p35
      %p37 = scmp.ne.s32.totalorder %s29, %s32
      %p38 = scmp.eq.s32.totalorder %s19, 0
      %p39 = por %p37, %p38
      %p40 = scmp.ne.s32.totalorder %s29, %s32
      %p41 = scmp.eq.s32.totalorder %s24, 1
      %p42 = por %p40, %p41
      %p43 = scmp.ne.s32.totalorder %s32, %s33
      %p44 = scmp.eq.s32.totalorder %s24, 0
      %p45 = por %p43, %p44
      %p46 = scmp.ne.s32.totalorder %s32, %s33
      %p47 = scmp.eq.s32.totalorder %s25, 1
      %p48 = por %p46, %p47
      %p50 = scmp.ne.s32.totalorder %s33, %s49
      %p51 = scmp.eq.s32.totalorder %s25, 0
      %p52 = por %p50, %p51
      %s53 = ssub.s32 %s19, %s26
      %p54 = scmp.eq.s32.totalorder %s53, 0
      %s56 = sadd.s32 %s55, 1
      %s57 = scalar_select %p54, %s55, %s56
      %p60 = pneg %p54
      %p61 = scmp.eq.s32.totalorder %s19, 1
      %p62 = por %p60, %p61
      %p63 = scmp.ne.s32.totalorder %s55, %s58
      %p64 = scmp.eq.s32.totalorder %s19, 0
      %p65 = por %p63, %p64
      %p66 = scmp.ne.s32.totalorder %s55, %s58
      %p67 = scmp.eq.s32.totalorder %s24, 1
      %p68 = por %p66, %p67
      %p69 = scmp.ne.s32.totalorder %s58, %s59
      %p70 = scmp.eq.s32.totalorder %s24, 0
      %p71 = por %p69, %p70
      %p72 = scmp.ne.s32.totalorder %s58, %s59
      %p73 = scmp.eq.s32.totalorder %s25, 1
      %p74 = por %p72, %p73
      %p76 = scmp.ne.s32.totalorder %s59, %s75
      %p77 = scmp.eq.s32.totalorder %s25, 0
      %p78 = por %p76, %p77
      %s79 = ssub.s32 %s19, %s26
      %p80 = scmp.eq.s32.totalorder %s79, 0
      %s82 = sadd.s32 %s81, 1
      %s83 = scalar_select %p80, %s81, %s82
      %p86 = pneg %p80
      %p87 = scmp.eq.s32.totalorder %s19, 1
      %p88 = por %p86, %p87
      %p89 = scmp.ne.s32.totalorder %s81, %s84
      %p90 = scmp.eq.s32.totalorder %s19, 0
      %p91 = por %p89, %p90
      %p92 = scmp.ne.s32.totalorder %s81, %s84
      %p93 = scmp.eq.s32.totalorder %s24, 1
      %p94 = por %p92, %p93
      %p95 = scmp.ne.s32.totalorder %s84, %s85
      %p96 = scmp.eq.s32.totalorder %s24, 0
      %p97 = por %p95, %p96
      %p98 = scmp.ne.s32.totalorder %s84, %s85
      %p99 = scmp.eq.s32.totalorder %s25, 1
      %p100 = por %p98, %p99
      %p102 = scmp.ne.s32.totalorder %s85, %s101
      %p103 = scmp.eq.s32.totalorder %s25, 0
      %p104 = por %p102, %p103
      %s106 = sadd.s32 %s105, 1
      %p109 = scmp.eq.s32.totalorder %s19, 1
      %p110 = scmp.ne.s32.totalorder %s105, %s107
      %p111 = scmp.eq.s32.totalorder %s19, 0
      %p112 = por %p110, %p111
      %p113 = scmp.ne.s32.totalorder %s105, %s107
      %p114 = scmp.eq.s32.totalorder %s24, 1
      %p115 = por %p113, %p114
      %p116 = scmp.ne.s32.totalorder %s107, %s108
      %p117 = scmp.eq.s32.totalorder %s24, 0
      %p118 = por %p116, %p117
      %p119 = scmp.ne.s32.totalorder %s107, %s108
      %p120 = scmp.eq.s32.totalorder %s25, 1
      %p121 = por %p119, %p120
      %p123 = scmp.ne.s32.totalorder %s108, %s122
      %p124 = scmp.eq.s32.totalorder %s25, 0
      %p125 = por %p123, %p124
      %s127 = sadd.s32 %s126, 1
      %p130 = scmp.eq.s32.totalorder %s19, 1
      %p131 = scmp.ne.s32.totalorder %s126, %s128
      %p132 = scmp.eq.s32.totalorder %s19, 0
      %p133 = por %p131, %p132
      %p134 = scmp.ne.s32.totalorder %s126, %s128
      %p135 = scmp.eq.s32.totalorder %s24, 1
      %p136 = por %p134, %p135
      %p137 = scmp.ne.s32.totalorder %s128, %s129
      %p138 = scmp.eq.s32.totalorder %s24, 0
      %p139 = por %p137, %p138
      %p140 = scmp.ne.s32.totalorder %s128, %s129
      %p141 = scmp.eq.s32.totalorder %s25, 1
      %p142 = por %p140, %p141
      %p144 = scmp.ne.s32.totalorder %s129, %s143
      %p145 = scmp.eq.s32.totalorder %s25, 0
      %p146 = por %p144, %p145
      %s148 = sadd.s32 %s147, 1
      %p151 = scmp.eq.s32.totalorder %s19, 1
      %p152 = scmp.ne.s32.totalorder %s147, %s149
      %p153 = scmp.eq.s32.totalorder %s19, 0
      %p154 = por %p152, %p153
      %p155 = scmp.ne.s32.totalorder %s147, %s149
      %p156 = scmp.eq.s32.totalorder %s24, 1
      %p157 = por %p155, %p156
      %p158 = scmp.ne.s32.totalorder %s149, %s150
      %p159 = scmp.eq.s32.totalorder %s24, 0
      %p160 = por %p158, %p159
      %p161 = scmp.ne.s32.totalorder %s149, %s150
      %p162 = scmp.eq.s32.totalorder %s25, 1
      %p163 = por %p161, %p162
      %p165 = scmp.ne.s32.totalorder %s150, %s164
      %p166 = scmp.eq.s32.totalorder %s25, 0
      %p167 = por %p165, %p166
      %s169 = sadd.s32 %s168, 1
      %p172 = scmp.eq.s32.totalorder %s19, 1
      %p173 = scmp.ne.s32.totalorder %s168, %s170
      %p174 = scmp.eq.s32.totalorder %s19, 0
      %p175 = por %p173, %p174
      %p176 = scmp.ne.s32.totalorder %s168, %s170
      %p177 = scmp.eq.s32.totalorder %s24, 1
      %p178 = por %p176, %p177
      %p179 = scmp.ne.s32.totalorder %s170, %s171
      %p180 = scmp.eq.s32.totalorder %s24, 0
      %p181 = por %p179, %p180
      %p182 = scmp.ne.s32.totalorder %s170, %s171
      %p183 = scmp.eq.s32.totalorder %s25, 1
      %p184 = por %p182, %p183
      %p186 = scmp.ne.s32.totalorder %s171, %s185
      %p187 = scmp.eq.s32.totalorder %s25, 0
      %p188 = por %p186, %p187
      %s190 = sadd.s32 %s189, 1
      %p193 = scmp.eq.s32.totalorder %s19, 1
      %p194 = scmp.ne.s32.totalorder %s189, %s191
      %p195 = scmp.eq.s32.totalorder %s19, 0
      %p196 = por %p194, %p195
      %p197 = scmp.ne.s32.totalorder %s189, %s191
      %p198 = scmp.eq.s32.totalorder %s24, 1
      %p199 = por %p197, %p198
      %p200 = scmp.ne.s32.totalorder %s191, %s192
      %p201 = scmp.eq.s32.totalorder %s24, 0
      %p202 = por %p200, %p201
      %p203 = scmp.ne.s32.totalorder %s191, %s192
      %p204 = scmp.eq.s32.totalorder %s25, 1
      %p205 = por %p203, %p204
      %p207 = scmp.ne.s32.totalorder %s192, %s206
      %p208 = scmp.eq.s32.totalorder %s25, 0
      %p209 = por %p207, %p208
      %s211 = sadd.s32 %s210, 1
      %p214 = scmp.eq.s32.totalorder %s19, 1
      %p215 = scmp.ne.s32.totalorder %s210, %s212
      %p216 = scmp.eq.s32.totalorder %s19, 0
      %p217 = por %p215, %p216
      %p218 = scmp.ne.s32.totalorder %s210, %s212
      %p219 = scmp.eq.s32.totalorder %s24, 1
      %p220 = por %p218, %p219
      %p221 = scmp.ne.s32.totalorder %s212, %s213
      %p222 = scmp.eq.s32.totalorder %s24, 0
      %p223 = por %p221, %p222
      %p224 = scmp.ne.s32.totalorder %s212, %s213
      %p225 = scmp.eq.s32.totalorder %s25, 1
      %p226 = por %p224, %p225
      %p228 = scmp.ne.s32.totalorder %s213, %s227
      %p229 = scmp.eq.s32.totalorder %s25, 0
      %p230 = por %p228, %p229
      %s232 = sadd.s32 %s231, 1
      %p235 = scmp.eq.s32.totalorder %s19, 1
      %p236 = scmp.ne.s32.totalorder %s231, %s233
      %p237 = scmp.eq.s32.totalorder %s19, 0
      %p238 = por %p236, %p237
      %p239 = scmp.ne.s32.totalorder %s231, %s233
      %p240 = scmp.eq.s32.totalorder %s24, 1
      %p241 = por %p239, %p240
      %p242 = scmp.ne.s32.totalorder %s233, %s234
      %p243 = scmp.eq.s32.totalorder %s24, 0
      %p244 = por %p242, %p243
      %p245 = scmp.ne.s32.totalorder %s233, %s234
      %p246 = scmp.eq.s32.totalorder %s25, 1
      %p247 = por %p245, %p246
      %p249 = scmp.ne.s32.totalorder %s234, %s248
      %p250 = scmp.eq.s32.totalorder %s25, 0
      %p251 = por %p249, %p250
      %s252 = ssub.s32 %s19, %s26
      %p253 = scmp.eq.s32.totalorder %s252, 0
      %s255 = sadd.s32 %s254, 1
      %s256 = scalar_select %p253, %s254, %s255
      %p259 = pneg %p253
      %p260 = scmp.eq.s32.totalorder %s19, 1
      %p261 = por %p259, %p260
      %p262 = scmp.ne.s32.totalorder %s254, %s257
      %p263 = scmp.eq.s32.totalorder %s19, 0
      %p264 = por %p262, %p263
      %p265 = scmp.ne.s32.totalorder %s254, %s257
      %p266 = scmp.eq.s32.totalorder %s24, 1
      %p267 = por %p265, %p266
      %p268 = scmp.ne.s32.totalorder %s257, %s258
      %p269 = scmp.eq.s32.totalorder %s24, 0
      %p270 = por %p268, %p269
      %p271 = scmp.ne.s32.totalorder %s257, %s258
      %p272 = scmp.eq.s32.totalorder %s25, 1
      %p273 = por %p271, %p272
      %p275 = scmp.ne.s32.totalorder %s258, %s274
      %p276 = scmp.eq.s32.totalorder %s25, 0
      %p277 = por %p275, %p276
      %p278 = scmp.le.s32.totalorder 1, %s19
      %p279 = scmp.lt.s32.totalorder %s19, 3
      %p280 = pnand %p278, %p279
      %p281 = pneg %p280
      // Predicated region
      $region9: #{encoder_embeddings.1} parent=5 // pred_check
        _
      $region10: #{encoder_embeddings.1} parent=5 // pred_check_branch
        %283 = sbr.rel (%p280) target = $region12
      $region11: #{encoder_embeddings.1} parent=5 // pred_region
        %s284 = ssub.s32 %s19, 1
        // Predicated region
        $region13: #{encoder_embeddings.1} parent=11 // pred_check
          %p285 = pneg %p118
        $region14: #{encoder_embeddings.1} parent=11 // pred_check_branch
          %287 = sbr.rel (%p285) target = $region16
        $region15: #{encoder_embeddings.1} parent=11 // pred_region
          _
        $region16: #{encoder_embeddings.1} parent=11 // pred_fallthru
          _
        // Predicated region
        $region17: #{encoder_embeddings.1} parent=11 // pred_check
          %p288 = pneg %p139
        $region18: #{encoder_embeddings.1} parent=11 // pred_check_branch
          %290 = sbr.rel (%p288) target = $region20
        $region19: #{encoder_embeddings.1} parent=11 // pred_region
          _
        $region20: #{encoder_embeddings.1} parent=11 // pred_fallthru
          _
        // Predicated region
        $region21: #{encoder_embeddings.1} parent=11 // pred_check
          %p291 = pneg %p160
        $region22: #{encoder_embeddings.1} parent=11 // pred_check_branch
          %293 = sbr.rel (%p291) target = $region24
        $region23: #{encoder_embeddings.1} parent=11 // pred_region
          _
        $region24: #{encoder_embeddings.1} parent=11 // pred_fallthru
          _
        // Predicated region
        $region25: #{encoder_embeddings.1} parent=11 // pred_check
          %p294 = pneg %p181
        $region26: #{encoder_embeddings.1} parent=11 // pred_check_branch
          %296 = sbr.rel (%p294) target = $region28
        $region27: #{encoder_embeddings.1} parent=11 // pred_region
          _
        $region28: #{encoder_embeddings.1} parent=11 // pred_fallthru
          _
        // Predicated region
        $region29: #{encoder_embeddings.1} parent=11 // pred_check
          %p297 = pneg %p202
        $region30: #{encoder_embeddings.1} parent=11 // pred_check_branch
          %299 = sbr.rel (%p297) target = $region32
        $region31: #{encoder_embeddings.1} parent=11 // pred_region
          _
        $region32: #{encoder_embeddings.1} parent=11 // pred_fallthru
          _
        // Predicated region
        $region33: #{encoder_embeddings.1} parent=11 // pred_check
          %p300 = pneg %p223
        $region34: #{encoder_embeddings.1} parent=11 // pred_check_branch
          %302 = sbr.rel (%p300) target = $region36
        $region35: #{encoder_embeddings.1} parent=11 // pred_region
          _
        $region36: #{encoder_embeddings.1} parent=11 // pred_fallthru
          _
        // Predicated region
        $region37: #{encoder_embeddings.1} parent=11 // pred_check
          %p303 = pneg %p244
        $region38: #{encoder_embeddings.1} parent=11 // pred_check_branch
          %305 = sbr.rel (%p303) target = $region40
        $region39: #{encoder_embeddings.1} parent=11 // pred_region
          _
        $region40: #{encoder_embeddings.1} parent=11 // pred_fallthru
          _
      $region12: #{encoder_embeddings.1} parent=5 // pred_fallthru
        _
      %p306 = scmp.lt.s32.totalorder %s19, 2
      // Predicated region
      $region41: #{encoder_embeddings.1} parent=5 // pred_check
        %p307 = pneg %p306
      $region42: #{encoder_embeddings.1} parent=5 // pred_check_branch
        %309 = sbr.rel (%p307) target = $region44
      $region43: #{encoder_embeddings.1} parent=5 // pred_region
        // Predicated region
        $region45: #{encoder_embeddings.1} parent=43 // pred_check
          %p310 = pneg %p39
        $region46: #{encoder_embeddings.1} parent=43 // pred_check_branch
          %312 = sbr.rel (%p310) target = $region48
        $region47: #{encoder_embeddings.1} parent=43 // pred_region
          %s313 = smul.u32 64, %s19
          %p314 = scmp.lt.s32.totalorder %s313, 127
          %s315 = scalar_select %p314, %s313, 127
          %s316 = smul.addr %s315, 8
          %s317 = scalar_lea.vmem %s0, %s316
          %s318 = smul.u32 64, %s19
        $region48: #{encoder_embeddings.1} parent=43 // pred_fallthru
          _
        // Predicated region
        $region49: #{encoder_embeddings.1} parent=43 // pred_check
          %p319 = pneg %p65
        $region50: #{encoder_embeddings.1} parent=43 // pred_check_branch
          %321 = sbr.rel (%p319) target = $region52
        $region51: #{encoder_embeddings.1} parent=43 // pred_region
          %s322 = smul.u32 64, %s19
          %p323 = scmp.lt.s32.totalorder %s322, 127
          %s324 = scalar_select %p323, %s322, 127
          %s325 = smul.addr %s324, 8
          %s326 = scalar_lea.vmem %s1, %s325
          %s327 = smul.u32 64, %s19
        $region52: #{encoder_embeddings.1} parent=43 // pred_fallthru
          _
        // Predicated region
        $region53: #{encoder_embeddings.1} parent=43 // pred_check
          %p328 = pneg %p91
        $region54: #{encoder_embeddings.1} parent=43 // pred_check_branch
          %330 = sbr.rel (%p328) target = $region56
        $region55: #{encoder_embeddings.1} parent=43 // pred_region
          %s331 = smul.u32 64, %s19
          %p332 = scmp.lt.s32.totalorder %s331, 127
          %s333 = scalar_select %p332, %s331, 127
          %s334 = smul.addr %s333, 8
          %s335 = scalar_lea.vmem %s2, %s334
          %s336 = smul.u32 64, %s19
        $region56: #{encoder_embeddings.1} parent=43 // pred_fallthru
          _
      $region44: #{encoder_embeddings.1} parent=5 // pred_fallthru
        _
      %p337 = scmp.le.s32.totalorder 1, %s19
      %p338 = scmp.lt.s32.totalorder %s19, 3
      %p339 = pnand %p337, %p338
      %p340 = pneg %p339
      // Predicated region
      $region57: #{encoder_embeddings.1} parent=5 // pred_check
        _
      $region58: #{encoder_embeddings.1} parent=5 // pred_check_branch
        %342 = sbr.rel (%p339) target = $region60
      $region59: #{encoder_embeddings.1} parent=5 // pred_region
        %s343 = ssub.s32 %s19, 1
        %s344 = smul.u32 64, %s24
        %p345 = scmp.lt.s32.totalorder %s344, 127
        %s346 = scalar_select %p345, %s344, 127
        %s347 = smul.addr %s346, 8
        %s348 = scalar_lea.vmem %s0, %s347
        %p349 = pneg %p45
        %p350 = pneg %p42
        %s351 = smul.u32 64, %s24
        %p352 = scmp.lt.s32.totalorder %s351, 127
        %s353 = scalar_select %p352, %s351, 127
        %s354 = smul.addr %s353, 8
        %s355 = scalar_lea.vmem %s1, %s354
        %p356 = pneg %p71
        %p357 = pneg %p68
        %s358 = smul.u32 64, %s24
        %p359 = scmp.lt.s32.totalorder %s358, 127
        %s360 = scalar_select %p359, %s358, 127
        %s361 = smul.addr %s360, 8
        %s362 = scalar_lea.vmem %s2, %s361
        %p363 = pneg %p97
        %p364 = pneg %p94
        %p365 = pneg %p118
        %p366 = pneg %p115
        %p367 = pneg %p139
        %p368 = pneg %p136
        %p369 = pneg %p160
        %p370 = pneg %p157
        %p371 = pneg %p181
        %p372 = pneg %p178
        %p373 = pneg %p202
        %p374 = pneg %p199
        %p375 = pneg %p223
        %p376 = pneg %p220
        %p377 = pneg %p244
        %p378 = pneg %p241
        %p379 = pneg %p270
        %p380 = pneg %p267
        %s381 = sand.u32 %s257, 1
        %s382 = scalar_lea.sflag [#allocation3], %s381
        %s383 = sand.u32 %s257, 1
        %s384 = smul.addr %s383, 512
        %s385 = scalar_lea.vmem [#allocation2], %s384
        %s386 = smul.u32 64, %s24
        %p387 = scmp.lt.s32.totalorder %s386, 127
        %s388 = scalar_select %p387, %s386, 127
        %s389 = smul.addr %s388, 8
        %s390 = scalar_lea.vmem %s0, %s389
        %s391 = smul.u32 64, %s24
        %s392 = smul.u32 64, %s24
        %p393 = scmp.lt.s32.totalorder %s392, 127
        %s394 = scalar_select %p393, %s392, 127
        %s395 = smul.addr %s394, 8
        %s396 = scalar_lea.vmem %s1, %s395
        %s397 = smul.u32 64, %s24
        %s398 = smul.u32 64, %s24
        %p399 = scmp.lt.s32.totalorder %s398, 127
        %s400 = scalar_select %p399, %s398, 127
        %s401 = smul.addr %s400, 8
        %s402 = scalar_lea.vmem %s2, %s401
        %s403 = smul.u32 64, %s24
        %s404 = smul.u32 64, %s24
        %v406 = vld [vmem:[%s3] sm:$0xf]
        %v407 = vld [vmem:[%s3 + $0x4] sm:$0xf]
        %v408 = vld [vmem:[%s3 + $0x8] sm:$0xf]
        %v409 = vld [vmem:[%s3 + $0xc] sm:$0xf]
        %v410 = vld [vmem:[%s3 + $0x10] sm:$0xf]
        %v411 = vld [vmem:[%s3 + $0x14] sm:$0xf]
        %v412 = vld [vmem:[%s3 + $0x18] sm:$0xf]
        %v413 = vld [vmem:[%s3 + $0x1c] sm:$0xf]
        %v414 = vld [vmem:[%s390] sm:$0xff]
        %v415 = vld [vmem:[%s390 + $0x8] sm:$0xff]
        %v416 = vld [vmem:[%s390 + $0x10] sm:$0xff]
        %v417 = vld [vmem:[%s390 + $0x18] sm:$0xff]
        %v418 = vld [vmem:[%s390 + $0x20] sm:$0xff]
        %v419 = vld [vmem:[%s390 + $0x28] sm:$0xff]
        %v420 = vld [vmem:[%s390 + $0x30] sm:$0xff]
        %v421 = vld [vmem:[%s390 + $0x38] sm:$0xff]
        %v422 = vld [vmem:[%s390 + $0x40] sm:$0xff]
        %v423 = vld [vmem:[%s390 + $0x48] sm:$0xff]
        %v424 = vld [vmem:[%s390 + $0x50] sm:$0xff]
        %v425 = vld [vmem:[%s390 + $0x58] sm:$0xff]
        %v426 = vld [vmem:[%s390 + $0x60] sm:$0xff]
        %v427 = vld [vmem:[%s390 + $0x68] sm:$0xff]
        %v428 = vld [vmem:[%s390 + $0x70] sm:$0xff]
        %v429 = vld [vmem:[%s390 + $0x78] sm:$0xff]
        %v430 = vld [vmem:[%s390 + $0x80] sm:$0xff]
        %v431 = vld [vmem:[%s390 + $0x88] sm:$0xff]
        %v432 = vld [vmem:[%s390 + $0x90] sm:$0xff]
        %v433 = vld [vmem:[%s390 + $0x98] sm:$0xff]
        %v434 = vld [vmem:[%s390 + $0xa0] sm:$0xff]
        %v435 = vld [vmem:[%s390 + $0xa8] sm:$0xff]
        %v436 = vld [vmem:[%s390 + $0xb0] sm:$0xff]
        %v437 = vld [vmem:[%s390 + $0xb8] sm:$0xff]
        %v438 = vld [vmem:[%s390 + $0xc0] sm:$0xff]
        %v439 = vld [vmem:[%s390 + $0xc8] sm:$0xff]
        %v440 = vld [vmem:[%s390 + $0xd0] sm:$0xff]
        %v441 = vld [vmem:[%s390 + $0xd8] sm:$0xff]
        %v442 = vld [vmem:[%s390 + $0xe0] sm:$0xff]
        %v443 = vld [vmem:[%s390 + $0xe8] sm:$0xff]
        %v444 = vld [vmem:[%s390 + $0xf0] sm:$0xff]
        %v445 = vld [vmem:[%s390 + $0xf8] sm:$0xff]
        %v446 = vld [vmem:[%s390 + $0x100] sm:$0xff]
        %v447 = vld [vmem:[%s390 + $0x108] sm:$0xff]
        %v448 = vld [vmem:[%s390 + $0x110] sm:$0xff]
        %v449 = vld [vmem:[%s390 + $0x118] sm:$0xff]
        %v450 = vld [vmem:[%s390 + $0x120] sm:$0xff]
        %v451 = vld [vmem:[%s390 + $0x128] sm:$0xff]
        %v452 = vld [vmem:[%s390 + $0x130] sm:$0xff]
        %v453 = vld [vmem:[%s390 + $0x138] sm:$0xff]
        %v454 = vld [vmem:[%s390 + $0x140] sm:$0xff]
        %v455 = vld [vmem:[%s390 + $0x148] sm:$0xff]
        %v456 = vld [vmem:[%s390 + $0x150] sm:$0xff]
        %v457 = vld [vmem:[%s390 + $0x158] sm:$0xff]
        %v458 = vld [vmem:[%s390 + $0x160] sm:$0xff]
        %v459 = vld [vmem:[%s390 + $0x168] sm:$0xff]
        %v460 = vld [vmem:[%s390 + $0x170] sm:$0xff]
        %v461 = vld [vmem:[%s390 + $0x178] sm:$0xff]
        %v462 = vld [vmem:[%s390 + $0x180] sm:$0xff]
        %v463 = vld [vmem:[%s390 + $0x188] sm:$0xff]
        %v464 = vld [vmem:[%s390 + $0x190] sm:$0xff]
        %v465 = vld [vmem:[%s390 + $0x198] sm:$0xff]
        %v466 = vld [vmem:[%s390 + $0x1a0] sm:$0xff]
        %v467 = vld [vmem:[%s390 + $0x1a8] sm:$0xff]
        %v468 = vld [vmem:[%s390 + $0x1b0] sm:$0xff]
        %v469 = vld [vmem:[%s390 + $0x1b8] sm:$0xff]
        %v470 = vld [vmem:[%s390 + $0x1c0] sm:$0xff]
        %v471 = vld [vmem:[%s390 + $0x1c8] sm:$0xff]
        %v472 = vld [vmem:[%s390 + $0x1d0] sm:$0xff]
        %v473 = vld [vmem:[%s390 + $0x1d8] sm:$0xff]
        %v474 = vld [vmem:[%s390 + $0x1e0] sm:$0xff]
        %v475 = vld [vmem:[%s390 + $0x1e8] sm:$0xff]
        %v476 = vld [vmem:[%s390 + $0x1f0] sm:$0xff]
        %v477 = vld [vmem:[%s390 + $0x1f8] sm:$0xff]
        %v478 = vlaneseq
        %v479 = vand.u32 %v478, 127
        %480 = vset.pattern.permute.xlu0 0
        %481 = vperm.xlu0 %480, %v414
        %v482 = vpop.permute.xlu0 %481
        %483 = vset.pattern.permute.xlu0 0
        %484 = vperm.xlu0 %483, %v415
        %v485 = vpop.permute.xlu0 %484
        %486 = vset.pattern.permute.xlu0 0
        %487 = vperm.xlu0 %486, %v416
        %v488 = vpop.permute.xlu0 %487
        %489 = vset.pattern.permute.xlu0 0
        %490 = vperm.xlu0 %489, %v417
        %v491 = vpop.permute.xlu0 %490
        %492 = vset.pattern.permute.xlu0 0
        %493 = vperm.xlu0 %492, %v418
        %v494 = vpop.permute.xlu0 %493
        %495 = vset.pattern.permute.xlu0 0
        %496 = vperm.xlu0 %495, %v419
        %v497 = vpop.permute.xlu0 %496
        %498 = vset.pattern.permute.xlu0 0
        %499 = vperm.xlu0 %498, %v420
        %v500 = vpop.permute.xlu0 %499
        %501 = vset.pattern.permute.xlu0 0
        %502 = vperm.xlu0 %501, %v421
        %v503 = vpop.permute.xlu0 %502
        %504 = vset.pattern.permute.xlu0 0
        %505 = vperm.xlu0 %504, %v422
        %v506 = vpop.permute.xlu0 %505
        %507 = vset.pattern.permute.xlu0 0
        %508 = vperm.xlu0 %507, %v423
        %v509 = vpop.permute.xlu0 %508
        %510 = vset.pattern.permute.xlu0 0
        %511 = vperm.xlu0 %510, %v424
        %v512 = vpop.permute.xlu0 %511
        %513 = vset.pattern.permute.xlu0 0
        %514 = vperm.xlu0 %513, %v425
        %v515 = vpop.permute.xlu0 %514
        %516 = vset.pattern.permute.xlu0 0
        %517 = vperm.xlu0 %516, %v426
        %v518 = vpop.permute.xlu0 %517
        %519 = vset.pattern.permute.xlu0 0
        %520 = vperm.xlu0 %519, %v427
        %v521 = vpop.permute.xlu0 %520
        %522 = vset.pattern.permute.xlu0 0
        %523 = vperm.xlu0 %522, %v428
        %v524 = vpop.permute.xlu0 %523
        %525 = vset.pattern.permute.xlu0 0
        %526 = vperm.xlu0 %525, %v429
        %v527 = vpop.permute.xlu0 %526
        %528 = vset.pattern.permute.xlu0 0
        %529 = vperm.xlu0 %528, %v430
        %v530 = vpop.permute.xlu0 %529
        %531 = vset.pattern.permute.xlu0 0
        %532 = vperm.xlu0 %531, %v431
        %v533 = vpop.permute.xlu0 %532
        %534 = vset.pattern.permute.xlu0 0
        %535 = vperm.xlu0 %534, %v432
        %v536 = vpop.permute.xlu0 %535
        %537 = vset.pattern.permute.xlu0 0
        %538 = vperm.xlu0 %537, %v433
        %v539 = vpop.permute.xlu0 %538
        %540 = vset.pattern.permute.xlu0 0
        %541 = vperm.xlu0 %540, %v434
        %v542 = vpop.permute.xlu0 %541
        %543 = vset.pattern.permute.xlu0 0
        %544 = vperm.xlu0 %543, %v435
        %v545 = vpop.permute.xlu0 %544
        %546 = vset.pattern.permute.xlu0 0
        %547 = vperm.xlu0 %546, %v436
        %v548 = vpop.permute.xlu0 %547
        %549 = vset.pattern.permute.xlu0 0
        %550 = vperm.xlu0 %549, %v437
        %v551 = vpop.permute.xlu0 %550
        %552 = vset.pattern.permute.xlu0 0
        %553 = vperm.xlu0 %552, %v438
        %v554 = vpop.permute.xlu0 %553
        %555 = vset.pattern.permute.xlu0 0
        %556 = vperm.xlu0 %555, %v439
        %v557 = vpop.permute.xlu0 %556
        %558 = vset.pattern.permute.xlu0 0
        %559 = vperm.xlu0 %558, %v440
        %v560 = vpop.permute.xlu0 %559
        %561 = vset.pattern.permute.xlu0 0
        %562 = vperm.xlu0 %561, %v441
        %v563 = vpop.permute.xlu0 %562
        %564 = vset.pattern.permute.xlu0 0
        %565 = vperm.xlu0 %564, %v442
        %v566 = vpop.permute.xlu0 %565
        %567 = vset.pattern.permute.xlu0 0
        %568 = vperm.xlu0 %567, %v443
        %v569 = vpop.permute.xlu0 %568
        %570 = vset.pattern.permute.xlu0 0
        %571 = vperm.xlu0 %570, %v444
        %v572 = vpop.permute.xlu0 %571
        %573 = vset.pattern.permute.xlu0 0
        %574 = vperm.xlu0 %573, %v445
        %v575 = vpop.permute.xlu0 %574
        %576 = vset.pattern.permute.xlu0 0
        %577 = vperm.xlu0 %576, %v446
        %v578 = vpop.permute.xlu0 %577
        %579 = vset.pattern.permute.xlu0 0
        %580 = vperm.xlu0 %579, %v447
        %v581 = vpop.permute.xlu0 %580
        %582 = vset.pattern.permute.xlu0 0
        %583 = vperm.xlu0 %582, %v448
        %v584 = vpop.permute.xlu0 %583
        %585 = vset.pattern.permute.xlu0 0
        %586 = vperm.xlu0 %585, %v449
        %v587 = vpop.permute.xlu0 %586
        %588 = vset.pattern.permute.xlu0 0
        %589 = vperm.xlu0 %588, %v450
        %v590 = vpop.permute.xlu0 %589
        %591 = vset.pattern.permute.xlu0 0
        %592 = vperm.xlu0 %591, %v451
        %v593 = vpop.permute.xlu0 %592
        %594 = vset.pattern.permute.xlu0 0
        %595 = vperm.xlu0 %594, %v452
        %v596 = vpop.permute.xlu0 %595
        %597 = vset.pattern.permute.xlu0 0
        %598 = vperm.xlu0 %597, %v453
        %v599 = vpop.permute.xlu0 %598
        %600 = vset.pattern.permute.xlu0 0
        %601 = vperm.xlu0 %600, %v454
        %v602 = vpop.permute.xlu0 %601
        %603 = vset.pattern.permute.xlu0 0
        %604 = vperm.xlu0 %603, %v455
        %v605 = vpop.permute.xlu0 %604
        %606 = vset.pattern.permute.xlu0 0
        %607 = vperm.xlu0 %606, %v456
        %v608 = vpop.permute.xlu0 %607
        %609 = vset.pattern.permute.xlu0 0
        %610 = vperm.xlu0 %609, %v457
        %v611 = vpop.permute.xlu0 %610
        %612 = vset.pattern.permute.xlu0 0
        %613 = vperm.xlu0 %612, %v458
        %v614 = vpop.permute.xlu0 %613
        %615 = vset.pattern.permute.xlu0 0
        %616 = vperm.xlu0 %615, %v459
        %v617 = vpop.permute.xlu0 %616
        %618 = vset.pattern.permute.xlu0 0
        %619 = vperm.xlu0 %618, %v460
        %v620 = vpop.permute.xlu0 %619
        %621 = vset.pattern.permute.xlu0 0
        %622 = vperm.xlu0 %621, %v461
        %v623 = vpop.permute.xlu0 %622
        %624 = vset.pattern.permute.xlu0 0
        %625 = vperm.xlu0 %624, %v462
        %v626 = vpop.permute.xlu0 %625
        %627 = vset.pattern.permute.xlu0 0
        %628 = vperm.xlu0 %627, %v463
        %v629 = vpop.permute.xlu0 %628
        %630 = vset.pattern.permute.xlu0 0
        %631 = vperm.xlu0 %630, %v464
        %v632 = vpop.permute.xlu0 %631
        %633 = vset.pattern.permute.xlu0 0
        %634 = vperm.xlu0 %633, %v465
        %v635 = vpop.permute.xlu0 %634
        %636 = vset.pattern.permute.xlu0 0
        %637 = vperm.xlu0 %636, %v466
        %v638 = vpop.permute.xlu0 %637
        %639 = vset.pattern.permute.xlu0 0
        %640 = vperm.xlu0 %639, %v467
        %v641 = vpop.permute.xlu0 %640
        %642 = vset.pattern.permute.xlu0 0
        %643 = vperm.xlu0 %642, %v468
        %v644 = vpop.permute.xlu0 %643
        %645 = vset.pattern.permute.xlu0 0
        %646 = vperm.xlu0 %645, %v469
        %v647 = vpop.permute.xlu0 %646
        %648 = vset.pattern.permute.xlu0 0
        %649 = vperm.xlu0 %648, %v470
        %v650 = vpop.permute.xlu0 %649
        %651 = vset.pattern.permute.xlu0 0
        %652 = vperm.xlu0 %651, %v471
        %v653 = vpop.permute.xlu0 %652
        %654 = vset.pattern.permute.xlu0 0
        %655 = vperm.xlu0 %654, %v472
        %v656 = vpop.permute.xlu0 %655
        %657 = vset.pattern.permute.xlu0 0
        %658 = vperm.xlu0 %657, %v473
        %v659 = vpop.permute.xlu0 %658
        %660 = vset.pattern.permute.xlu0 0
        %661 = vperm.xlu0 %660, %v474
        %v662 = vpop.permute.xlu0 %661
        %663 = vset.pattern.permute.xlu0 0
        %664 = vperm.xlu0 %663, %v475
        %v665 = vpop.permute.xlu0 %664
        %666 = vset.pattern.permute.xlu0 0
        %667 = vperm.xlu0 %666, %v476
        %v668 = vpop.permute.xlu0 %667
        %669 = vset.pattern.permute.xlu0 0
        %670 = vperm.xlu0 %669, %v477
        %v671 = vpop.permute.xlu0 %670
        %vm672 = vcmp.eq.s32.totalorder %v479, %v482
        %vm673 = vcmp.eq.s32.totalorder %v479, %v485
        %vm674 = vcmp.eq.s32.totalorder %v479, %v488
        %vm675 = vcmp.eq.s32.totalorder %v479, %v491
        %vm676 = vcmp.eq.s32.totalorder %v479, %v494
        %vm677 = vcmp.eq.s32.totalorder %v479, %v497
        %vm678 = vcmp.eq.s32.totalorder %v479, %v500
        %vm679 = vcmp.eq.s32.totalorder %v479, %v503
        %vm680 = vcmp.eq.s32.totalorder %v479, %v506
        %vm681 = vcmp.eq.s32.totalorder %v479, %v509
        %vm682 = vcmp.eq.s32.totalorder %v479, %v512
        %vm683 = vcmp.eq.s32.totalorder %v479, %v515
        %vm684 = vcmp.eq.s32.totalorder %v479, %v518
        %vm685 = vcmp.eq.s32.totalorder %v479, %v521
        %vm686 = vcmp.eq.s32.totalorder %v479, %v524
        %vm687 = vcmp.eq.s32.totalorder %v479, %v527
        %vm688 = vcmp.eq.s32.totalorder %v479, %v530
        %vm689 = vcmp.eq.s32.totalorder %v479, %v533
        %vm690 = vcmp.eq.s32.totalorder %v479, %v536
        %vm691 = vcmp.eq.s32.totalorder %v479, %v539
        %vm692 = vcmp.eq.s32.totalorder %v479, %v542
        %vm693 = vcmp.eq.s32.totalorder %v479, %v545
        %vm694 = vcmp.eq.s32.totalorder %v479, %v548
        %vm695 = vcmp.eq.s32.totalorder %v479, %v551
        %vm696 = vcmp.eq.s32.totalorder %v479, %v554
        %vm697 = vcmp.eq.s32.totalorder %v479, %v557
        %vm698 = vcmp.eq.s32.totalorder %v479, %v560
        %vm699 = vcmp.eq.s32.totalorder %v479, %v563
        %vm700 = vcmp.eq.s32.totalorder %v479, %v566
        %vm701 = vcmp.eq.s32.totalorder %v479, %v569
        %vm702 = vcmp.eq.s32.totalorder %v479, %v572
        %vm703 = vcmp.eq.s32.totalorder %v479, %v575
        %vm704 = vcmp.eq.s32.totalorder %v479, %v578
        %vm705 = vcmp.eq.s32.totalorder %v479, %v581
        %vm706 = vcmp.eq.s32.totalorder %v479, %v584
        %vm707 = vcmp.eq.s32.totalorder %v479, %v587
        %vm708 = vcmp.eq.s32.totalorder %v479, %v590
        %vm709 = vcmp.eq.s32.totalorder %v479, %v593
        %vm710 = vcmp.eq.s32.totalorder %v479, %v596
        %vm711 = vcmp.eq.s32.totalorder %v479, %v599
        %vm712 = vcmp.eq.s32.totalorder %v479, %v602
        %vm713 = vcmp.eq.s32.totalorder %v479, %v605
        %vm714 = vcmp.eq.s32.totalorder %v479, %v608
        %vm715 = vcmp.eq.s32.totalorder %v479, %v611
        %vm716 = vcmp.eq.s32.totalorder %v479, %v614
        %vm717 = vcmp.eq.s32.totalorder %v479, %v617
        %vm718 = vcmp.eq.s32.totalorder %v479, %v620
        %vm719 = vcmp.eq.s32.totalorder %v479, %v623
        %vm720 = vcmp.eq.s32.totalorder %v479, %v626
        %vm721 = vcmp.eq.s32.totalorder %v479, %v629
        %vm722 = vcmp.eq.s32.totalorder %v479, %v632
        %vm723 = vcmp.eq.s32.totalorder %v479, %v635
        %vm724 = vcmp.eq.s32.totalorder %v479, %v638
        %vm725 = vcmp.eq.s32.totalorder %v479, %v641
        %vm726 = vcmp.eq.s32.totalorder %v479, %v644
        %vm727 = vcmp.eq.s32.totalorder %v479, %v647
        %vm728 = vcmp.eq.s32.totalorder %v479, %v650
        %vm729 = vcmp.eq.s32.totalorder %v479, %v653
        %vm730 = vcmp.eq.s32.totalorder %v479, %v656
        %vm731 = vcmp.eq.s32.totalorder %v479, %v659
        %vm732 = vcmp.eq.s32.totalorder %v479, %v662
        %vm733 = vcmp.eq.s32.totalorder %v479, %v665
        %vm734 = vcmp.eq.s32.totalorder %v479, %v668
        %vm735 = vcmp.eq.s32.totalorder %v479, %v671
        %v736 = vsel %vm672, 1.0, 0.0
        %v737 = vsel %vm673, 1.0, 0.0
        %v738 = vsel %vm674, 1.0, 0.0
        %v739 = vsel %vm675, 1.0, 0.0
        %v740 = vsel %vm676, 1.0, 0.0
        %v741 = vsel %vm677, 1.0, 0.0
        %v742 = vsel %vm678, 1.0, 0.0
        %v743 = vsel %vm679, 1.0, 0.0
        %v744 = vsel %vm680, 1.0, 0.0
        %v745 = vsel %vm681, 1.0, 0.0
        %v746 = vsel %vm682, 1.0, 0.0
        %v747 = vsel %vm683, 1.0, 0.0
        %v748 = vsel %vm684, 1.0, 0.0
        %v749 = vsel %vm685, 1.0, 0.0
        %v750 = vsel %vm686, 1.0, 0.0
        %v751 = vsel %vm687, 1.0, 0.0
        %v752 = vsel %vm688, 1.0, 0.0
        %v753 = vsel %vm689, 1.0, 0.0
        %v754 = vsel %vm690, 1.0, 0.0
        %v755 = vsel %vm691, 1.0, 0.0
        %v756 = vsel %vm692, 1.0, 0.0
        %v757 = vsel %vm693, 1.0, 0.0
        %v758 = vsel %vm694, 1.0, 0.0
        %v759 = vsel %vm695, 1.0, 0.0
        %v760 = vsel %vm696, 1.0, 0.0
        %v761 = vsel %vm697, 1.0, 0.0
        %v762 = vsel %vm698, 1.0, 0.0
        %v763 = vsel %vm699, 1.0, 0.0
        %v764 = vsel %vm700, 1.0, 0.0
        %v765 = vsel %vm701, 1.0, 0.0
        %v766 = vsel %vm702, 1.0, 0.0
        %v767 = vsel %vm703, 1.0, 0.0
        %v768 = vsel %vm704, 1.0, 0.0
        %v769 = vsel %vm705, 1.0, 0.0
        %v770 = vsel %vm706, 1.0, 0.0
        %v771 = vsel %vm707, 1.0, 0.0
        %v772 = vsel %vm708, 1.0, 0.0
        %v773 = vsel %vm709, 1.0, 0.0
        %v774 = vsel %vm710, 1.0, 0.0
        %v775 = vsel %vm711, 1.0, 0.0
        %v776 = vsel %vm712, 1.0, 0.0
        %v777 = vsel %vm713, 1.0, 0.0
        %v778 = vsel %vm714, 1.0, 0.0
        %v779 = vsel %vm715, 1.0, 0.0
        %v780 = vsel %vm716, 1.0, 0.0
        %v781 = vsel %vm717, 1.0, 0.0
        %v782 = vsel %vm718, 1.0, 0.0
        %v783 = vsel %vm719, 1.0, 0.0
        %v784 = vsel %vm720, 1.0, 0.0
        %v785 = vsel %vm721, 1.0, 0.0
        %v786 = vsel %vm722, 1.0, 0.0
        %v787 = vsel %vm723, 1.0, 0.0
        %v788 = vsel %vm724, 1.0, 0.0
        %v789 = vsel %vm725, 1.0, 0.0
        %v790 = vsel %vm726, 1.0, 0.0
        %v791 = vsel %vm727, 1.0, 0.0
        %v792 = vsel %vm728, 1.0, 0.0
        %v793 = vsel %vm729, 1.0, 0.0
        %v794 = vsel %vm730, 1.0, 0.0
        %v795 = vsel %vm731, 1.0, 0.0
        %v796 = vsel %vm732, 1.0, 0.0
        %v797 = vsel %vm733, 1.0, 0.0
        %v798 = vsel %vm734, 1.0, 0.0
        %v799 = vsel %vm735, 1.0, 0.0
        %v800 = vpack.c.bf16 %v737, %v736
        %v801 = vpack.c.bf16 %v739, %v738
        %v802 = vpack.c.bf16 %v741, %v740
        %v803 = vpack.c.bf16 %v743, %v742
        %v804 = vpack.c.bf16 %v745, %v744
        %v805 = vpack.c.bf16 %v747, %v746
        %v806 = vpack.c.bf16 %v749, %v748
        %v807 = vpack.c.bf16 %v751, %v750
        %v808 = vpack.c.bf16 %v753, %v752
        %v809 = vpack.c.bf16 %v755, %v754
        %v810 = vpack.c.bf16 %v757, %v756
        %v811 = vpack.c.bf16 %v759, %v758
        %v812 = vpack.c.bf16 %v761, %v760
        %v813 = vpack.c.bf16 %v763, %v762
        %v814 = vpack.c.bf16 %v765, %v764
        %v815 = vpack.c.bf16 %v767, %v766
        %v816 = vpack.c.bf16 %v769, %v768
        %v817 = vpack.c.bf16 %v771, %v770
        %v818 = vpack.c.bf16 %v773, %v772
        %v819 = vpack.c.bf16 %v775, %v774
        %v820 = vpack.c.bf16 %v777, %v776
        %v821 = vpack.c.bf16 %v779, %v778
        %v822 = vpack.c.bf16 %v781, %v780
        %v823 = vpack.c.bf16 %v783, %v782
        %v824 = vpack.c.bf16 %v785, %v784
        %v825 = vpack.c.bf16 %v787, %v786
        %v826 = vpack.c.bf16 %v789, %v788
        %v827 = vpack.c.bf16 %v791, %v790
        %v828 = vpack.c.bf16 %v793, %v792
        %v829 = vpack.c.bf16 %v795, %v794
        %v830 = vpack.c.bf16 %v797, %v796
        %v831 = vpack.c.bf16 %v799, %v798
        %v840 = vunpack.c.l.b16 %v406
        %v841 = vunpack.c.l.b16 %v407
        %v842 = vunpack.c.l.b16 %v408
        %v843 = vunpack.c.l.b16 %v409
        %v844 = vunpack.c.l.b16 %v410
        %v845 = vunpack.c.l.b16 %v411
        %v846 = vunpack.c.l.b16 %v412
        %v847 = vunpack.c.l.b16 %v413
        %v848 = vpack.c.b16 %v841, %v840
        %v849 = vpack.c.b16 %v843, %v842
        %v850 = vpack.c.b16 %v845, %v844
        %v851 = vpack.c.b16 %v847, %v846
        %vm856 = vcmask 523264
        %v858 = vsel %vm856, %v800, 0
        %v861 = vsel %vm856, %v801, 0
        %v864 = vsel %vm856, %v802, 0
        %v867 = vsel %vm856, %v803, 0
        %v870 = vsel %vm856, %v804, 0
        %v873 = vsel %vm856, %v805, 0
        %v876 = vsel %vm856, %v806, 0
        %v879 = vsel %vm856, %v807, 0
        %v882 = vsel %vm856, %v808, 0
        %v885 = vsel %vm856, %v809, 0
        %v888 = vsel %vm856, %v810, 0
        %v891 = vsel %vm856, %v811, 0
        %v894 = vsel %vm856, %v812, 0
        %v897 = vsel %vm856, %v813, 0
        %v900 = vsel %vm856, %v814, 0
        %v903 = vsel %vm856, %v815, 0
        %v906 = vsel %vm856, %v816, 0
        %v909 = vsel %vm856, %v817, 0
        %v912 = vsel %vm856, %v818, 0
        %v915 = vsel %vm856, %v819, 0
        %v918 = vsel %vm856, %v820, 0
        %v921 = vsel %vm856, %v821, 0
        %v924 = vsel %vm856, %v822, 0
        %v927 = vsel %vm856, %v823, 0
        %v930 = vsel %vm856, %v824, 0
        %v933 = vsel %vm856, %v825, 0
        %v936 = vsel %vm856, %v826, 0
        %v939 = vsel %vm856, %v827, 0
        %v942 = vsel %vm856, %v828, 0
        %v945 = vsel %vm856, %v829, 0
        %v948 = vsel %vm856, %v830, 0
        %v951 = vsel %vm856, %v831, 0
        %953 = vmatpush.bf16.msra.mxu0 0
        %954 = vmatpush.bf16.msra.mxu0 0
        %955 = vmatpush.bf16.msra.mxu0 0
        %956 = vmatpush.bf16.msra.mxu0 0
        %957 = vmatpush.bf16.msra.mxu0 %v851
        %958 = vmatpush.bf16.msra.mxu0 %v850
        %959 = vmatpush.bf16.msra.mxu0 %v849
        %960 = vmatpush.bf16.msra.mxu0 %v848
        %961 = vmatmul.bf16.gmra.mxu0 %v858
        %v962 = vpop.f32.mrf.mxu0
        %v963 = vadd.f32 0.0, %v962
        %v964 = vpop.f32.mrf.mxu0
        %v965 = vadd.f32 0.0, %v964
        %966 = vmatmul.bf16.gmra.mxu0 %v861
        %v967 = vpop.f32.mrf.mxu0
        %v968 = vadd.f32 0.0, %v967
        %v969 = vpop.f32.mrf.mxu0
        %v970 = vadd.f32 0.0, %v969
        %971 = vmatmul.bf16.gmra.mxu0 %v864
        %v972 = vpop.f32.mrf.mxu0
        %v973 = vadd.f32 0.0, %v972
        %v974 = vpop.f32.mrf.mxu0
        %v975 = vadd.f32 0.0, %v974
        %976 = vmatmul.bf16.gmra.mxu0 %v867
        %v977 = vpop.f32.mrf.mxu0
        %v978 = vadd.f32 0.0, %v977
        %v979 = vpop.f32.mrf.mxu0
        %v980 = vadd.f32 0.0, %v979
        %981 = vmatmul.bf16.gmra.mxu0 %v870
        %v982 = vpop.f32.mrf.mxu0
        %v983 = vadd.f32 0.0, %v982
        %v984 = vpop.f32.mrf.mxu0
        %v985 = vadd.f32 0.0, %v984
        %986 = vmatmul.bf16.gmra.mxu0 %v873
        %v987 = vpop.f32.mrf.mxu0
        %v988 = vadd.f32 0.0, %v987
        %v989 = vpop.f32.mrf.mxu0
        %v990 = vadd.f32 0.0, %v989
        %991 = vmatmul.bf16.gmra.mxu0 %v876
        %v992 = vpop.f32.mrf.mxu0
        %v993 = vadd.f32 0.0, %v992
        %v994 = vpop.f32.mrf.mxu0
        %v995 = vadd.f32 0.0, %v994
        %996 = vmatmul.bf16.gmra.mxu0 %v879
        %v997 = vpop.f32.mrf.mxu0
        %v998 = vadd.f32 0.0, %v997
        %v999 = vpop.f32.mrf.mxu0
        %v1000 = vadd.f32 0.0, %v999
        %1001 = vmatmul.bf16.gmra.mxu0 %v882
        %v1002 = vpop.f32.mrf.mxu0
        %v1003 = vadd.f32 0.0, %v1002
        %v1004 = vpop.f32.mrf.mxu0
        %v1005 = vadd.f32 0.0, %v1004
        %1006 = vmatmul.bf16.gmra.mxu0 %v885
        %v1007 = vpop.f32.mrf.mxu0
        %v1008 = vadd.f32 0.0, %v1007
        %v1009 = vpop.f32.mrf.mxu0
        %v1010 = vadd.f32 0.0, %v1009
        %1011 = vmatmul.bf16.gmra.mxu0 %v888
        %v1012 = vpop.f32.mrf.mxu0
        %v1013 = vadd.f32 0.0, %v1012
        %v1014 = vpop.f32.mrf.mxu0
        %v1015 = vadd.f32 0.0, %v1014
        %1016 = vmatmul.bf16.gmra.mxu0 %v891
        %v1017 = vpop.f32.mrf.mxu0
        %v1018 = vadd.f32 0.0, %v1017
        %v1019 = vpop.f32.mrf.mxu0
        %v1020 = vadd.f32 0.0, %v1019
        %1021 = vmatmul.bf16.gmra.mxu0 %v894
        %v1022 = vpop.f32.mrf.mxu0
        %v1023 = vadd.f32 0.0, %v1022
        %v1024 = vpop.f32.mrf.mxu0
        %v1025 = vadd.f32 0.0, %v1024
        %1026 = vmatmul.bf16.gmra.mxu0 %v897
        %v1027 = vpop.f32.mrf.mxu0
        %v1028 = vadd.f32 0.0, %v1027
        %v1029 = vpop.f32.mrf.mxu0
        %v1030 = vadd.f32 0.0, %v1029
        %1031 = vmatmul.bf16.gmra.mxu0 %v900
        %v1032 = vpop.f32.mrf.mxu0
        %v1033 = vadd.f32 0.0, %v1032
        %v1034 = vpop.f32.mrf.mxu0
        %v1035 = vadd.f32 0.0, %v1034
        %1036 = vmatmul.bf16.gmra.mxu0 %v903
        %v1037 = vpop.f32.mrf.mxu0
        %v1038 = vadd.f32 0.0, %v1037
        %v1039 = vpop.f32.mrf.mxu0
        %v1040 = vadd.f32 0.0, %v1039
        %1041 = vmatmul.bf16.gmra.mxu0 %v906
        %v1042 = vpop.f32.mrf.mxu0
        %v1043 = vadd.f32 0.0, %v1042
        %v1044 = vpop.f32.mrf.mxu0
        %v1045 = vadd.f32 0.0, %v1044
        %1046 = vmatmul.bf16.gmra.mxu0 %v909
        %v1047 = vpop.f32.mrf.mxu0
        %v1048 = vadd.f32 0.0, %v1047
        %v1049 = vpop.f32.mrf.mxu0
        %v1050 = vadd.f32 0.0, %v1049
        %1051 = vmatmul.bf16.gmra.mxu0 %v912
        %v1052 = vpop.f32.mrf.mxu0
        %v1053 = vadd.f32 0.0, %v1052
        %v1054 = vpop.f32.mrf.mxu0
        %v1055 = vadd.f32 0.0, %v1054
        %1056 = vmatmul.bf16.gmra.mxu0 %v915
        %v1057 = vpop.f32.mrf.mxu0
        %v1058 = vadd.f32 0.0, %v1057
        %v1059 = vpop.f32.mrf.mxu0
        %v1060 = vadd.f32 0.0, %v1059
        %1061 = vmatmul.bf16.gmra.mxu0 %v918
        %v1062 = vpop.f32.mrf.mxu0
        %v1063 = vadd.f32 0.0, %v1062
        %v1064 = vpop.f32.mrf.mxu0
        %v1065 = vadd.f32 0.0, %v1064
        %1066 = vmatmul.bf16.gmra.mxu0 %v921
        %v1067 = vpop.f32.mrf.mxu0
        %v1068 = vadd.f32 0.0, %v1067
        %v1069 = vpop.f32.mrf.mxu0
        %v1070 = vadd.f32 0.0, %v1069
        %1071 = vmatmul.bf16.gmra.mxu0 %v924
        %v1072 = vpop.f32.mrf.mxu0
        %v1073 = vadd.f32 0.0, %v1072
        %v1074 = vpop.f32.mrf.mxu0
        %v1075 = vadd.f32 0.0, %v1074
        %1076 = vmatmul.bf16.gmra.mxu0 %v927
        %v1077 = vpop.f32.mrf.mxu0
        %v1078 = vadd.f32 0.0, %v1077
        %v1079 = vpop.f32.mrf.mxu0
        %v1080 = vadd.f32 0.0, %v1079
        %1081 = vmatmul.bf16.gmra.mxu0 %v930
        %v1082 = vpop.f32.mrf.mxu0
        %v1083 = vadd.f32 0.0, %v1082
        %v1084 = vpop.f32.mrf.mxu0
        %v1085 = vadd.f32 0.0, %v1084
        %1086 = vmatmul.bf16.gmra.mxu0 %v933
        %v1087 = vpop.f32.mrf.mxu0
        %v1088 = vadd.f32 0.0, %v1087
        %v1089 = vpop.f32.mrf.mxu0
        %v1090 = vadd.f32 0.0, %v1089
        %1091 = vmatmul.bf16.gmra.mxu0 %v936
        %v1092 = vpop.f32.mrf.mxu0
        %v1093 = vadd.f32 0.0, %v1092
        %v1094 = vpop.f32.mrf.mxu0
        %v1095 = vadd.f32 0.0, %v1094
        %1096 = vmatmul.bf16.gmra.mxu0 %v939
        %v1097 = vpop.f32.mrf.mxu0
        %v1098 = vadd.f32 0.0, %v1097
        %v1099 = vpop.f32.mrf.mxu0
        %v1100 = vadd.f32 0.0, %v1099
        %1101 = vmatmul.bf16.gmra.mxu0 %v942
        %v1102 = vpop.f32.mrf.mxu0
        %v1103 = vadd.f32 0.0, %v1102
        %v1104 = vpop.f32.mrf.mxu0
        %v1105 = vadd.f32 0.0, %v1104
        %1106 = vmatmul.bf16.gmra.mxu0 %v945
        %v1107 = vpop.f32.mrf.mxu0
        %v1108 = vadd.f32 0.0, %v1107
        %v1109 = vpop.f32.mrf.mxu0
        %v1110 = vadd.f32 0.0, %v1109
        %1111 = vmatmul.bf16.gmra.mxu0 %v948
        %v1112 = vpop.f32.mrf.mxu0
        %v1113 = vadd.f32 0.0, %v1112
        %v1114 = vpop.f32.mrf.mxu0
        %v1115 = vadd.f32 0.0, %v1114
        %1116 = vmatmul.bf16.gmra.mxu0 %v951
        %v1117 = vpop.f32.mrf.mxu0
        %v1118 = vadd.f32 0.0, %v1117
        %v1119 = vpop.f32.mrf.mxu0
        %v1120 = vadd.f32 0.0, %v1119
        %1121 = vdwg.mxu0
        %v1122 = vpack.c.bf16 %v963, %v963
        %v1123 = vpack.c.bf16 %v965, %v965
        %v1124 = vpack.c.bf16 %v968, %v968
        %v1125 = vpack.c.bf16 %v970, %v970
        %v1126 = vpack.c.bf16 %v973, %v973
        %v1127 = vpack.c.bf16 %v975, %v975
        %v1128 = vpack.c.bf16 %v978, %v978
        %v1129 = vpack.c.bf16 %v980, %v980
        %v1130 = vpack.c.bf16 %v983, %v983
        %v1131 = vpack.c.bf16 %v985, %v985
        %v1132 = vpack.c.bf16 %v988, %v988
        %v1133 = vpack.c.bf16 %v990, %v990
        %v1134 = vpack.c.bf16 %v993, %v993
        %v1135 = vpack.c.bf16 %v995, %v995
        %v1136 = vpack.c.bf16 %v998, %v998
        %v1137 = vpack.c.bf16 %v1000, %v1000
        %v1138 = vpack.c.bf16 %v1003, %v1003
        %v1139 = vpack.c.bf16 %v1005, %v1005
        %v1140 = vpack.c.bf16 %v1008, %v1008
        %v1141 = vpack.c.bf16 %v1010, %v1010
        %v1142 = vpack.c.bf16 %v1013, %v1013
        %v1143 = vpack.c.bf16 %v1015, %v1015
        %v1144 = vpack.c.bf16 %v1018, %v1018
        %v1145 = vpack.c.bf16 %v1020, %v1020
        %v1146 = vpack.c.bf16 %v1023, %v1023
        %v1147 = vpack.c.bf16 %v1025, %v1025
        %v1148 = vpack.c.bf16 %v1028, %v1028
        %v1149 = vpack.c.bf16 %v1030, %v1030
        %v1150 = vpack.c.bf16 %v1033, %v1033
        %v1151 = vpack.c.bf16 %v1035, %v1035
        %v1152 = vpack.c.bf16 %v1038, %v1038
        %v1153 = vpack.c.bf16 %v1040, %v1040
        %v1154 = vpack.c.bf16 %v1043, %v1043
        %v1155 = vpack.c.bf16 %v1045, %v1045
        %v1156 = vpack.c.bf16 %v1048, %v1048
        %v1157 = vpack.c.bf16 %v1050, %v1050
        %v1158 = vpack.c.bf16 %v1053, %v1053
        %v1159 = vpack.c.bf16 %v1055, %v1055
        %v1160 = vpack.c.bf16 %v1058, %v1058
        %v1161 = vpack.c.bf16 %v1060, %v1060
        %v1162 = vpack.c.bf16 %v1063, %v1063
        %v1163 = vpack.c.bf16 %v1065, %v1065
        %v1164 = vpack.c.bf16 %v1068, %v1068
        %v1165 = vpack.c.bf16 %v1070, %v1070
        %v1166 = vpack.c.bf16 %v1073, %v1073
        %v1167 = vpack.c.bf16 %v1075, %v1075
        %v1168 = vpack.c.bf16 %v1078, %v1078
        %v1169 = vpack.c.bf16 %v1080, %v1080
        %v1170 = vpack.c.bf16 %v1083, %v1083
        %v1171 = vpack.c.bf16 %v1085, %v1085
        %v1172 = vpack.c.bf16 %v1088, %v1088
        %v1173 = vpack.c.bf16 %v1090, %v1090
        %v1174 = vpack.c.bf16 %v1093, %v1093
        %v1175 = vpack.c.bf16 %v1095, %v1095
        %v1176 = vpack.c.bf16 %v1098, %v1098
        %v1177 = vpack.c.bf16 %v1100, %v1100
        %v1178 = vpack.c.bf16 %v1103, %v1103
        %v1179 = vpack.c.bf16 %v1105, %v1105
        %v1180 = vpack.c.bf16 %v1108, %v1108
        %v1181 = vpack.c.bf16 %v1110, %v1110
        %v1182 = vpack.c.bf16 %v1113, %v1113
        %v1183 = vpack.c.bf16 %v1115, %v1115
        %v1184 = vpack.c.bf16 %v1118, %v1118
        %v1185 = vpack.c.bf16 %v1120, %v1120
        %v1186 = vld [vmem:[%s4] sm:$0xf]
        %v1187 = vld [vmem:[%s4 + $0x4] sm:$0xf]
        %v1188 = vld [vmem:[%s396] sm:$0xff]
        %v1189 = vld [vmem:[%s396 + $0x8] sm:$0xff]
        %v1190 = vld [vmem:[%s396 + $0x10] sm:$0xff]
        %v1191 = vld [vmem:[%s396 + $0x18] sm:$0xff]
        %v1192 = vld [vmem:[%s396 + $0x20] sm:$0xff]
        %v1193 = vld [vmem:[%s396 + $0x28] sm:$0xff]
        %v1194 = vld [vmem:[%s396 + $0x30] sm:$0xff]
        %v1195 = vld [vmem:[%s396 + $0x38] sm:$0xff]
        %v1196 = vld [vmem:[%s396 + $0x40] sm:$0xff]
        %v1197 = vld [vmem:[%s396 + $0x48] sm:$0xff]
        %v1198 = vld [vmem:[%s396 + $0x50] sm:$0xff]
        %v1199 = vld [vmem:[%s396 + $0x58] sm:$0xff]
        %v1200 = vld [vmem:[%s396 + $0x60] sm:$0xff]
        %v1201 = vld [vmem:[%s396 + $0x68] sm:$0xff]
        %v1202 = vld [vmem:[%s396 + $0x70] sm:$0xff]
        %v1203 = vld [vmem:[%s396 + $0x78] sm:$0xff]
        %v1204 = vld [vmem:[%s396 + $0x80] sm:$0xff]
        %v1205 = vld [vmem:[%s396 + $0x88] sm:$0xff]
        %v1206 = vld [vmem:[%s396 + $0x90] sm:$0xff]
        %v1207 = vld [vmem:[%s396 + $0x98] sm:$0xff]
        %v1208 = vld [vmem:[%s396 + $0xa0] sm:$0xff]
        %v1209 = vld [vmem:[%s396 + $0xa8] sm:$0xff]
        %v1210 = vld [vmem:[%s396 + $0xb0] sm:$0xff]
        %v1211 = vld [vmem:[%s396 + $0xb8] sm:$0xff]
        %v1212 = vld [vmem:[%s396 + $0xc0] sm:$0xff]
        %v1213 = vld [vmem:[%s396 + $0xc8] sm:$0xff]
        %v1214 = vld [vmem:[%s396 + $0xd0] sm:$0xff]
        %v1215 = vld [vmem:[%s396 + $0xd8] sm:$0xff]
        %v1216 = vld [vmem:[%s396 + $0xe0] sm:$0xff]
        %v1217 = vld [vmem:[%s396 + $0xe8] sm:$0xff]
        %v1218 = vld [vmem:[%s396 + $0xf0] sm:$0xff]
        %v1219 = vld [vmem:[%s396 + $0xf8] sm:$0xff]
        %v1220 = vld [vmem:[%s396 + $0x100] sm:$0xff]
        %v1221 = vld [vmem:[%s396 + $0x108] sm:$0xff]
        %v1222 = vld [vmem:[%s396 + $0x110] sm:$0xff]
        %v1223 = vld [vmem:[%s396 + $0x118] sm:$0xff]
        %v1224 = vld [vmem:[%s396 + $0x120] sm:$0xff]
        %v1225 = vld [vmem:[%s396 + $0x128] sm:$0xff]
        %v1226 = vld [vmem:[%s396 + $0x130] sm:$0xff]
        %v1227 = vld [vmem:[%s396 + $0x138] sm:$0xff]
        %v1228 = vld [vmem:[%s396 + $0x140] sm:$0xff]
        %v1229 = vld [vmem:[%s396 + $0x148] sm:$0xff]
        %v1230 = vld [vmem:[%s396 + $0x150] sm:$0xff]
        %v1231 = vld [vmem:[%s396 + $0x158] sm:$0xff]
        %v1232 = vld [vmem:[%s396 + $0x160] sm:$0xff]
        %v1233 = vld [vmem:[%s396 + $0x168] sm:$0xff]
        %v1234 = vld [vmem:[%s396 + $0x170] sm:$0xff]
        %v1235 = vld [vmem:[%s396 + $0x178] sm:$0xff]
        %v1236 = vld [vmem:[%s396 + $0x180] sm:$0xff]
        %v1237 = vld [vmem:[%s396 + $0x188] sm:$0xff]
        %v1238 = vld [vmem:[%s396 + $0x190] sm:$0xff]
        %v1239 = vld [vmem:[%s396 + $0x198] sm:$0xff]
        %v1240 = vld [vmem:[%s396 + $0x1a0] sm:$0xff]
        %v1241 = vld [vmem:[%s396 + $0x1a8] sm:$0xff]
        %v1242 = vld [vmem:[%s396 + $0x1b0] sm:$0xff]
        %v1243 = vld [vmem:[%s396 + $0x1b8] sm:$0xff]
        %v1244 = vld [vmem:[%s396 + $0x1c0] sm:$0xff]
        %v1245 = vld [vmem:[%s396 + $0x1c8] sm:$0xff]
        %v1246 = vld [vmem:[%s396 + $0x1d0] sm:$0xff]
        %v1247 = vld [vmem:[%s396 + $0x1d8] sm:$0xff]
        %v1248 = vld [vmem:[%s396 + $0x1e0] sm:$0xff]
        %v1249 = vld [vmem:[%s396 + $0x1e8] sm:$0xff]
        %v1250 = vld [vmem:[%s396 + $0x1f0] sm:$0xff]
        %v1251 = vld [vmem:[%s396 + $0x1f8] sm:$0xff]
        %1252 = vset.pattern.permute.xlu0 0
        %1253 = vperm.xlu0 %1252, %v1188
        %v1254 = vpop.permute.xlu0 %1253
        %1255 = vset.pattern.permute.xlu0 0
        %1256 = vperm.xlu0 %1255, %v1189
        %v1257 = vpop.permute.xlu0 %1256
        %1258 = vset.pattern.permute.xlu0 0
        %1259 = vperm.xlu0 %1258, %v1190
        %v1260 = vpop.permute.xlu0 %1259
        %1261 = vset.pattern.permute.xlu0 0
        %1262 = vperm.xlu0 %1261, %v1191
        %v1263 = vpop.permute.xlu0 %1262
        %1264 = vset.pattern.permute.xlu0 0
        %1265 = vperm.xlu0 %1264, %v1192
        %v1266 = vpop.permute.xlu0 %1265
        %1267 = vset.pattern.permute.xlu0 0
        %1268 = vperm.xlu0 %1267, %v1193
        %v1269 = vpop.permute.xlu0 %1268
        %1270 = vset.pattern.permute.xlu0 0
        %1271 = vperm.xlu0 %1270, %v1194
        %v1272 = vpop.permute.xlu0 %1271
        %1273 = vset.pattern.permute.xlu0 0
        %1274 = vperm.xlu0 %1273, %v1195
        %v1275 = vpop.permute.xlu0 %1274
        %1276 = vset.pattern.permute.xlu0 0
        %1277 = vperm.xlu0 %1276, %v1196
        %v1278 = vpop.permute.xlu0 %1277
        %1279 = vset.pattern.permute.xlu0 0
        %1280 = vperm.xlu0 %1279, %v1197
        %v1281 = vpop.permute.xlu0 %1280
        %1282 = vset.pattern.permute.xlu0 0
        %1283 = vperm.xlu0 %1282, %v1198
        %v1284 = vpop.permute.xlu0 %1283
        %1285 = vset.pattern.permute.xlu0 0
        %1286 = vperm.xlu0 %1285, %v1199
        %v1287 = vpop.permute.xlu0 %1286
        %1288 = vset.pattern.permute.xlu0 0
        %1289 = vperm.xlu0 %1288, %v1200
        %v1290 = vpop.permute.xlu0 %1289
        %1291 = vset.pattern.permute.xlu0 0
        %1292 = vperm.xlu0 %1291, %v1201
        %v1293 = vpop.permute.xlu0 %1292
        %1294 = vset.pattern.permute.xlu0 0
        %1295 = vperm.xlu0 %1294, %v1202
        %v1296 = vpop.permute.xlu0 %1295
        %1297 = vset.pattern.permute.xlu0 0
        %1298 = vperm.xlu0 %1297, %v1203
        %v1299 = vpop.permute.xlu0 %1298
        %1300 = vset.pattern.permute.xlu0 0
        %1301 = vperm.xlu0 %1300, %v1204
        %v1302 = vpop.permute.xlu0 %1301
        %1303 = vset.pattern.permute.xlu0 0
        %1304 = vperm.xlu0 %1303, %v1205
        %v1305 = vpop.permute.xlu0 %1304
        %1306 = vset.pattern.permute.xlu0 0
        %1307 = vperm.xlu0 %1306, %v1206
        %v1308 = vpop.permute.xlu0 %1307
        %1309 = vset.pattern.permute.xlu0 0
        %1310 = vperm.xlu0 %1309, %v1207
        %v1311 = vpop.permute.xlu0 %1310
        %1312 = vset.pattern.permute.xlu0 0
        %1313 = vperm.xlu0 %1312, %v1208
        %v1314 = vpop.permute.xlu0 %1313
        %1315 = vset.pattern.permute.xlu0 0
        %1316 = vperm.xlu0 %1315, %v1209
        %v1317 = vpop.permute.xlu0 %1316
        %1318 = vset.pattern.permute.xlu0 0
        %1319 = vperm.xlu0 %1318, %v1210
        %v1320 = vpop.permute.xlu0 %1319
        %1321 = vset.pattern.permute.xlu0 0
        %1322 = vperm.xlu0 %1321, %v1211
        %v1323 = vpop.permute.xlu0 %1322
        %1324 = vset.pattern.permute.xlu0 0
        %1325 = vperm.xlu0 %1324, %v1212
        %v1326 = vpop.permute.xlu0 %1325
        %1327 = vset.pattern.permute.xlu0 0
        %1328 = vperm.xlu0 %1327, %v1213
        %v1329 = vpop.permute.xlu0 %1328
        %1330 = vset.pattern.permute.xlu0 0
        %1331 = vperm.xlu0 %1330, %v1214
        %v1332 = vpop.permute.xlu0 %1331
        %1333 = vset.pattern.permute.xlu0 0
        %1334 = vperm.xlu0 %1333, %v1215
        %v1335 = vpop.permute.xlu0 %1334
        %1336 = vset.pattern.permute.xlu0 0
        %1337 = vperm.xlu0 %1336, %v1216
        %v1338 = vpop.permute.xlu0 %1337
        %1339 = vset.pattern.permute.xlu0 0
        %1340 = vperm.xlu0 %1339, %v1217
        %v1341 = vpop.permute.xlu0 %1340
        %1342 = vset.pattern.permute.xlu0 0
        %1343 = vperm.xlu0 %1342, %v1218
        %v1344 = vpop.permute.xlu0 %1343
        %1345 = vset.pattern.permute.xlu0 0
        %1346 = vperm.xlu0 %1345, %v1219
        %v1347 = vpop.permute.xlu0 %1346
        %1348 = vset.pattern.permute.xlu0 0
        %1349 = vperm.xlu0 %1348, %v1220
        %v1350 = vpop.permute.xlu0 %1349
        %1351 = vset.pattern.permute.xlu0 0
        %1352 = vperm.xlu0 %1351, %v1221
        %v1353 = vpop.permute.xlu0 %1352
        %1354 = vset.pattern.permute.xlu0 0
        %1355 = vperm.xlu0 %1354, %v1222
        %v1356 = vpop.permute.xlu0 %1355
        %1357 = vset.pattern.permute.xlu0 0
        %1358 = vperm.xlu0 %1357, %v1223
        %v1359 = vpop.permute.xlu0 %1358
        %1360 = vset.pattern.permute.xlu0 0
        %1361 = vperm.xlu0 %1360, %v1224
        %v1362 = vpop.permute.xlu0 %1361
        %1363 = vset.pattern.permute.xlu0 0
        %1364 = vperm.xlu0 %1363, %v1225
        %v1365 = vpop.permute.xlu0 %1364
        %1366 = vset.pattern.permute.xlu0 0
        %1367 = vperm.xlu0 %1366, %v1226
        %v1368 = vpop.permute.xlu0 %1367
        %1369 = vset.pattern.permute.xlu0 0
        %1370 = vperm.xlu0 %1369, %v1227
        %v1371 = vpop.permute.xlu0 %1370
        %1372 = vset.pattern.permute.xlu0 0
        %1373 = vperm.xlu0 %1372, %v1228
        %v1374 = vpop.permute.xlu0 %1373
        %1375 = vset.pattern.permute.xlu0 0
        %1376 = vperm.xlu0 %1375, %v1229
        %v1377 = vpop.permute.xlu0 %1376
        %1378 = vset.pattern.permute.xlu0 0
        %1379 = vperm.xlu0 %1378, %v1230
        %v1380 = vpop.permute.xlu0 %1379
        %1381 = vset.pattern.permute.xlu0 0
        %1382 = vperm.xlu0 %1381, %v1231
        %v1383 = vpop.permute.xlu0 %1382
        %1384 = vset.pattern.permute.xlu0 0
        %1385 = vperm.xlu0 %1384, %v1232
        %v1386 = vpop.permute.xlu0 %1385
        %1387 = vset.pattern.permute.xlu0 0
        %1388 = vperm.xlu0 %1387, %v1233
        %v1389 = vpop.permute.xlu0 %1388
        %1390 = vset.pattern.permute.xlu0 0
        %1391 = vperm.xlu0 %1390, %v1234
        %v1392 = vpop.permute.xlu0 %1391
        %1393 = vset.pattern.permute.xlu0 0
        %1394 = vperm.xlu0 %1393, %v1235
        %v1395 = vpop.permute.xlu0 %1394
        %1396 = vset.pattern.permute.xlu0 0
        %1397 = vperm.xlu0 %1396, %v1236
        %v1398 = vpop.permute.xlu0 %1397
        %1399 = vset.pattern.permute.xlu0 0
        %1400 = vperm.xlu0 %1399, %v1237
        %v1401 = vpop.permute.xlu0 %1400
        %1402 = vset.pattern.permute.xlu0 0
        %1403 = vperm.xlu0 %1402, %v1238
        %v1404 = vpop.permute.xlu0 %1403
        %1405 = vset.pattern.permute.xlu0 0
        %1406 = vperm.xlu0 %1405, %v1239
        %v1407 = vpop.permute.xlu0 %1406
        %1408 = vset.pattern.permute.xlu0 0
        %1409 = vperm.xlu0 %1408, %v1240
        %v1410 = vpop.permute.xlu0 %1409
        %1411 = vset.pattern.permute.xlu0 0
        %1412 = vperm.xlu0 %1411, %v1241
        %v1413 = vpop.permute.xlu0 %1412
        %1414 = vset.pattern.permute.xlu0 0
        %1415 = vperm.xlu0 %1414, %v1242
        %v1416 = vpop.permute.xlu0 %1415
        %1417 = vset.pattern.permute.xlu0 0
        %1418 = vperm.xlu0 %1417, %v1243
        %v1419 = vpop.permute.xlu0 %1418
        %1420 = vset.pattern.permute.xlu0 0
        %1421 = vperm.xlu0 %1420, %v1244
        %v1422 = vpop.permute.xlu0 %1421
        %1423 = vset.pattern.permute.xlu0 0
        %1424 = vperm.xlu0 %1423, %v1245
        %v1425 = vpop.permute.xlu0 %1424
        %1426 = vset.pattern.permute.xlu0 0
        %1427 = vperm.xlu0 %1426, %v1246
        %v1428 = vpop.permute.xlu0 %1427
        %1429 = vset.pattern.permute.xlu0 0
        %1430 = vperm.xlu0 %1429, %v1247
        %v1431 = vpop.permute.xlu0 %1430
        %1432 = vset.pattern.permute.xlu0 0
        %1433 = vperm.xlu0 %1432, %v1248
        %v1434 = vpop.permute.xlu0 %1433
        %1435 = vset.pattern.permute.xlu0 0
        %1436 = vperm.xlu0 %1435, %v1249
        %v1437 = vpop.permute.xlu0 %1436
        %1438 = vset.pattern.permute.xlu0 0
        %1439 = vperm.xlu0 %1438, %v1250
        %v1440 = vpop.permute.xlu0 %1439
        %1441 = vset.pattern.permute.xlu0 0
        %1442 = vperm.xlu0 %1441, %v1251
        %v1443 = vpop.permute.xlu0 %1442
        %vm1444 = vcmp.eq.s32.totalorder %v479, %v1254
        %vm1445 = vcmp.eq.s32.totalorder %v479, %v1257
        %vm1446 = vcmp.eq.s32.totalorder %v479, %v1260
        %vm1447 = vcmp.eq.s32.totalorder %v479, %v1263
        %vm1448 = vcmp.eq.s32.totalorder %v479, %v1266
        %vm1449 = vcmp.eq.s32.totalorder %v479, %v1269
        %vm1450 = vcmp.eq.s32.totalorder %v479, %v1272
        %vm1451 = vcmp.eq.s32.totalorder %v479, %v1275
        %vm1452 = vcmp.eq.s32.totalorder %v479, %v1278
        %vm1453 = vcmp.eq.s32.totalorder %v479, %v1281
        %vm1454 = vcmp.eq.s32.totalorder %v479, %v1284
        %vm1455 = vcmp.eq.s32.totalorder %v479, %v1287
        %vm1456 = vcmp.eq.s32.totalorder %v479, %v1290
        %vm1457 = vcmp.eq.s32.totalorder %v479, %v1293
        %vm1458 = vcmp.eq.s32.totalorder %v479, %v1296
        %vm1459 = vcmp.eq.s32.totalorder %v479, %v1299
        %vm1460 = vcmp.eq.s32.totalorder %v479, %v1302
        %vm1461 = vcmp.eq.s32.totalorder %v479, %v1305
        %vm1462 = vcmp.eq.s32.totalorder %v479, %v1308
        %vm1463 = vcmp.eq.s32.totalorder %v479, %v1311
        %vm1464 = vcmp.eq.s32.totalorder %v479, %v1314
        %vm1465 = vcmp.eq.s32.totalorder %v479, %v1317
        %vm1466 = vcmp.eq.s32.totalorder %v479, %v1320
        %vm1467 = vcmp.eq.s32.totalorder %v479, %v1323
        %vm1468 = vcmp.eq.s32.totalorder %v479, %v1326
        %vm1469 = vcmp.eq.s32.totalorder %v479, %v1329
        %vm1470 = vcmp.eq.s32.totalorder %v479, %v1332
        %vm1471 = vcmp.eq.s32.totalorder %v479, %v1335
        %vm1472 = vcmp.eq.s32.totalorder %v479, %v1338
        %vm1473 = vcmp.eq.s32.totalorder %v479, %v1341
        %vm1474 = vcmp.eq.s32.totalorder %v479, %v1344
        %vm1475 = vcmp.eq.s32.totalorder %v479, %v1347
        %vm1476 = vcmp.eq.s32.totalorder %v479, %v1350
        %vm1477 = vcmp.eq.s32.totalorder %v479, %v1353
        %vm1478 = vcmp.eq.s32.totalorder %v479, %v1356
        %vm1479 = vcmp.eq.s32.totalorder %v479, %v1359
        %vm1480 = vcmp.eq.s32.totalorder %v479, %v1362
        %vm1481 = vcmp.eq.s32.totalorder %v479, %v1365
        %vm1482 = vcmp.eq.s32.totalorder %v479, %v1368
        %vm1483 = vcmp.eq.s32.totalorder %v479, %v1371
        %vm1484 = vcmp.eq.s32.totalorder %v479, %v1374
        %vm1485 = vcmp.eq.s32.totalorder %v479, %v1377
        %vm1486 = vcmp.eq.s32.totalorder %v479, %v1380
        %vm1487 = vcmp.eq.s32.totalorder %v479, %v1383
        %vm1488 = vcmp.eq.s32.totalorder %v479, %v1386
        %vm1489 = vcmp.eq.s32.totalorder %v479, %v1389
        %vm1490 = vcmp.eq.s32.totalorder %v479, %v1392
        %vm1491 = vcmp.eq.s32.totalorder %v479, %v1395
        %vm1492 = vcmp.eq.s32.totalorder %v479, %v1398
        %vm1493 = vcmp.eq.s32.totalorder %v479, %v1401
        %vm1494 = vcmp.eq.s32.totalorder %v479, %v1404
        %vm1495 = vcmp.eq.s32.totalorder %v479, %v1407
        %vm1496 = vcmp.eq.s32.totalorder %v479, %v1410
        %vm1497 = vcmp.eq.s32.totalorder %v479, %v1413
        %vm1498 = vcmp.eq.s32.totalorder %v479, %v1416
        %vm1499 = vcmp.eq.s32.totalorder %v479, %v1419
        %vm1500 = vcmp.eq.s32.totalorder %v479, %v1422
        %vm1501 = vcmp.eq.s32.totalorder %v479, %v1425
        %vm1502 = vcmp.eq.s32.totalorder %v479, %v1428
        %vm1503 = vcmp.eq.s32.totalorder %v479, %v1431
        %vm1504 = vcmp.eq.s32.totalorder %v479, %v1434
        %vm1505 = vcmp.eq.s32.totalorder %v479, %v1437
        %vm1506 = vcmp.eq.s32.totalorder %v479, %v1440
        %vm1507 = vcmp.eq.s32.totalorder %v479, %v1443
        %v1508 = vsel %vm1444, 1.0, 0.0
        %v1509 = vsel %vm1445, 1.0, 0.0
        %v1510 = vsel %vm1446, 1.0, 0.0
        %v1511 = vsel %vm1447, 1.0, 0.0
        %v1512 = vsel %vm1448, 1.0, 0.0
        %v1513 = vsel %vm1449, 1.0, 0.0
        %v1514 = vsel %vm1450, 1.0, 0.0
        %v1515 = vsel %vm1451, 1.0, 0.0
        %v1516 = vsel %vm1452, 1.0, 0.0
        %v1517 = vsel %vm1453, 1.0, 0.0
        %v1518 = vsel %vm1454, 1.0, 0.0
        %v1519 = vsel %vm1455, 1.0, 0.0
        %v1520 = vsel %vm1456, 1.0, 0.0
        %v1521 = vsel %vm1457, 1.0, 0.0
        %v1522 = vsel %vm1458, 1.0, 0.0
        %v1523 = vsel %vm1459, 1.0, 0.0
        %v1524 = vsel %vm1460, 1.0, 0.0
        %v1525 = vsel %vm1461, 1.0, 0.0
        %v1526 = vsel %vm1462, 1.0, 0.0
        %v1527 = vsel %vm1463, 1.0, 0.0
        %v1528 = vsel %vm1464, 1.0, 0.0
        %v1529 = vsel %vm1465, 1.0, 0.0
        %v1530 = vsel %vm1466, 1.0, 0.0
        %v1531 = vsel %vm1467, 1.0, 0.0
        %v1532 = vsel %vm1468, 1.0, 0.0
        %v1533 = vsel %vm1469, 1.0, 0.0
        %v1534 = vsel %vm1470, 1.0, 0.0
        %v1535 = vsel %vm1471, 1.0, 0.0
        %v1536 = vsel %vm1472, 1.0, 0.0
        %v1537 = vsel %vm1473, 1.0, 0.0
        %v1538 = vsel %vm1474, 1.0, 0.0
        %v1539 = vsel %vm1475, 1.0, 0.0
        %v1540 = vsel %vm1476, 1.0, 0.0
        %v1541 = vsel %vm1477, 1.0, 0.0
        %v1542 = vsel %vm1478, 1.0, 0.0
        %v1543 = vsel %vm1479, 1.0, 0.0
        %v1544 = vsel %vm1480, 1.0, 0.0
        %v1545 = vsel %vm1481, 1.0, 0.0
        %v1546 = vsel %vm1482, 1.0, 0.0
        %v1547 = vsel %vm1483, 1.0, 0.0
        %v1548 = vsel %vm1484, 1.0, 0.0
        %v1549 = vsel %vm1485, 1.0, 0.0
        %v1550 = vsel %vm1486, 1.0, 0.0
        %v1551 = vsel %vm1487, 1.0, 0.0
        %v1552 = vsel %vm1488, 1.0, 0.0
        %v1553 = vsel %vm1489, 1.0, 0.0
        %v1554 = vsel %vm1490, 1.0, 0.0
        %v1555 = vsel %vm1491, 1.0, 0.0
        %v1556 = vsel %vm1492, 1.0, 0.0
        %v1557 = vsel %vm1493, 1.0, 0.0
        %v1558 = vsel %vm1494, 1.0, 0.0
        %v1559 = vsel %vm1495, 1.0, 0.0
        %v1560 = vsel %vm1496, 1.0, 0.0
        %v1561 = vsel %vm1497, 1.0, 0.0
        %v1562 = vsel %vm1498, 1.0, 0.0
        %v1563 = vsel %vm1499, 1.0, 0.0
        %v1564 = vsel %vm1500, 1.0, 0.0
        %v1565 = vsel %vm1501, 1.0, 0.0
        %v1566 = vsel %vm1502, 1.0, 0.0
        %v1567 = vsel %vm1503, 1.0, 0.0
        %v1568 = vsel %vm1504, 1.0, 0.0
        %v1569 = vsel %vm1505, 1.0, 0.0
        %v1570 = vsel %vm1506, 1.0, 0.0
        %v1571 = vsel %vm1507, 1.0, 0.0
        %v1572 = vpack.c.bf16 %v1509, %v1508
        %v1573 = vpack.c.bf16 %v1511, %v1510
        %v1574 = vpack.c.bf16 %v1513, %v1512
        %v1575 = vpack.c.bf16 %v1515, %v1514
        %v1576 = vpack.c.bf16 %v1517, %v1516
        %v1577 = vpack.c.bf16 %v1519, %v1518
        %v1578 = vpack.c.bf16 %v1521, %v1520
        %v1579 = vpack.c.bf16 %v1523, %v1522
        %v1580 = vpack.c.bf16 %v1525, %v1524
        %v1581 = vpack.c.bf16 %v1527, %v1526
        %v1582 = vpack.c.bf16 %v1529, %v1528
        %v1583 = vpack.c.bf16 %v1531, %v1530
        %v1584 = vpack.c.bf16 %v1533, %v1532
        %v1585 = vpack.c.bf16 %v1535, %v1534
        %v1586 = vpack.c.bf16 %v1537, %v1536
        %v1587 = vpack.c.bf16 %v1539, %v1538
        %v1588 = vpack.c.bf16 %v1541, %v1540
        %v1589 = vpack.c.bf16 %v1543, %v1542
        %v1590 = vpack.c.bf16 %v1545, %v1544
        %v1591 = vpack.c.bf16 %v1547, %v1546
        %v1592 = vpack.c.bf16 %v1549, %v1548
        %v1593 = vpack.c.bf16 %v1551, %v1550
        %v1594 = vpack.c.bf16 %v1553, %v1552
        %v1595 = vpack.c.bf16 %v1555, %v1554
        %v1596 = vpack.c.bf16 %v1557, %v1556
        %v1597 = vpack.c.bf16 %v1559, %v1558
        %v1598 = vpack.c.bf16 %v1561, %v1560
        %v1599 = vpack.c.bf16 %v1563, %v1562
        %v1600 = vpack.c.bf16 %v1565, %v1564
        %v1601 = vpack.c.bf16 %v1567, %v1566
        %v1602 = vpack.c.bf16 %v1569, %v1568
        %v1603 = vpack.c.bf16 %v1571, %v1570
        %v1606 = vunpack.c.l.b16 %v1186
        %v1607 = vunpack.c.l.b16 %v1187
        %v1608 = vpack.c.b16 %v1607, %v1606
        %vm1610 = vcmask 130048
        %v1612 = vsel %vm1610, %v1572, 0
        %v1615 = vsel %vm1610, %v1573, 0
        %v1618 = vsel %vm1610, %v1574, 0
        %v1621 = vsel %vm1610, %v1575, 0
        %v1624 = vsel %vm1610, %v1576, 0
        %v1627 = vsel %vm1610, %v1577, 0
        %v1630 = vsel %vm1610, %v1578, 0
        %v1633 = vsel %vm1610, %v1579, 0
        %v1636 = vsel %vm1610, %v1580, 0
        %v1639 = vsel %vm1610, %v1581, 0
        %v1642 = vsel %vm1610, %v1582, 0
        %v1645 = vsel %vm1610, %v1583, 0
        %v1648 = vsel %vm1610, %v1584, 0
        %v1651 = vsel %vm1610, %v1585, 0
        %v1654 = vsel %vm1610, %v1586, 0
        %v1657 = vsel %vm1610, %v1587, 0
        %v1660 = vsel %vm1610, %v1588, 0
        %v1663 = vsel %vm1610, %v1589, 0
        %v1666 = vsel %vm1610, %v1590, 0
        %v1669 = vsel %vm1610, %v1591, 0
        %v1672 = vsel %vm1610, %v1592, 0
        %v1675 = vsel %vm1610, %v1593, 0
        %v1678 = vsel %vm1610, %v1594, 0
        %v1681 = vsel %vm1610, %v1595, 0
        %v1684 = vsel %vm1610, %v1596, 0
        %v1687 = vsel %vm1610, %v1597, 0
        %v1690 = vsel %vm1610, %v1598, 0
        %v1693 = vsel %vm1610, %v1599, 0
        %v1696 = vsel %vm1610, %v1600, 0
        %v1699 = vsel %vm1610, %v1601, 0
        %v1702 = vsel %vm1610, %v1602, 0
        %v1705 = vsel %vm1610, %v1603, 0
        %1707 = vmatpush.bf16.msra.mxu0 0
        %1708 = vmatpush.bf16.msra.mxu0 0
        %1709 = vmatpush.bf16.msra.mxu0 0
        %1710 = vmatpush.bf16.msra.mxu0 0
        %1711 = vmatpush.bf16.msra.mxu0 0
        %1712 = vmatpush.bf16.msra.mxu0 0
        %1713 = vmatpush.bf16.msra.mxu0 0
        %1714 = vmatpush.bf16.msra.mxu0 %v1608
        %1715 = vmatmul.bf16.gmra.mxu0 %v1612
        %v1716 = vpop.f32.mrf.mxu0
        %v1717 = vadd.f32 0.0, %v1716
        %v1718 = vpop.f32.mrf.mxu0
        %v1719 = vadd.f32 0.0, %v1718
        %1720 = vmatmul.bf16.gmra.mxu0 %v1615
        %v1721 = vpop.f32.mrf.mxu0
        %v1722 = vadd.f32 0.0, %v1721
        %v1723 = vpop.f32.mrf.mxu0
        %v1724 = vadd.f32 0.0, %v1723
        %1725 = vmatmul.bf16.gmra.mxu0 %v1618
        %v1726 = vpop.f32.mrf.mxu0
        %v1727 = vadd.f32 0.0, %v1726
        %v1728 = vpop.f32.mrf.mxu0
        %v1729 = vadd.f32 0.0, %v1728
        %1730 = vmatmul.bf16.gmra.mxu0 %v1621
        %v1731 = vpop.f32.mrf.mxu0
        %v1732 = vadd.f32 0.0, %v1731
        %v1733 = vpop.f32.mrf.mxu0
        %v1734 = vadd.f32 0.0, %v1733
        %1735 = vmatmul.bf16.gmra.mxu0 %v1624
        %v1736 = vpop.f32.mrf.mxu0
        %v1737 = vadd.f32 0.0, %v1736
        %v1738 = vpop.f32.mrf.mxu0
        %v1739 = vadd.f32 0.0, %v1738
        %1740 = vmatmul.bf16.gmra.mxu0 %v1627
        %v1741 = vpop.f32.mrf.mxu0
        %v1742 = vadd.f32 0.0, %v1741
        %v1743 = vpop.f32.mrf.mxu0
        %v1744 = vadd.f32 0.0, %v1743
        %1745 = vmatmul.bf16.gmra.mxu0 %v1630
        %v1746 = vpop.f32.mrf.mxu0
        %v1747 = vadd.f32 0.0, %v1746
        %v1748 = vpop.f32.mrf.mxu0
        %v1749 = vadd.f32 0.0, %v1748
        %1750 = vmatmul.bf16.gmra.mxu0 %v1633
        %v1751 = vpop.f32.mrf.mxu0
        %v1752 = vadd.f32 0.0, %v1751
        %v1753 = vpop.f32.mrf.mxu0
        %v1754 = vadd.f32 0.0, %v1753
        %1755 = vmatmul.bf16.gmra.mxu0 %v1636
        %v1756 = vpop.f32.mrf.mxu0
        %v1757 = vadd.f32 0.0, %v1756
        %v1758 = vpop.f32.mrf.mxu0
        %v1759 = vadd.f32 0.0, %v1758
        %1760 = vmatmul.bf16.gmra.mxu0 %v1639
        %v1761 = vpop.f32.mrf.mxu0
        %v1762 = vadd.f32 0.0, %v1761
        %v1763 = vpop.f32.mrf.mxu0
        %v1764 = vadd.f32 0.0, %v1763
        %1765 = vmatmul.bf16.gmra.mxu0 %v1642
        %v1766 = vpop.f32.mrf.mxu0
        %v1767 = vadd.f32 0.0, %v1766
        %v1768 = vpop.f32.mrf.mxu0
        %v1769 = vadd.f32 0.0, %v1768
        %1770 = vmatmul.bf16.gmra.mxu0 %v1645
        %v1771 = vpop.f32.mrf.mxu0
        %v1772 = vadd.f32 0.0, %v1771
        %v1773 = vpop.f32.mrf.mxu0
        %v1774 = vadd.f32 0.0, %v1773
        %1775 = vmatmul.bf16.gmra.mxu0 %v1648
        %v1776 = vpop.f32.mrf.mxu0
        %v1777 = vadd.f32 0.0, %v1776
        %v1778 = vpop.f32.mrf.mxu0
        %v1779 = vadd.f32 0.0, %v1778
        %1780 = vmatmul.bf16.gmra.mxu0 %v1651
        %v1781 = vpop.f32.mrf.mxu0
        %v1782 = vadd.f32 0.0, %v1781
        %v1783 = vpop.f32.mrf.mxu0
        %v1784 = vadd.f32 0.0, %v1783
        %1785 = vmatmul.bf16.gmra.mxu0 %v1654
        %v1786 = vpop.f32.mrf.mxu0
        %v1787 = vadd.f32 0.0, %v1786
        %v1788 = vpop.f32.mrf.mxu0
        %v1789 = vadd.f32 0.0, %v1788
        %1790 = vmatmul.bf16.gmra.mxu0 %v1657
        %v1791 = vpop.f32.mrf.mxu0
        %v1792 = vadd.f32 0.0, %v1791
        %v1793 = vpop.f32.mrf.mxu0
        %v1794 = vadd.f32 0.0, %v1793
        %1795 = vmatmul.bf16.gmra.mxu0 %v1660
        %v1796 = vpop.f32.mrf.mxu0
        %v1797 = vadd.f32 0.0, %v1796
        %v1798 = vpop.f32.mrf.mxu0
        %v1799 = vadd.f32 0.0, %v1798
        %1800 = vmatmul.bf16.gmra.mxu0 %v1663
        %v1801 = vpop.f32.mrf.mxu0
        %v1802 = vadd.f32 0.0, %v1801
        %v1803 = vpop.f32.mrf.mxu0
        %v1804 = vadd.f32 0.0, %v1803
        %1805 = vmatmul.bf16.gmra.mxu0 %v1666
        %v1806 = vpop.f32.mrf.mxu0
        %v1807 = vadd.f32 0.0, %v1806
        %v1808 = vpop.f32.mrf.mxu0
        %v1809 = vadd.f32 0.0, %v1808
        %1810 = vmatmul.bf16.gmra.mxu0 %v1669
        %v1811 = vpop.f32.mrf.mxu0
        %v1812 = vadd.f32 0.0, %v1811
        %v1813 = vpop.f32.mrf.mxu0
        %v1814 = vadd.f32 0.0, %v1813
        %1815 = vmatmul.bf16.gmra.mxu0 %v1672
        %v1816 = vpop.f32.mrf.mxu0
        %v1817 = vadd.f32 0.0, %v1816
        %v1818 = vpop.f32.mrf.mxu0
        %v1819 = vadd.f32 0.0, %v1818
        %1820 = vmatmul.bf16.gmra.mxu0 %v1675
        %v1821 = vpop.f32.mrf.mxu0
        %v1822 = vadd.f32 0.0, %v1821
        %v1823 = vpop.f32.mrf.mxu0
        %v1824 = vadd.f32 0.0, %v1823
        %1825 = vmatmul.bf16.gmra.mxu0 %v1678
        %v1826 = vpop.f32.mrf.mxu0
        %v1827 = vadd.f32 0.0, %v1826
        %v1828 = vpop.f32.mrf.mxu0
        %v1829 = vadd.f32 0.0, %v1828
        %1830 = vmatmul.bf16.gmra.mxu0 %v1681
        %v1831 = vpop.f32.mrf.mxu0
        %v1832 = vadd.f32 0.0, %v1831
        %v1833 = vpop.f32.mrf.mxu0
        %v1834 = vadd.f32 0.0, %v1833
        %1835 = vmatmul.bf16.gmra.mxu0 %v1684
        %v1836 = vpop.f32.mrf.mxu0
        %v1837 = vadd.f32 0.0, %v1836
        %v1838 = vpop.f32.mrf.mxu0
        %v1839 = vadd.f32 0.0, %v1838
        %1840 = vmatmul.bf16.gmra.mxu0 %v1687
        %v1841 = vpop.f32.mrf.mxu0
        %v1842 = vadd.f32 0.0, %v1841
        %v1843 = vpop.f32.mrf.mxu0
        %v1844 = vadd.f32 0.0, %v1843
        %1845 = vmatmul.bf16.gmra.mxu0 %v1690
        %v1846 = vpop.f32.mrf.mxu0
        %v1847 = vadd.f32 0.0, %v1846
        %v1848 = vpop.f32.mrf.mxu0
        %v1849 = vadd.f32 0.0, %v1848
        %1850 = vmatmul.bf16.gmra.mxu0 %v1693
        %v1851 = vpop.f32.mrf.mxu0
        %v1852 = vadd.f32 0.0, %v1851
        %v1853 = vpop.f32.mrf.mxu0
        %v1854 = vadd.f32 0.0, %v1853
        %1855 = vmatmul.bf16.gmra.mxu0 %v1696
        %v1856 = vpop.f32.mrf.mxu0
        %v1857 = vadd.f32 0.0, %v1856
        %v1858 = vpop.f32.mrf.mxu0
        %v1859 = vadd.f32 0.0, %v1858
        %1860 = vmatmul.bf16.gmra.mxu0 %v1699
        %v1861 = vpop.f32.mrf.mxu0
        %v1862 = vadd.f32 0.0, %v1861
        %v1863 = vpop.f32.mrf.mxu0
        %v1864 = vadd.f32 0.0, %v1863
        %1865 = vmatmul.bf16.gmra.mxu0 %v1702
        %v1866 = vpop.f32.mrf.mxu0
        %v1867 = vadd.f32 0.0, %v1866
        %v1868 = vpop.f32.mrf.mxu0
        %v1869 = vadd.f32 0.0, %v1868
        %1870 = vmatmul.bf16.gmra.mxu0 %v1705
        %v1871 = vpop.f32.mrf.mxu0
        %v1872 = vadd.f32 0.0, %v1871
        %v1873 = vpop.f32.mrf.mxu0
        %v1874 = vadd.f32 0.0, %v1873
        %1875 = vdwg.mxu0
        %v1876 = vpack.c.bf16 %v1717, %v1717
        %v1877 = vpack.c.bf16 %v1719, %v1719
        %v1878 = vpack.c.bf16 %v1722, %v1722
        %v1879 = vpack.c.bf16 %v1724, %v1724
        %v1880 = vpack.c.bf16 %v1727, %v1727
        %v1881 = vpack.c.bf16 %v1729, %v1729
        %v1882 = vpack.c.bf16 %v1732, %v1732
        %v1883 = vpack.c.bf16 %v1734, %v1734
        %v1884 = vpack.c.bf16 %v1737, %v1737
        %v1885 = vpack.c.bf16 %v1739, %v1739
        %v1886 = vpack.c.bf16 %v1742, %v1742
        %v1887 = vpack.c.bf16 %v1744, %v1744
        %v1888 = vpack.c.bf16 %v1747, %v1747
        %v1889 = vpack.c.bf16 %v1749, %v1749
        %v1890 = vpack.c.bf16 %v1752, %v1752
        %v1891 = vpack.c.bf16 %v1754, %v1754
        %v1892 = vpack.c.bf16 %v1757, %v1757
        %v1893 = vpack.c.bf16 %v1759, %v1759
        %v1894 = vpack.c.bf16 %v1762, %v1762
        %v1895 = vpack.c.bf16 %v1764, %v1764
        %v1896 = vpack.c.bf16 %v1767, %v1767
        %v1897 = vpack.c.bf16 %v1769, %v1769
        %v1898 = vpack.c.bf16 %v1772, %v1772
        %v1899 = vpack.c.bf16 %v1774, %v1774
        %v1900 = vpack.c.bf16 %v1777, %v1777
        %v1901 = vpack.c.bf16 %v1779, %v1779
        %v1902 = vpack.c.bf16 %v1782, %v1782
        %v1903 = vpack.c.bf16 %v1784, %v1784
        %v1904 = vpack.c.bf16 %v1787, %v1787
        %v1905 = vpack.c.bf16 %v1789, %v1789
        %v1906 = vpack.c.bf16 %v1792, %v1792
        %v1907 = vpack.c.bf16 %v1794, %v1794
        %v1908 = vpack.c.bf16 %v1797, %v1797
        %v1909 = vpack.c.bf16 %v1799, %v1799
        %v1910 = vpack.c.bf16 %v1802, %v1802
        %v1911 = vpack.c.bf16 %v1804, %v1804
        %v1912 = vpack.c.bf16 %v1807, %v1807
        %v1913 = vpack.c.bf16 %v1809, %v1809
        %v1914 = vpack.c.bf16 %v1812, %v1812
        %v1915 = vpack.c.bf16 %v1814, %v1814
        %v1916 = vpack.c.bf16 %v1817, %v1817
        %v1917 = vpack.c.bf16 %v1819, %v1819
        %v1918 = vpack.c.bf16 %v1822, %v1822
        %v1919 = vpack.c.bf16 %v1824, %v1824
        %v1920 = vpack.c.bf16 %v1827, %v1827
        %v1921 = vpack.c.bf16 %v1829, %v1829
        %v1922 = vpack.c.bf16 %v1832, %v1832
        %v1923 = vpack.c.bf16 %v1834, %v1834
        %v1924 = vpack.c.bf16 %v1837, %v1837
        %v1925 = vpack.c.bf16 %v1839, %v1839
        %v1926 = vpack.c.bf16 %v1842, %v1842
        %v1927 = vpack.c.bf16 %v1844, %v1844
        %v1928 = vpack.c.bf16 %v1847, %v1847
        %v1929 = vpack.c.bf16 %v1849, %v1849
        %v1930 = vpack.c.bf16 %v1852, %v1852
        %v1931 = vpack.c.bf16 %v1854, %v1854
        %v1932 = vpack.c.bf16 %v1857, %v1857
        %v1933 = vpack.c.bf16 %v1859, %v1859
        %v1934 = vpack.c.bf16 %v1862, %v1862
        %v1935 = vpack.c.bf16 %v1864, %v1864
        %v1936 = vpack.c.bf16 %v1867, %v1867
        %v1937 = vpack.c.bf16 %v1869, %v1869
        %v1938 = vpack.c.bf16 %v1872, %v1872
        %v1939 = vpack.c.bf16 %v1874, %v1874
        %v1940 = vld [vmem:[%s5] sm:$0xf]
        %v1941 = vld [vmem:[%s5 + $0x4] sm:$0xf]
        %v1942 = vld [vmem:[%s5 + $0x8] sm:$0xf]
        %v1943 = vld [vmem:[%s5 + $0xc] sm:$0xf]
        %v1944 = vld [vmem:[%s5 + $0x10] sm:$0xf]
        %v1945 = vld [vmem:[%s5 + $0x14] sm:$0xf]
        %v1946 = vld [vmem:[%s5 + $0x18] sm:$0xf]
        %v1947 = vld [vmem:[%s5 + $0x1c] sm:$0xf]
        %v1948 = vld [vmem:[%s5 + $0x20] sm:$0xf]
        %v1949 = vld [vmem:[%s5 + $0x24] sm:$0xf]
        %v1950 = vld [vmem:[%s5 + $0x28] sm:$0xf]
        %v1951 = vld [vmem:[%s5 + $0x2c] sm:$0xf]
        %v1952 = vld [vmem:[%s5 + $0x30] sm:$0xf]
        %v1953 = vld [vmem:[%s5 + $0x34] sm:$0xf]
        %v1954 = vld [vmem:[%s5 + $0x38] sm:$0xf]
        %v1955 = vld [vmem:[%s5 + $0x3c] sm:$0xf]
        %v1956 = vld [vmem:[%s402] sm:$0xff]
        %v1957 = vld [vmem:[%s402 + $0x8] sm:$0xff]
        %v1958 = vld [vmem:[%s402 + $0x10] sm:$0xff]
        %v1959 = vld [vmem:[%s402 + $0x18] sm:$0xff]
        %v1960 = vld [vmem:[%s402 + $0x20] sm:$0xff]
        %v1961 = vld [vmem:[%s402 + $0x28] sm:$0xff]
        %v1962 = vld [vmem:[%s402 + $0x30] sm:$0xff]
        %v1963 = vld [vmem:[%s402 + $0x38] sm:$0xff]
        %v1964 = vld [vmem:[%s402 + $0x40] sm:$0xff]
        %v1965 = vld [vmem:[%s402 + $0x48] sm:$0xff]
        %v1966 = vld [vmem:[%s402 + $0x50] sm:$0xff]
        %v1967 = vld [vmem:[%s402 + $0x58] sm:$0xff]
        %v1968 = vld [vmem:[%s402 + $0x60] sm:$0xff]
        %v1969 = vld [vmem:[%s402 + $0x68] sm:$0xff]
        %v1970 = vld [vmem:[%s402 + $0x70] sm:$0xff]
        %v1971 = vld [vmem:[%s402 + $0x78] sm:$0xff]
        %v1972 = vld [vmem:[%s402 + $0x80] sm:$0xff]
        %v1973 = vld [vmem:[%s402 + $0x88] sm:$0xff]
        %v1974 = vld [vmem:[%s402 + $0x90] sm:$0xff]
        %v1975 = vld [vmem:[%s402 + $0x98] sm:$0xff]
        %v1976 = vld [vmem:[%s402 + $0xa0] sm:$0xff]
        %v1977 = vld [vmem:[%s402 + $0xa8] sm:$0xff]
        %v1978 = vld [vmem:[%s402 + $0xb0] sm:$0xff]
        %v1979 = vld [vmem:[%s402 + $0xb8] sm:$0xff]
        %v1980 = vld [vmem:[%s402 + $0xc0] sm:$0xff]
        %v1981 = vld [vmem:[%s402 + $0xc8] sm:$0xff]
        %v1982 = vld [vmem:[%s402 + $0xd0] sm:$0xff]
        %v1983 = vld [vmem:[%s402 + $0xd8] sm:$0xff]
        %v1984 = vld [vmem:[%s402 + $0xe0] sm:$0xff]
        %v1985 = vld [vmem:[%s402 + $0xe8] sm:$0xff]
        %v1986 = vld [vmem:[%s402 + $0xf0] sm:$0xff]
        %v1987 = vld [vmem:[%s402 + $0xf8] sm:$0xff]
        %v1988 = vld [vmem:[%s402 + $0x100] sm:$0xff]
        %v1989 = vld [vmem:[%s402 + $0x108] sm:$0xff]
        %v1990 = vld [vmem:[%s402 + $0x110] sm:$0xff]
        %v1991 = vld [vmem:[%s402 + $0x118] sm:$0xff]
        %v1992 = vld [vmem:[%s402 + $0x120] sm:$0xff]
        %v1993 = vld [vmem:[%s402 + $0x128] sm:$0xff]
        %v1994 = vld [vmem:[%s402 + $0x130] sm:$0xff]
        %v1995 = vld [vmem:[%s402 + $0x138] sm:$0xff]
        %v1996 = vld [vmem:[%s402 + $0x140] sm:$0xff]
        %v1997 = vld [vmem:[%s402 + $0x148] sm:$0xff]
        %v1998 = vld [vmem:[%s402 + $0x150] sm:$0xff]
        %v1999 = vld [vmem:[%s402 + $0x158] sm:$0xff]
        %v2000 = vld [vmem:[%s402 + $0x160] sm:$0xff]
        %v2001 = vld [vmem:[%s402 + $0x168] sm:$0xff]
        %v2002 = vld [vmem:[%s402 + $0x170] sm:$0xff]
        %v2003 = vld [vmem:[%s402 + $0x178] sm:$0xff]
        %v2004 = vld [vmem:[%s402 + $0x180] sm:$0xff]
        %v2005 = vld [vmem:[%s402 + $0x188] sm:$0xff]
        %v2006 = vld [vmem:[%s402 + $0x190] sm:$0xff]
        %v2007 = vld [vmem:[%s402 + $0x198] sm:$0xff]
        %v2008 = vld [vmem:[%s402 + $0x1a0] sm:$0xff]
        %v2009 = vld [vmem:[%s402 + $0x1a8] sm:$0xff]
        %v2010 = vld [vmem:[%s402 + $0x1b0] sm:$0xff]
        %v2011 = vld [vmem:[%s402 + $0x1b8] sm:$0xff]
        %v2012 = vld [vmem:[%s402 + $0x1c0] sm:$0xff]
        %v2013 = vld [vmem:[%s402 + $0x1c8] sm:$0xff]
        %v2014 = vld [vmem:[%s402 + $0x1d0] sm:$0xff]
        %v2015 = vld [vmem:[%s402 + $0x1d8] sm:$0xff]
        %v2016 = vld [vmem:[%s402 + $0x1e0] sm:$0xff]
        %v2017 = vld [vmem:[%s402 + $0x1e8] sm:$0xff]
        %v2018 = vld [vmem:[%s402 + $0x1f0] sm:$0xff]
        %v2019 = vld [vmem:[%s402 + $0x1f8] sm:$0xff]
        %2020 = vset.pattern.permute.xlu0 0
        %2021 = vperm.xlu0 %2020, %v1956
        %v2022 = vpop.permute.xlu0 %2021
        %2023 = vset.pattern.permute.xlu0 0
        %2024 = vperm.xlu0 %2023, %v1957
        %v2025 = vpop.permute.xlu0 %2024
        %2026 = vset.pattern.permute.xlu0 0
        %2027 = vperm.xlu0 %2026, %v1958
        %v2028 = vpop.permute.xlu0 %2027
        %2029 = vset.pattern.permute.xlu0 0
        %2030 = vperm.xlu0 %2029, %v1959
        %v2031 = vpop.permute.xlu0 %2030
        %2032 = vset.pattern.permute.xlu0 0
        %2033 = vperm.xlu0 %2032, %v1960
        %v2034 = vpop.permute.xlu0 %2033
        %2035 = vset.pattern.permute.xlu0 0
        %2036 = vperm.xlu0 %2035, %v1961
        %v2037 = vpop.permute.xlu0 %2036
        %2038 = vset.pattern.permute.xlu0 0
        %2039 = vperm.xlu0 %2038, %v1962
        %v2040 = vpop.permute.xlu0 %2039
        %2041 = vset.pattern.permute.xlu0 0
        %2042 = vperm.xlu0 %2041, %v1963
        %v2043 = vpop.permute.xlu0 %2042
        %2044 = vset.pattern.permute.xlu0 0
        %2045 = vperm.xlu0 %2044, %v1964
        %v2046 = vpop.permute.xlu0 %2045
        %2047 = vset.pattern.permute.xlu0 0
        %2048 = vperm.xlu0 %2047, %v1965
        %v2049 = vpop.permute.xlu0 %2048
        %2050 = vset.pattern.permute.xlu0 0
        %2051 = vperm.xlu0 %2050, %v1966
        %v2052 = vpop.permute.xlu0 %2051
        %2053 = vset.pattern.permute.xlu0 0
        %2054 = vperm.xlu0 %2053, %v1967
        %v2055 = vpop.permute.xlu0 %2054
        %2056 = vset.pattern.permute.xlu0 0
        %2057 = vperm.xlu0 %2056, %v1968
        %v2058 = vpop.permute.xlu0 %2057
        %2059 = vset.pattern.permute.xlu0 0
        %2060 = vperm.xlu0 %2059, %v1969
        %v2061 = vpop.permute.xlu0 %2060
        %2062 = vset.pattern.permute.xlu0 0
        %2063 = vperm.xlu0 %2062, %v1970
        %v2064 = vpop.permute.xlu0 %2063
        %2065 = vset.pattern.permute.xlu0 0
        %2066 = vperm.xlu0 %2065, %v1971
        %v2067 = vpop.permute.xlu0 %2066
        %2068 = vset.pattern.permute.xlu0 0
        %2069 = vperm.xlu0 %2068, %v1972
        %v2070 = vpop.permute.xlu0 %2069
        %2071 = vset.pattern.permute.xlu0 0
        %2072 = vperm.xlu0 %2071, %v1973
        %v2073 = vpop.permute.xlu0 %2072
        %2074 = vset.pattern.permute.xlu0 0
        %2075 = vperm.xlu0 %2074, %v1974
        %v2076 = vpop.permute.xlu0 %2075
        %2077 = vset.pattern.permute.xlu0 0
        %2078 = vperm.xlu0 %2077, %v1975
        %v2079 = vpop.permute.xlu0 %2078
        %2080 = vset.pattern.permute.xlu0 0
        %2081 = vperm.xlu0 %2080, %v1976
        %v2082 = vpop.permute.xlu0 %2081
        %2083 = vset.pattern.permute.xlu0 0
        %2084 = vperm.xlu0 %2083, %v1977
        %v2085 = vpop.permute.xlu0 %2084
        %2086 = vset.pattern.permute.xlu0 0
        %2087 = vperm.xlu0 %2086, %v1978
        %v2088 = vpop.permute.xlu0 %2087
        %2089 = vset.pattern.permute.xlu0 0
        %2090 = vperm.xlu0 %2089, %v1979
        %v2091 = vpop.permute.xlu0 %2090
        %2092 = vset.pattern.permute.xlu0 0
        %2093 = vperm.xlu0 %2092, %v1980
        %v2094 = vpop.permute.xlu0 %2093
        %2095 = vset.pattern.permute.xlu0 0
        %2096 = vperm.xlu0 %2095, %v1981
        %v2097 = vpop.permute.xlu0 %2096
        %2098 = vset.pattern.permute.xlu0 0
        %2099 = vperm.xlu0 %2098, %v1982
        %v2100 = vpop.permute.xlu0 %2099
        %2101 = vset.pattern.permute.xlu0 0
        %2102 = vperm.xlu0 %2101, %v1983
        %v2103 = vpop.permute.xlu0 %2102
        %2104 = vset.pattern.permute.xlu0 0
        %2105 = vperm.xlu0 %2104, %v1984
        %v2106 = vpop.permute.xlu0 %2105
        %2107 = vset.pattern.permute.xlu0 0
        %2108 = vperm.xlu0 %2107, %v1985
        %v2109 = vpop.permute.xlu0 %2108
        %2110 = vset.pattern.permute.xlu0 0
        %2111 = vperm.xlu0 %2110, %v1986
        %v2112 = vpop.permute.xlu0 %2111
        %2113 = vset.pattern.permute.xlu0 0
        %2114 = vperm.xlu0 %2113, %v1987
        %v2115 = vpop.permute.xlu0 %2114
        %2116 = vset.pattern.permute.xlu0 0
        %2117 = vperm.xlu0 %2116, %v1988
        %v2118 = vpop.permute.xlu0 %2117
        %2119 = vset.pattern.permute.xlu0 0
        %2120 = vperm.xlu0 %2119, %v1989
        %v2121 = vpop.permute.xlu0 %2120
        %2122 = vset.pattern.permute.xlu0 0
        %2123 = vperm.xlu0 %2122, %v1990
        %v2124 = vpop.permute.xlu0 %2123
        %2125 = vset.pattern.permute.xlu0 0
        %2126 = vperm.xlu0 %2125, %v1991
        %v2127 = vpop.permute.xlu0 %2126
        %2128 = vset.pattern.permute.xlu0 0
        %2129 = vperm.xlu0 %2128, %v1992
        %v2130 = vpop.permute.xlu0 %2129
        %2131 = vset.pattern.permute.xlu0 0
        %2132 = vperm.xlu0 %2131, %v1993
        %v2133 = vpop.permute.xlu0 %2132
        %2134 = vset.pattern.permute.xlu0 0
        %2135 = vperm.xlu0 %2134, %v1994
        %v2136 = vpop.permute.xlu0 %2135
        %2137 = vset.pattern.permute.xlu0 0
        %2138 = vperm.xlu0 %2137, %v1995
        %v2139 = vpop.permute.xlu0 %2138
        %2140 = vset.pattern.permute.xlu0 0
        %2141 = vperm.xlu0 %2140, %v1996
        %v2142 = vpop.permute.xlu0 %2141
        %2143 = vset.pattern.permute.xlu0 0
        %2144 = vperm.xlu0 %2143, %v1997
        %v2145 = vpop.permute.xlu0 %2144
        %2146 = vset.pattern.permute.xlu0 0
        %2147 = vperm.xlu0 %2146, %v1998
        %v2148 = vpop.permute.xlu0 %2147
        %2149 = vset.pattern.permute.xlu0 0
        %2150 = vperm.xlu0 %2149, %v1999
        %v2151 = vpop.permute.xlu0 %2150
        %2152 = vset.pattern.permute.xlu0 0
        %2153 = vperm.xlu0 %2152, %v2000
        %v2154 = vpop.permute.xlu0 %2153
        %2155 = vset.pattern.permute.xlu0 0
        %2156 = vperm.xlu0 %2155, %v2001
        %v2157 = vpop.permute.xlu0 %2156
        %2158 = vset.pattern.permute.xlu0 0
        %2159 = vperm.xlu0 %2158, %v2002
        %v2160 = vpop.permute.xlu0 %2159
        %2161 = vset.pattern.permute.xlu0 0
        %2162 = vperm.xlu0 %2161, %v2003
        %v2163 = vpop.permute.xlu0 %2162
        %2164 = vset.pattern.permute.xlu0 0
        %2165 = vperm.xlu0 %2164, %v2004
        %v2166 = vpop.permute.xlu0 %2165
        %2167 = vset.pattern.permute.xlu0 0
        %2168 = vperm.xlu0 %2167, %v2005
        %v2169 = vpop.permute.xlu0 %2168
        %2170 = vset.pattern.permute.xlu0 0
        %2171 = vperm.xlu0 %2170, %v2006
        %v2172 = vpop.permute.xlu0 %2171
        %2173 = vset.pattern.permute.xlu0 0
        %2174 = vperm.xlu0 %2173, %v2007
        %v2175 = vpop.permute.xlu0 %2174
        %2176 = vset.pattern.permute.xlu0 0
        %2177 = vperm.xlu0 %2176, %v2008
        %v2178 = vpop.permute.xlu0 %2177
        %2179 = vset.pattern.permute.xlu0 0
        %2180 = vperm.xlu0 %2179, %v2009
        %v2181 = vpop.permute.xlu0 %2180
        %2182 = vset.pattern.permute.xlu0 0
        %2183 = vperm.xlu0 %2182, %v2010
        %v2184 = vpop.permute.xlu0 %2183
        %2185 = vset.pattern.permute.xlu0 0
        %2186 = vperm.xlu0 %2185, %v2011
        %v2187 = vpop.permute.xlu0 %2186
        %2188 = vset.pattern.permute.xlu0 0
        %2189 = vperm.xlu0 %2188, %v2012
        %v2190 = vpop.permute.xlu0 %2189
        %2191 = vset.pattern.permute.xlu0 0
        %2192 = vperm.xlu0 %2191, %v2013
        %v2193 = vpop.permute.xlu0 %2192
        %2194 = vset.pattern.permute.xlu0 0
        %2195 = vperm.xlu0 %2194, %v2014
        %v2196 = vpop.permute.xlu0 %2195
        %2197 = vset.pattern.permute.xlu0 0
        %2198 = vperm.xlu0 %2197, %v2015
        %v2199 = vpop.permute.xlu0 %2198
        %2200 = vset.pattern.permute.xlu0 0
        %2201 = vperm.xlu0 %2200, %v2016
        %v2202 = vpop.permute.xlu0 %2201
        %2203 = vset.pattern.permute.xlu0 0
        %2204 = vperm.xlu0 %2203, %v2017
        %v2205 = vpop.permute.xlu0 %2204
        %2206 = vset.pattern.permute.xlu0 0
        %2207 = vperm.xlu0 %2206, %v2018
        %v2208 = vpop.permute.xlu0 %2207
        %2209 = vset.pattern.permute.xlu0 0
        %2210 = vperm.xlu0 %2209, %v2019
        %v2211 = vpop.permute.xlu0 %2210
        %vm2212 = vcmp.eq.s32.totalorder %v479, %v2022
        %vm2213 = vcmp.eq.s32.totalorder %v479, %v2025
        %vm2214 = vcmp.eq.s32.totalorder %v479, %v2028
        %vm2215 = vcmp.eq.s32.totalorder %v479, %v2031
        %vm2216 = vcmp.eq.s32.totalorder %v479, %v2034
        %vm2217 = vcmp.eq.s32.totalorder %v479, %v2037
        %vm2218 = vcmp.eq.s32.totalorder %v479, %v2040
        %vm2219 = vcmp.eq.s32.totalorder %v479, %v2043
        %vm2220 = vcmp.eq.s32.totalorder %v479, %v2046
        %vm2221 = vcmp.eq.s32.totalorder %v479, %v2049
        %vm2222 = vcmp.eq.s32.totalorder %v479, %v2052
        %vm2223 = vcmp.eq.s32.totalorder %v479, %v2055
        %vm2224 = vcmp.eq.s32.totalorder %v479, %v2058
        %vm2225 = vcmp.eq.s32.totalorder %v479, %v2061
        %vm2226 = vcmp.eq.s32.totalorder %v479, %v2064
        %vm2227 = vcmp.eq.s32.totalorder %v479, %v2067
        %vm2228 = vcmp.eq.s32.totalorder %v479, %v2070
        %vm2229 = vcmp.eq.s32.totalorder %v479, %v2073
        %vm2230 = vcmp.eq.s32.totalorder %v479, %v2076
        %vm2231 = vcmp.eq.s32.totalorder %v479, %v2079
        %vm2232 = vcmp.eq.s32.totalorder %v479, %v2082
        %vm2233 = vcmp.eq.s32.totalorder %v479, %v2085
        %vm2234 = vcmp.eq.s32.totalorder %v479, %v2088
        %vm2235 = vcmp.eq.s32.totalorder %v479, %v2091
        %vm2236 = vcmp.eq.s32.totalorder %v479, %v2094
        %vm2237 = vcmp.eq.s32.totalorder %v479, %v2097
        %vm2238 = vcmp.eq.s32.totalorder %v479, %v2100
        %vm2239 = vcmp.eq.s32.totalorder %v479, %v2103
        %vm2240 = vcmp.eq.s32.totalorder %v479, %v2106
        %vm2241 = vcmp.eq.s32.totalorder %v479, %v2109
        %vm2242 = vcmp.eq.s32.totalorder %v479, %v2112
        %vm2243 = vcmp.eq.s32.totalorder %v479, %v2115
        %vm2244 = vcmp.eq.s32.totalorder %v479, %v2118
        %vm2245 = vcmp.eq.s32.totalorder %v479, %v2121
        %vm2246 = vcmp.eq.s32.totalorder %v479, %v2124
        %vm2247 = vcmp.eq.s32.totalorder %v479, %v2127
        %vm2248 = vcmp.eq.s32.totalorder %v479, %v2130
        %vm2249 = vcmp.eq.s32.totalorder %v479, %v2133
        %vm2250 = vcmp.eq.s32.totalorder %v479, %v2136
        %vm2251 = vcmp.eq.s32.totalorder %v479, %v2139
        %vm2252 = vcmp.eq.s32.totalorder %v479, %v2142
        %vm2253 = vcmp.eq.s32.totalorder %v479, %v2145
        %vm2254 = vcmp.eq.s32.totalorder %v479, %v2148
        %vm2255 = vcmp.eq.s32.totalorder %v479, %v2151
        %vm2256 = vcmp.eq.s32.totalorder %v479, %v2154
        %vm2257 = vcmp.eq.s32.totalorder %v479, %v2157
        %vm2258 = vcmp.eq.s32.totalorder %v479, %v2160
        %vm2259 = vcmp.eq.s32.totalorder %v479, %v2163
        %vm2260 = vcmp.eq.s32.totalorder %v479, %v2166
        %vm2261 = vcmp.eq.s32.totalorder %v479, %v2169
        %vm2262 = vcmp.eq.s32.totalorder %v479, %v2172
        %vm2263 = vcmp.eq.s32.totalorder %v479, %v2175
        %vm2264 = vcmp.eq.s32.totalorder %v479, %v2178
        %vm2265 = vcmp.eq.s32.totalorder %v479, %v2181
        %vm2266 = vcmp.eq.s32.totalorder %v479, %v2184
        %vm2267 = vcmp.eq.s32.totalorder %v479, %v2187
        %vm2268 = vcmp.eq.s32.totalorder %v479, %v2190
        %vm2269 = vcmp.eq.s32.totalorder %v479, %v2193
        %vm2270 = vcmp.eq.s32.totalorder %v479, %v2196
        %vm2271 = vcmp.eq.s32.totalorder %v479, %v2199
        %vm2272 = vcmp.eq.s32.totalorder %v479, %v2202
        %vm2273 = vcmp.eq.s32.totalorder %v479, %v2205
        %vm2274 = vcmp.eq.s32.totalorder %v479, %v2208
        %vm2275 = vcmp.eq.s32.totalorder %v479, %v2211
        %v2276 = vsel %vm2212, 1.0, 0.0
        %v2277 = vsel %vm2213, 1.0, 0.0
        %v2278 = vsel %vm2214, 1.0, 0.0
        %v2279 = vsel %vm2215, 1.0, 0.0
        %v2280 = vsel %vm2216, 1.0, 0.0
        %v2281 = vsel %vm2217, 1.0, 0.0
        %v2282 = vsel %vm2218, 1.0, 0.0
        %v2283 = vsel %vm2219, 1.0, 0.0
        %v2284 = vsel %vm2220, 1.0, 0.0
        %v2285 = vsel %vm2221, 1.0, 0.0
        %v2286 = vsel %vm2222, 1.0, 0.0
        %v2287 = vsel %vm2223, 1.0, 0.0
        %v2288 = vsel %vm2224, 1.0, 0.0
        %v2289 = vsel %vm2225, 1.0, 0.0
        %v2290 = vsel %vm2226, 1.0, 0.0
        %v2291 = vsel %vm2227, 1.0, 0.0
        %v2292 = vsel %vm2228, 1.0, 0.0
        %v2293 = vsel %vm2229, 1.0, 0.0
        %v2294 = vsel %vm2230, 1.0, 0.0
        %v2295 = vsel %vm2231, 1.0, 0.0
        %v2296 = vsel %vm2232, 1.0, 0.0
        %v2297 = vsel %vm2233, 1.0, 0.0
        %v2298 = vsel %vm2234, 1.0, 0.0
        %v2299 = vsel %vm2235, 1.0, 0.0
        %v2300 = vsel %vm2236, 1.0, 0.0
        %v2301 = vsel %vm2237, 1.0, 0.0
        %v2302 = vsel %vm2238, 1.0, 0.0
        %v2303 = vsel %vm2239, 1.0, 0.0
        %v2304 = vsel %vm2240, 1.0, 0.0
        %v2305 = vsel %vm2241, 1.0, 0.0
        %v2306 = vsel %vm2242, 1.0, 0.0
        %v2307 = vsel %vm2243, 1.0, 0.0
        %v2308 = vsel %vm2244, 1.0, 0.0
        %v2309 = vsel %vm2245, 1.0, 0.0
        %v2310 = vsel %vm2246, 1.0, 0.0
        %v2311 = vsel %vm2247, 1.0, 0.0
        %v2312 = vsel %vm2248, 1.0, 0.0
        %v2313 = vsel %vm2249, 1.0, 0.0
        %v2314 = vsel %vm2250, 1.0, 0.0
        %v2315 = vsel %vm2251, 1.0, 0.0
        %v2316 = vsel %vm2252, 1.0, 0.0
        %v2317 = vsel %vm2253, 1.0, 0.0
        %v2318 = vsel %vm2254, 1.0, 0.0
        %v2319 = vsel %vm2255, 1.0, 0.0
        %v2320 = vsel %vm2256, 1.0, 0.0
        %v2321 = vsel %vm2257, 1.0, 0.0
        %v2322 = vsel %vm2258, 1.0, 0.0
        %v2323 = vsel %vm2259, 1.0, 0.0
        %v2324 = vsel %vm2260, 1.0, 0.0
        %v2325 = vsel %vm2261, 1.0, 0.0
        %v2326 = vsel %vm2262, 1.0, 0.0
        %v2327 = vsel %vm2263, 1.0, 0.0
        %v2328 = vsel %vm2264, 1.0, 0.0
        %v2329 = vsel %vm2265, 1.0, 0.0
        %v2330 = vsel %vm2266, 1.0, 0.0
        %v2331 = vsel %vm2267, 1.0, 0.0
        %v2332 = vsel %vm2268, 1.0, 0.0
        %v2333 = vsel %vm2269, 1.0, 0.0
        %v2334 = vsel %vm2270, 1.0, 0.0
        %v2335 = vsel %vm2271, 1.0, 0.0
        %v2336 = vsel %vm2272, 1.0, 0.0
        %v2337 = vsel %vm2273, 1.0, 0.0
        %v2338 = vsel %vm2274, 1.0, 0.0
        %v2339 = vsel %vm2275, 1.0, 0.0
        %v2340 = vpack.c.bf16 %v2277, %v2276
        %v2341 = vpack.c.bf16 %v2279, %v2278
        %v2342 = vpack.c.bf16 %v2281, %v2280
        %v2343 = vpack.c.bf16 %v2283, %v2282
        %v2344 = vpack.c.bf16 %v2285, %v2284
        %v2345 = vpack.c.bf16 %v2287, %v2286
        %v2346 = vpack.c.bf16 %v2289, %v2288
        %v2347 = vpack.c.bf16 %v2291, %v2290
        %v2348 = vpack.c.bf16 %v2293, %v2292
        %v2349 = vpack.c.bf16 %v2295, %v2294
        %v2350 = vpack.c.bf16 %v2297, %v2296
        %v2351 = vpack.c.bf16 %v2299, %v2298
        %v2352 = vpack.c.bf16 %v2301, %v2300
        %v2353 = vpack.c.bf16 %v2303, %v2302
        %v2354 = vpack.c.bf16 %v2305, %v2304
        %v2355 = vpack.c.bf16 %v2307, %v2306
        %v2356 = vpack.c.bf16 %v2309, %v2308
        %v2357 = vpack.c.bf16 %v2311, %v2310
        %v2358 = vpack.c.bf16 %v2313, %v2312
        %v2359 = vpack.c.bf16 %v2315, %v2314
        %v2360 = vpack.c.bf16 %v2317, %v2316
        %v2361 = vpack.c.bf16 %v2319, %v2318
        %v2362 = vpack.c.bf16 %v2321, %v2320
        %v2363 = vpack.c.bf16 %v2323, %v2322
        %v2364 = vpack.c.bf16 %v2325, %v2324
        %v2365 = vpack.c.bf16 %v2327, %v2326
        %v2366 = vpack.c.bf16 %v2329, %v2328
        %v2367 = vpack.c.bf16 %v2331, %v2330
        %v2368 = vpack.c.bf16 %v2333, %v2332
        %v2369 = vpack.c.bf16 %v2335, %v2334
        %v2370 = vpack.c.bf16 %v2337, %v2336
        %v2371 = vpack.c.bf16 %v2339, %v2338
        %v2388 = vunpack.c.l.b16 %v1940
        %v2389 = vunpack.c.l.b16 %v1941
        %v2390 = vunpack.c.l.b16 %v1942
        %v2391 = vunpack.c.l.b16 %v1943
        %v2392 = vunpack.c.l.b16 %v1944
        %v2393 = vunpack.c.l.b16 %v1945
        %v2394 = vunpack.c.l.b16 %v1946
        %v2395 = vunpack.c.l.b16 %v1947
        %v2396 = vunpack.c.l.b16 %v1948
        %v2397 = vunpack.c.l.b16 %v1949
        %v2398 = vunpack.c.l.b16 %v1950
        %v2399 = vunpack.c.l.b16 %v1951
        %v2400 = vunpack.c.l.b16 %v1952
        %v2401 = vunpack.c.l.b16 %v1953
        %v2402 = vunpack.c.l.b16 %v1954
        %v2403 = vunpack.c.l.b16 %v1955
        %v2404 = vpack.c.b16 %v2389, %v2388
        %v2405 = vpack.c.b16 %v2391, %v2390
        %v2406 = vpack.c.b16 %v2393, %v2392
        %v2407 = vpack.c.b16 %v2395, %v2394
        %v2408 = vpack.c.b16 %v2397, %v2396
        %v2409 = vpack.c.b16 %v2399, %v2398
        %v2410 = vpack.c.b16 %v2401, %v2400
        %v2411 = vpack.c.b16 %v2403, %v2402
        %2420 = vmatpush.bf16.msra.mxu0 %v2411
        %2421 = vmatpush.bf16.msra.mxu0 %v2410
        %2422 = vmatpush.bf16.msra.mxu0 %v2409
        %2423 = vmatpush.bf16.msra.mxu0 %v2408
        %2424 = vmatpush.bf16.msra.mxu0 %v2407
        %2425 = vmatpush.bf16.msra.mxu0 %v2406
        %2426 = vmatpush.bf16.msra.mxu0 %v2405
        %2427 = vmatpush.bf16.msra.mxu0 %v2404
        %2428 = vmatmul.bf16.gmra.mxu0 %v2340
        %v2429 = vpop.f32.mrf.mxu0
        %v2430 = vadd.f32 0.0, %v2429
        %v2431 = vpop.f32.mrf.mxu0
        %v2432 = vadd.f32 0.0, %v2431
        %2433 = vmatmul.bf16.gmra.mxu0 %v2341
        %v2434 = vpop.f32.mrf.mxu0
        %v2435 = vadd.f32 0.0, %v2434
        %v2436 = vpop.f32.mrf.mxu0
        %v2437 = vadd.f32 0.0, %v2436
        %2438 = vmatmul.bf16.gmra.mxu0 %v2342
        %v2439 = vpop.f32.mrf.mxu0
        %v2440 = vadd.f32 0.0, %v2439
        %v2441 = vpop.f32.mrf.mxu0
        %v2442 = vadd.f32 0.0, %v2441
        %2443 = vmatmul.bf16.gmra.mxu0 %v2343
        %v2444 = vpop.f32.mrf.mxu0
        %v2445 = vadd.f32 0.0, %v2444
        %v2446 = vpop.f32.mrf.mxu0
        %v2447 = vadd.f32 0.0, %v2446
        %2448 = vmatmul.bf16.gmra.mxu0 %v2344
        %v2449 = vpop.f32.mrf.mxu0
        %v2450 = vadd.f32 0.0, %v2449
        %v2451 = vpop.f32.mrf.mxu0
        %v2452 = vadd.f32 0.0, %v2451
        %2453 = vmatmul.bf16.gmra.mxu0 %v2345
        %v2454 = vpop.f32.mrf.mxu0
        %v2455 = vadd.f32 0.0, %v2454
        %v2456 = vpop.f32.mrf.mxu0
        %v2457 = vadd.f32 0.0, %v2456
        %2458 = vmatmul.bf16.gmra.mxu0 %v2346
        %v2459 = vpop.f32.mrf.mxu0
        %v2460 = vadd.f32 0.0, %v2459
        %v2461 = vpop.f32.mrf.mxu0
        %v2462 = vadd.f32 0.0, %v2461
        %2463 = vmatmul.bf16.gmra.mxu0 %v2347
        %v2464 = vpop.f32.mrf.mxu0
        %v2465 = vadd.f32 0.0, %v2464
        %v2466 = vpop.f32.mrf.mxu0
        %v2467 = vadd.f32 0.0, %v2466
        %2468 = vmatmul.bf16.gmra.mxu0 %v2348
        %v2469 = vpop.f32.mrf.mxu0
        %v2470 = vadd.f32 0.0, %v2469
        %v2471 = vpop.f32.mrf.mxu0
        %v2472 = vadd.f32 0.0, %v2471
        %2473 = vmatmul.bf16.gmra.mxu0 %v2349
        %v2474 = vpop.f32.mrf.mxu0
        %v2475 = vadd.f32 0.0, %v2474
        %v2476 = vpop.f32.mrf.mxu0
        %v2477 = vadd.f32 0.0, %v2476
        %2478 = vmatmul.bf16.gmra.mxu0 %v2350
        %v2479 = vpop.f32.mrf.mxu0
        %v2480 = vadd.f32 0.0, %v2479
        %v2481 = vpop.f32.mrf.mxu0
        %v2482 = vadd.f32 0.0, %v2481
        %2483 = vmatmul.bf16.gmra.mxu0 %v2351
        %v2484 = vpop.f32.mrf.mxu0
        %v2485 = vadd.f32 0.0, %v2484
        %v2486 = vpop.f32.mrf.mxu0
        %v2487 = vadd.f32 0.0, %v2486
        %2488 = vmatmul.bf16.gmra.mxu0 %v2352
        %v2489 = vpop.f32.mrf.mxu0
        %v2490 = vadd.f32 0.0, %v2489
        %v2491 = vpop.f32.mrf.mxu0
        %v2492 = vadd.f32 0.0, %v2491
        %2493 = vmatmul.bf16.gmra.mxu0 %v2353
        %v2494 = vpop.f32.mrf.mxu0
        %v2495 = vadd.f32 0.0, %v2494
        %v2496 = vpop.f32.mrf.mxu0
        %v2497 = vadd.f32 0.0, %v2496
        %2498 = vmatmul.bf16.gmra.mxu0 %v2354
        %v2499 = vpop.f32.mrf.mxu0
        %v2500 = vadd.f32 0.0, %v2499
        %v2501 = vpop.f32.mrf.mxu0
        %v2502 = vadd.f32 0.0, %v2501
        %2503 = vmatmul.bf16.gmra.mxu0 %v2355
        %v2504 = vpop.f32.mrf.mxu0
        %v2505 = vadd.f32 0.0, %v2504
        %v2506 = vpop.f32.mrf.mxu0
        %v2507 = vadd.f32 0.0, %v2506
        %2508 = vmatmul.bf16.gmra.mxu0 %v2356
        %v2509 = vpop.f32.mrf.mxu0
        %v2510 = vadd.f32 0.0, %v2509
        %v2511 = vpop.f32.mrf.mxu0
        %v2512 = vadd.f32 0.0, %v2511
        %2513 = vmatmul.bf16.gmra.mxu0 %v2357
        %v2514 = vpop.f32.mrf.mxu0
        %v2515 = vadd.f32 0.0, %v2514
        %v2516 = vpop.f32.mrf.mxu0
        %v2517 = vadd.f32 0.0, %v2516
        %2518 = vmatmul.bf16.gmra.mxu0 %v2358
        %v2519 = vpop.f32.mrf.mxu0
        %v2520 = vadd.f32 0.0, %v2519
        %v2521 = vpop.f32.mrf.mxu0
        %v2522 = vadd.f32 0.0, %v2521
        %2523 = vmatmul.bf16.gmra.mxu0 %v2359
        %v2524 = vpop.f32.mrf.mxu0
        %v2525 = vadd.f32 0.0, %v2524
        %v2526 = vpop.f32.mrf.mxu0
        %v2527 = vadd.f32 0.0, %v2526
        %2528 = vmatmul.bf16.gmra.mxu0 %v2360
        %v2529 = vpop.f32.mrf.mxu0
        %v2530 = vadd.f32 0.0, %v2529
        %v2531 = vpop.f32.mrf.mxu0
        %v2532 = vadd.f32 0.0, %v2531
        %2533 = vmatmul.bf16.gmra.mxu0 %v2361
        %v2534 = vpop.f32.mrf.mxu0
        %v2535 = vadd.f32 0.0, %v2534
        %v2536 = vpop.f32.mrf.mxu0
        %v2537 = vadd.f32 0.0, %v2536
        %2538 = vmatmul.bf16.gmra.mxu0 %v2362
        %v2539 = vpop.f32.mrf.mxu0
        %v2540 = vadd.f32 0.0, %v2539
        %v2541 = vpop.f32.mrf.mxu0
        %v2542 = vadd.f32 0.0, %v2541
        %2543 = vmatmul.bf16.gmra.mxu0 %v2363
        %v2544 = vpop.f32.mrf.mxu0
        %v2545 = vadd.f32 0.0, %v2544
        %v2546 = vpop.f32.mrf.mxu0
        %v2547 = vadd.f32 0.0, %v2546
        %2548 = vmatmul.bf16.gmra.mxu0 %v2364
        %v2549 = vpop.f32.mrf.mxu0
        %v2550 = vadd.f32 0.0, %v2549
        %v2551 = vpop.f32.mrf.mxu0
        %v2552 = vadd.f32 0.0, %v2551
        %2553 = vmatmul.bf16.gmra.mxu0 %v2365
        %v2554 = vpop.f32.mrf.mxu0
        %v2555 = vadd.f32 0.0, %v2554
        %v2556 = vpop.f32.mrf.mxu0
        %v2557 = vadd.f32 0.0, %v2556
        %2558 = vmatmul.bf16.gmra.mxu0 %v2366
        %v2559 = vpop.f32.mrf.mxu0
        %v2560 = vadd.f32 0.0, %v2559
        %v2561 = vpop.f32.mrf.mxu0
        %v2562 = vadd.f32 0.0, %v2561
        %2563 = vmatmul.bf16.gmra.mxu0 %v2367
        %v2564 = vpop.f32.mrf.mxu0
        %v2565 = vadd.f32 0.0, %v2564
        %v2566 = vpop.f32.mrf.mxu0
        %v2567 = vadd.f32 0.0, %v2566
        %2568 = vmatmul.bf16.gmra.mxu0 %v2368
        %v2569 = vpop.f32.mrf.mxu0
        %v2570 = vadd.f32 0.0, %v2569
        %v2571 = vpop.f32.mrf.mxu0
        %v2572 = vadd.f32 0.0, %v2571
        %2573 = vmatmul.bf16.gmra.mxu0 %v2369
        %v2574 = vpop.f32.mrf.mxu0
        %v2575 = vadd.f32 0.0, %v2574
        %v2576 = vpop.f32.mrf.mxu0
        %v2577 = vadd.f32 0.0, %v2576
        %2578 = vmatmul.bf16.gmra.mxu0 %v2370
        %v2579 = vpop.f32.mrf.mxu0
        %v2580 = vadd.f32 0.0, %v2579
        %v2581 = vpop.f32.mrf.mxu0
        %v2582 = vadd.f32 0.0, %v2581
        %2583 = vmatmul.bf16.gmra.mxu0 %v2371
        %v2584 = vpop.f32.mrf.mxu0
        %v2585 = vadd.f32 0.0, %v2584
        %v2586 = vpop.f32.mrf.mxu0
        %v2587 = vadd.f32 0.0, %v2586
        %2588 = vdwg.mxu0
        %v2589 = vpack.c.bf16 %v2430, %v2430
        %v2590 = vpack.c.bf16 %v2432, %v2432
        %v2591 = vpack.c.bf16 %v2435, %v2435
        %v2592 = vpack.c.bf16 %v2437, %v2437
        %v2593 = vpack.c.bf16 %v2440, %v2440
        %v2594 = vpack.c.bf16 %v2442, %v2442
        %v2595 = vpack.c.bf16 %v2445, %v2445
        %v2596 = vpack.c.bf16 %v2447, %v2447
        %v2597 = vpack.c.bf16 %v2450, %v2450
        %v2598 = vpack.c.bf16 %v2452, %v2452
        %v2599 = vpack.c.bf16 %v2455, %v2455
        %v2600 = vpack.c.bf16 %v2457, %v2457
        %v2601 = vpack.c.bf16 %v2460, %v2460
        %v2602 = vpack.c.bf16 %v2462, %v2462
        %v2603 = vpack.c.bf16 %v2465, %v2465
        %v2604 = vpack.c.bf16 %v2467, %v2467
        %v2605 = vpack.c.bf16 %v2470, %v2470
        %v2606 = vpack.c.bf16 %v2472, %v2472
        %v2607 = vpack.c.bf16 %v2475, %v2475
        %v2608 = vpack.c.bf16 %v2477, %v2477
        %v2609 = vpack.c.bf16 %v2480, %v2480
        %v2610 = vpack.c.bf16 %v2482, %v2482
        %v2611 = vpack.c.bf16 %v2485, %v2485
        %v2612 = vpack.c.bf16 %v2487, %v2487
        %v2613 = vpack.c.bf16 %v2490, %v2490
        %v2614 = vpack.c.bf16 %v2492, %v2492
        %v2615 = vpack.c.bf16 %v2495, %v2495
        %v2616 = vpack.c.bf16 %v2497, %v2497
        %v2617 = vpack.c.bf16 %v2500, %v2500
        %v2618 = vpack.c.bf16 %v2502, %v2502
        %v2619 = vpack.c.bf16 %v2505, %v2505
        %v2620 = vpack.c.bf16 %v2507, %v2507
        %v2621 = vpack.c.bf16 %v2510, %v2510
        %v2622 = vpack.c.bf16 %v2512, %v2512
        %v2623 = vpack.c.bf16 %v2515, %v2515
        %v2624 = vpack.c.bf16 %v2517, %v2517
        %v2625 = vpack.c.bf16 %v2520, %v2520
        %v2626 = vpack.c.bf16 %v2522, %v2522
        %v2627 = vpack.c.bf16 %v2525, %v2525
        %v2628 = vpack.c.bf16 %v2527, %v2527
        %v2629 = vpack.c.bf16 %v2530, %v2530
        %v2630 = vpack.c.bf16 %v2532, %v2532
        %v2631 = vpack.c.bf16 %v2535, %v2535
        %v2632 = vpack.c.bf16 %v2537, %v2537
        %v2633 = vpack.c.bf16 %v2540, %v2540
        %v2634 = vpack.c.bf16 %v2542, %v2542
        %v2635 = vpack.c.bf16 %v2545, %v2545
        %v2636 = vpack.c.bf16 %v2547, %v2547
        %v2637 = vpack.c.bf16 %v2550, %v2550
        %v2638 = vpack.c.bf16 %v2552, %v2552
        %v2639 = vpack.c.bf16 %v2555, %v2555
        %v2640 = vpack.c.bf16 %v2557, %v2557
        %v2641 = vpack.c.bf16 %v2560, %v2560
        %v2642 = vpack.c.bf16 %v2562, %v2562
        %v2643 = vpack.c.bf16 %v2565, %v2565
        %v2644 = vpack.c.bf16 %v2567, %v2567
        %v2645 = vpack.c.bf16 %v2570, %v2570
        %v2646 = vpack.c.bf16 %v2572, %v2572
        %v2647 = vpack.c.bf16 %v2575, %v2575
        %v2648 = vpack.c.bf16 %v2577, %v2577
        %v2649 = vpack.c.bf16 %v2580, %v2580
        %v2650 = vpack.c.bf16 %v2582, %v2582
        %v2651 = vpack.c.bf16 %v2585, %v2585
        %v2652 = vpack.c.bf16 %v2587, %v2587
        %v2717 = vunpack.c.l.b16 %v1122
        %v2718 = vunpack.c.l.b16 %v1123
        %v2719 = vunpack.c.l.b16 %v1124
        %v2720 = vunpack.c.l.b16 %v1125
        %v2721 = vunpack.c.l.b16 %v1126
        %v2722 = vunpack.c.l.b16 %v1127
        %v2723 = vunpack.c.l.b16 %v1128
        %v2724 = vunpack.c.l.b16 %v1129
        %v2725 = vunpack.c.l.b16 %v1130
        %v2726 = vunpack.c.l.b16 %v1131
        %v2727 = vunpack.c.l.b16 %v1132
        %v2728 = vunpack.c.l.b16 %v1133
        %v2729 = vunpack.c.l.b16 %v1134
        %v2730 = vunpack.c.l.b16 %v1135
        %v2731 = vunpack.c.l.b16 %v1136
        %v2732 = vunpack.c.l.b16 %v1137
        %v2733 = vunpack.c.l.b16 %v1138
        %v2734 = vunpack.c.l.b16 %v1139
        %v2735 = vunpack.c.l.b16 %v1140
        %v2736 = vunpack.c.l.b16 %v1141
        %v2737 = vunpack.c.l.b16 %v1142
        %v2738 = vunpack.c.l.b16 %v1143
        %v2739 = vunpack.c.l.b16 %v1144
        %v2740 = vunpack.c.l.b16 %v1145
        %v2741 = vunpack.c.l.b16 %v1146
        %v2742 = vunpack.c.l.b16 %v1147
        %v2743 = vunpack.c.l.b16 %v1148
        %v2744 = vunpack.c.l.b16 %v1149
        %v2745 = vunpack.c.l.b16 %v1150
        %v2746 = vunpack.c.l.b16 %v1151
        %v2747 = vunpack.c.l.b16 %v1152
        %v2748 = vunpack.c.l.b16 %v1153
        %v2749 = vunpack.c.l.b16 %v1154
        %v2750 = vunpack.c.l.b16 %v1155
        %v2751 = vunpack.c.l.b16 %v1156
        %v2752 = vunpack.c.l.b16 %v1157
        %v2753 = vunpack.c.l.b16 %v1158
        %v2754 = vunpack.c.l.b16 %v1159
        %v2755 = vunpack.c.l.b16 %v1160
        %v2756 = vunpack.c.l.b16 %v1161
        %v2757 = vunpack.c.l.b16 %v1162
        %v2758 = vunpack.c.l.b16 %v1163
        %v2759 = vunpack.c.l.b16 %v1164
        %v2760 = vunpack.c.l.b16 %v1165
        %v2761 = vunpack.c.l.b16 %v1166
        %v2762 = vunpack.c.l.b16 %v1167
        %v2763 = vunpack.c.l.b16 %v1168
        %v2764 = vunpack.c.l.b16 %v1169
        %v2765 = vunpack.c.l.b16 %v1170
        %v2766 = vunpack.c.l.b16 %v1171
        %v2767 = vunpack.c.l.b16 %v1172
        %v2768 = vunpack.c.l.b16 %v1173
        %v2769 = vunpack.c.l.b16 %v1174
        %v2770 = vunpack.c.l.b16 %v1175
        %v2771 = vunpack.c.l.b16 %v1176
        %v2772 = vunpack.c.l.b16 %v1177
        %v2773 = vunpack.c.l.b16 %v1178
        %v2774 = vunpack.c.l.b16 %v1179
        %v2775 = vunpack.c.l.b16 %v1180
        %v2776 = vunpack.c.l.b16 %v1181
        %v2777 = vunpack.c.l.b16 %v1182
        %v2778 = vunpack.c.l.b16 %v1183
        %v2779 = vunpack.c.l.b16 %v1184
        %v2780 = vunpack.c.l.b16 %v1185
        %v2781 = vpack.c.b16 %v2718, %v2717
        %v2782 = vpack.c.b16 %v2720, %v2719
        %v2783 = vpack.c.b16 %v2722, %v2721
        %v2784 = vpack.c.b16 %v2724, %v2723
        %v2785 = vpack.c.b16 %v2726, %v2725
        %v2786 = vpack.c.b16 %v2728, %v2727
        %v2787 = vpack.c.b16 %v2730, %v2729
        %v2788 = vpack.c.b16 %v2732, %v2731
        %v2789 = vpack.c.b16 %v2734, %v2733
        %v2790 = vpack.c.b16 %v2736, %v2735
        %v2791 = vpack.c.b16 %v2738, %v2737
        %v2792 = vpack.c.b16 %v2740, %v2739
        %v2793 = vpack.c.b16 %v2742, %v2741
        %v2794 = vpack.c.b16 %v2744, %v2743
        %v2795 = vpack.c.b16 %v2746, %v2745
        %v2796 = vpack.c.b16 %v2748, %v2747
        %v2797 = vpack.c.b16 %v2750, %v2749
        %v2798 = vpack.c.b16 %v2752, %v2751
        %v2799 = vpack.c.b16 %v2754, %v2753
        %v2800 = vpack.c.b16 %v2756, %v2755
        %v2801 = vpack.c.b16 %v2758, %v2757
        %v2802 = vpack.c.b16 %v2760, %v2759
        %v2803 = vpack.c.b16 %v2762, %v2761
        %v2804 = vpack.c.b16 %v2764, %v2763
        %v2805 = vpack.c.b16 %v2766, %v2765
        %v2806 = vpack.c.b16 %v2768, %v2767
        %v2807 = vpack.c.b16 %v2770, %v2769
        %v2808 = vpack.c.b16 %v2772, %v2771
        %v2809 = vpack.c.b16 %v2774, %v2773
        %v2810 = vpack.c.b16 %v2776, %v2775
        %v2811 = vpack.c.b16 %v2778, %v2777
        %v2812 = vpack.c.b16 %v2780, %v2779
        %v2909 = vunpack.c.l.b16 %v1876
        %v2910 = vunpack.c.l.b16 %v1877
        %v2911 = vunpack.c.l.b16 %v1878
        %v2912 = vunpack.c.l.b16 %v1879
        %v2913 = vunpack.c.l.b16 %v1880
        %v2914 = vunpack.c.l.b16 %v1881
        %v2915 = vunpack.c.l.b16 %v1882
        %v2916 = vunpack.c.l.b16 %v1883
        %v2917 = vunpack.c.l.b16 %v1884
        %v2918 = vunpack.c.l.b16 %v1885
        %v2919 = vunpack.c.l.b16 %v1886
        %v2920 = vunpack.c.l.b16 %v1887
        %v2921 = vunpack.c.l.b16 %v1888
        %v2922 = vunpack.c.l.b16 %v1889
        %v2923 = vunpack.c.l.b16 %v1890
        %v2924 = vunpack.c.l.b16 %v1891
        %v2925 = vunpack.c.l.b16 %v1892
        %v2926 = vunpack.c.l.b16 %v1893
        %v2927 = vunpack.c.l.b16 %v1894
        %v2928 = vunpack.c.l.b16 %v1895
        %v2929 = vunpack.c.l.b16 %v1896
        %v2930 = vunpack.c.l.b16 %v1897
        %v2931 = vunpack.c.l.b16 %v1898
        %v2932 = vunpack.c.l.b16 %v1899
        %v2933 = vunpack.c.l.b16 %v1900
        %v2934 = vunpack.c.l.b16 %v1901
        %v2935 = vunpack.c.l.b16 %v1902
        %v2936 = vunpack.c.l.b16 %v1903
        %v2937 = vunpack.c.l.b16 %v1904
        %v2938 = vunpack.c.l.b16 %v1905
        %v2939 = vunpack.c.l.b16 %v1906
        %v2940 = vunpack.c.l.b16 %v1907
        %v2941 = vunpack.c.l.b16 %v1908
        %v2942 = vunpack.c.l.b16 %v1909
        %v2943 = vunpack.c.l.b16 %v1910
        %v2944 = vunpack.c.l.b16 %v1911
        %v2945 = vunpack.c.l.b16 %v1912
        %v2946 = vunpack.c.l.b16 %v1913
        %v2947 = vunpack.c.l.b16 %v1914
        %v2948 = vunpack.c.l.b16 %v1915
        %v2949 = vunpack.c.l.b16 %v1916
        %v2950 = vunpack.c.l.b16 %v1917
        %v2951 = vunpack.c.l.b16 %v1918
        %v2952 = vunpack.c.l.b16 %v1919
        %v2953 = vunpack.c.l.b16 %v1920
        %v2954 = vunpack.c.l.b16 %v1921
        %v2955 = vunpack.c.l.b16 %v1922
        %v2956 = vunpack.c.l.b16 %v1923
        %v2957 = vunpack.c.l.b16 %v1924
        %v2958 = vunpack.c.l.b16 %v1925
        %v2959 = vunpack.c.l.b16 %v1926
        %v2960 = vunpack.c.l.b16 %v1927
        %v2961 = vunpack.c.l.b16 %v1928
        %v2962 = vunpack.c.l.b16 %v1929
        %v2963 = vunpack.c.l.b16 %v1930
        %v2964 = vunpack.c.l.b16 %v1931
        %v2965 = vunpack.c.l.b16 %v1932
        %v2966 = vunpack.c.l.b16 %v1933
        %v2967 = vunpack.c.l.b16 %v1934
        %v2968 = vunpack.c.l.b16 %v1935
        %v2969 = vunpack.c.l.b16 %v1936
        %v2970 = vunpack.c.l.b16 %v1937
        %v2971 = vunpack.c.l.b16 %v1938
        %v2972 = vunpack.c.l.b16 %v1939
        %v2973 = vpack.c.b16 %v2910, %v2909
        %v2974 = vpack.c.b16 %v2912, %v2911
        %v2975 = vpack.c.b16 %v2914, %v2913
        %v2976 = vpack.c.b16 %v2916, %v2915
        %v2977 = vpack.c.b16 %v2918, %v2917
        %v2978 = vpack.c.b16 %v2920, %v2919
        %v2979 = vpack.c.b16 %v2922, %v2921
        %v2980 = vpack.c.b16 %v2924, %v2923
        %v2981 = vpack.c.b16 %v2926, %v2925
        %v2982 = vpack.c.b16 %v2928, %v2927
        %v2983 = vpack.c.b16 %v2930, %v2929
        %v2984 = vpack.c.b16 %v2932, %v2931
        %v2985 = vpack.c.b16 %v2934, %v2933
        %v2986 = vpack.c.b16 %v2936, %v2935
        %v2987 = vpack.c.b16 %v2938, %v2937
        %v2988 = vpack.c.b16 %v2940, %v2939
        %v2989 = vpack.c.b16 %v2942, %v2941
        %v2990 = vpack.c.b16 %v2944, %v2943
        %v2991 = vpack.c.b16 %v2946, %v2945
        %v2992 = vpack.c.b16 %v2948, %v2947
        %v2993 = vpack.c.b16 %v2950, %v2949
        %v2994 = vpack.c.b16 %v2952, %v2951
        %v2995 = vpack.c.b16 %v2954, %v2953
        %v2996 = vpack.c.b16 %v2956, %v2955
        %v2997 = vpack.c.b16 %v2958, %v2957
        %v2998 = vpack.c.b16 %v2960, %v2959
        %v2999 = vpack.c.b16 %v2962, %v2961
        %v3000 = vpack.c.b16 %v2964, %v2963
        %v3001 = vpack.c.b16 %v2966, %v2965
        %v3002 = vpack.c.b16 %v2968, %v2967
        %v3003 = vpack.c.b16 %v2970, %v2969
        %v3004 = vpack.c.b16 %v2972, %v2971
        %v3101 = vunpack.c.l.b16 %v2589
        %v3102 = vunpack.c.l.b16 %v2590
        %v3103 = vunpack.c.l.b16 %v2591
        %v3104 = vunpack.c.l.b16 %v2592
        %v3105 = vunpack.c.l.b16 %v2593
        %v3106 = vunpack.c.l.b16 %v2594
        %v3107 = vunpack.c.l.b16 %v2595
        %v3108 = vunpack.c.l.b16 %v2596
        %v3109 = vunpack.c.l.b16 %v2597
        %v3110 = vunpack.c.l.b16 %v2598
        %v3111 = vunpack.c.l.b16 %v2599
        %v3112 = vunpack.c.l.b16 %v2600
        %v3113 = vunpack.c.l.b16 %v2601
        %v3114 = vunpack.c.l.b16 %v2602
        %v3115 = vunpack.c.l.b16 %v2603
        %v3116 = vunpack.c.l.b16 %v2604
        %v3117 = vunpack.c.l.b16 %v2605
        %v3118 = vunpack.c.l.b16 %v2606
        %v3119 = vunpack.c.l.b16 %v2607
        %v3120 = vunpack.c.l.b16 %v2608
        %v3121 = vunpack.c.l.b16 %v2609
        %v3122 = vunpack.c.l.b16 %v2610
        %v3123 = vunpack.c.l.b16 %v2611
        %v3124 = vunpack.c.l.b16 %v2612
        %v3125 = vunpack.c.l.b16 %v2613
        %v3126 = vunpack.c.l.b16 %v2614
        %v3127 = vunpack.c.l.b16 %v2615
        %v3128 = vunpack.c.l.b16 %v2616
        %v3129 = vunpack.c.l.b16 %v2617
        %v3130 = vunpack.c.l.b16 %v2618
        %v3131 = vunpack.c.l.b16 %v2619
        %v3132 = vunpack.c.l.b16 %v2620
        %v3133 = vunpack.c.l.b16 %v2621
        %v3134 = vunpack.c.l.b16 %v2622
        %v3135 = vunpack.c.l.b16 %v2623
        %v3136 = vunpack.c.l.b16 %v2624
        %v3137 = vunpack.c.l.b16 %v2625
        %v3138 = vunpack.c.l.b16 %v2626
        %v3139 = vunpack.c.l.b16 %v2627
        %v3140 = vunpack.c.l.b16 %v2628
        %v3141 = vunpack.c.l.b16 %v2629
        %v3142 = vunpack.c.l.b16 %v2630
        %v3143 = vunpack.c.l.b16 %v2631
        %v3144 = vunpack.c.l.b16 %v2632
        %v3145 = vunpack.c.l.b16 %v2633
        %v3146 = vunpack.c.l.b16 %v2634
        %v3147 = vunpack.c.l.b16 %v2635
        %v3148 = vunpack.c.l.b16 %v2636
        %v3149 = vunpack.c.l.b16 %v2637
        %v3150 = vunpack.c.l.b16 %v2638
        %v3151 = vunpack.c.l.b16 %v2639
        %v3152 = vunpack.c.l.b16 %v2640
        %v3153 = vunpack.c.l.b16 %v2641
        %v3154 = vunpack.c.l.b16 %v2642
        %v3155 = vunpack.c.l.b16 %v2643
        %v3156 = vunpack.c.l.b16 %v2644
        %v3157 = vunpack.c.l.b16 %v2645
        %v3158 = vunpack.c.l.b16 %v2646
        %v3159 = vunpack.c.l.b16 %v2647
        %v3160 = vunpack.c.l.b16 %v2648
        %v3161 = vunpack.c.l.b16 %v2649
        %v3162 = vunpack.c.l.b16 %v2650
        %v3163 = vunpack.c.l.b16 %v2651
        %v3164 = vunpack.c.l.b16 %v2652
        %v3165 = vpack.c.b16 %v3102, %v3101
        %v3166 = vpack.c.b16 %v3104, %v3103
        %v3167 = vpack.c.b16 %v3106, %v3105
        %v3168 = vpack.c.b16 %v3108, %v3107
        %v3169 = vpack.c.b16 %v3110, %v3109
        %v3170 = vpack.c.b16 %v3112, %v3111
        %v3171 = vpack.c.b16 %v3114, %v3113
        %v3172 = vpack.c.b16 %v3116, %v3115
        %v3173 = vpack.c.b16 %v3118, %v3117
        %v3174 = vpack.c.b16 %v3120, %v3119
        %v3175 = vpack.c.b16 %v3122, %v3121
        %v3176 = vpack.c.b16 %v3124, %v3123
        %v3177 = vpack.c.b16 %v3126, %v3125
        %v3178 = vpack.c.b16 %v3128, %v3127
        %v3179 = vpack.c.b16 %v3130, %v3129
        %v3180 = vpack.c.b16 %v3132, %v3131
        %v3181 = vpack.c.b16 %v3134, %v3133
        %v3182 = vpack.c.b16 %v3136, %v3135
        %v3183 = vpack.c.b16 %v3138, %v3137
        %v3184 = vpack.c.b16 %v3140, %v3139
        %v3185 = vpack.c.b16 %v3142, %v3141
        %v3186 = vpack.c.b16 %v3144, %v3143
        %v3187 = vpack.c.b16 %v3146, %v3145
        %v3188 = vpack.c.b16 %v3148, %v3147
        %v3189 = vpack.c.b16 %v3150, %v3149
        %v3190 = vpack.c.b16 %v3152, %v3151
        %v3191 = vpack.c.b16 %v3154, %v3153
        %v3192 = vpack.c.b16 %v3156, %v3155
        %v3193 = vpack.c.b16 %v3158, %v3157
        %v3194 = vpack.c.b16 %v3160, %v3159
        %v3195 = vpack.c.b16 %v3162, %v3161
        %v3196 = vpack.c.b16 %v3164, %v3163
        %v3229 = vld [vmem:[%s6] sm:$0xff]
        %v3230 = vld [vmem:[%s6 + $0x8] sm:$0xff]
        %v3231 = vld [vmem:[%s6 + $0x10] sm:$0xff]
        %v3232 = vld [vmem:[%s6 + $0x18] sm:$0xff]
        %v3233 = vld [vmem:[%s6 + $0x20] sm:$0xff]
        %v3234 = vld [vmem:[%s6 + $0x28] sm:$0xff]
        %v3235 = vld [vmem:[%s6 + $0x30] sm:$0xff]
        %v3236 = vld [vmem:[%s6 + $0x38] sm:$0xff]
        %v3237 = vld [vmem:[%s6 + $0x40] sm:$0xff]
        %v3238 = vld [vmem:[%s6 + $0x48] sm:$0xff]
        %v3239 = vld [vmem:[%s6 + $0x50] sm:$0xff]
        %v3240 = vld [vmem:[%s6 + $0x58] sm:$0xff]
        %v3241 = vld [vmem:[%s6 + $0x60] sm:$0xff]
        %v3242 = vld [vmem:[%s6 + $0x68] sm:$0xff]
        %v3243 = vld [vmem:[%s6 + $0x70] sm:$0xff]
        %v3244 = vld [vmem:[%s6 + $0x78] sm:$0xff]
        %v3245 = vld [vmem:[%s6 + $0x80] sm:$0xff]
        %v3246 = vld [vmem:[%s6 + $0x88] sm:$0xff]
        %v3247 = vld [vmem:[%s6 + $0x90] sm:$0xff]
        %v3248 = vld [vmem:[%s6 + $0x98] sm:$0xff]
        %v3249 = vld [vmem:[%s6 + $0xa0] sm:$0xff]
        %v3250 = vld [vmem:[%s6 + $0xa8] sm:$0xff]
        %v3251 = vld [vmem:[%s6 + $0xb0] sm:$0xff]
        %v3252 = vld [vmem:[%s6 + $0xb8] sm:$0xff]
        %v3253 = vld [vmem:[%s6 + $0xc0] sm:$0xff]
        %v3254 = vld [vmem:[%s6 + $0xc8] sm:$0xff]
        %v3255 = vld [vmem:[%s6 + $0xd0] sm:$0xff]
        %v3256 = vld [vmem:[%s6 + $0xd8] sm:$0xff]
        %v3257 = vld [vmem:[%s6 + $0xe0] sm:$0xff]
        %v3258 = vld [vmem:[%s6 + $0xe8] sm:$0xff]
        %v3259 = vld [vmem:[%s6 + $0xf0] sm:$0xff]
        %v3260 = vld [vmem:[%s6 + $0xf8] sm:$0xff]
        %v3261 = vld [vmem:[%s6 + $0x100] sm:$0xff]
        %v3262 = vld [vmem:[%s6 + $0x108] sm:$0xff]
        %v3263 = vld [vmem:[%s6 + $0x110] sm:$0xff]
        %v3264 = vld [vmem:[%s6 + $0x118] sm:$0xff]
        %v3265 = vld [vmem:[%s6 + $0x120] sm:$0xff]
        %v3266 = vld [vmem:[%s6 + $0x128] sm:$0xff]
        %v3267 = vld [vmem:[%s6 + $0x130] sm:$0xff]
        %v3268 = vld [vmem:[%s6 + $0x138] sm:$0xff]
        %v3269 = vld [vmem:[%s6 + $0x140] sm:$0xff]
        %v3270 = vld [vmem:[%s6 + $0x148] sm:$0xff]
        %v3271 = vld [vmem:[%s6 + $0x150] sm:$0xff]
        %v3272 = vld [vmem:[%s6 + $0x158] sm:$0xff]
        %v3273 = vld [vmem:[%s6 + $0x160] sm:$0xff]
        %v3274 = vld [vmem:[%s6 + $0x168] sm:$0xff]
        %v3275 = vld [vmem:[%s6 + $0x170] sm:$0xff]
        %v3276 = vld [vmem:[%s6 + $0x178] sm:$0xff]
        %v3277 = vld [vmem:[%s7] sm:$0x3]
        %v3279 = vperm.slane %v3277, 0
        %v3280 = vperm.slane %v3277, 1
        %v3331 = vunpack.c.l.b16 %v3229
        %v3332 = vunpack.c.h.b16 %v3229
        %v3333 = vunpack.c.l.b16 %v3230
        %v3334 = vunpack.c.h.b16 %v3230
        %v3335 = vunpack.c.l.b16 %v3231
        %v3336 = vunpack.c.h.b16 %v3231
        %v3337 = vunpack.c.l.b16 %v3232
        %v3338 = vunpack.c.h.b16 %v3232
        %v3339 = vunpack.c.l.b16 %v3233
        %v3340 = vunpack.c.h.b16 %v3233
        %v3341 = vunpack.c.l.b16 %v3234
        %v3342 = vunpack.c.h.b16 %v3234
        %v3343 = vunpack.c.l.b16 %v3235
        %v3344 = vunpack.c.h.b16 %v3235
        %v3345 = vunpack.c.l.b16 %v3236
        %v3346 = vunpack.c.h.b16 %v3236
        %v3347 = vunpack.c.l.b16 %v3237
        %v3348 = vunpack.c.h.b16 %v3237
        %v3349 = vunpack.c.l.b16 %v3238
        %v3350 = vunpack.c.h.b16 %v3238
        %v3351 = vunpack.c.l.b16 %v3239
        %v3352 = vunpack.c.h.b16 %v3239
        %v3353 = vunpack.c.l.b16 %v3240
        %v3354 = vunpack.c.h.b16 %v3240
        %v3355 = vunpack.c.l.b16 %v3241
        %v3356 = vunpack.c.h.b16 %v3241
        %v3357 = vunpack.c.l.b16 %v3242
        %v3358 = vunpack.c.h.b16 %v3242
        %v3359 = vunpack.c.l.b16 %v3243
        %v3360 = vunpack.c.h.b16 %v3243
        %v3361 = vunpack.c.l.b16 %v3244
        %v3362 = vunpack.c.h.b16 %v3244
        %v3363 = vunpack.c.l.b16 %v3245
        %v3364 = vunpack.c.h.b16 %v3245
        %v3365 = vunpack.c.l.b16 %v3246
        %v3366 = vunpack.c.h.b16 %v3246
        %v3367 = vunpack.c.l.b16 %v3247
        %v3368 = vunpack.c.h.b16 %v3247
        %v3369 = vunpack.c.l.b16 %v3248
        %v3370 = vunpack.c.h.b16 %v3248
        %v3371 = vunpack.c.l.b16 %v3249
        %v3372 = vunpack.c.h.b16 %v3249
        %v3373 = vunpack.c.l.b16 %v3250
        %v3374 = vunpack.c.h.b16 %v3250
        %v3375 = vunpack.c.l.b16 %v3251
        %v3376 = vunpack.c.h.b16 %v3251
        %v3377 = vunpack.c.l.b16 %v3252
        %v3378 = vunpack.c.h.b16 %v3252
        %v3379 = vunpack.c.l.b16 %v3253
        %v3380 = vunpack.c.h.b16 %v3253
        %v3381 = vunpack.c.l.b16 %v3254
        %v3382 = vunpack.c.h.b16 %v3254
        %v3383 = vunpack.c.l.b16 %v3255
        %v3384 = vunpack.c.h.b16 %v3255
        %v3385 = vunpack.c.l.b16 %v3256
        %v3386 = vunpack.c.h.b16 %v3256
        %v3387 = vunpack.c.l.b16 %v3257
        %v3388 = vunpack.c.h.b16 %v3257
        %v3389 = vunpack.c.l.b16 %v3258
        %v3390 = vunpack.c.h.b16 %v3258
        %v3391 = vunpack.c.l.b16 %v3259
        %v3392 = vunpack.c.h.b16 %v3259
        %v3393 = vunpack.c.l.b16 %v3260
        %v3394 = vunpack.c.h.b16 %v3260
        %v3395 = vunpack.c.l.b16 %v3261
        %v3396 = vunpack.c.h.b16 %v3261
        %v3397 = vunpack.c.l.b16 %v3262
        %v3398 = vunpack.c.h.b16 %v3262
        %v3399 = vunpack.c.l.b16 %v3263
        %v3400 = vunpack.c.h.b16 %v3263
        %v3401 = vunpack.c.l.b16 %v3264
        %v3402 = vunpack.c.h.b16 %v3264
        %v3403 = vunpack.c.l.b16 %v3265
        %v3404 = vunpack.c.h.b16 %v3265
        %v3405 = vunpack.c.l.b16 %v3266
        %v3406 = vunpack.c.h.b16 %v3266
        %v3407 = vunpack.c.l.b16 %v3267
        %v3408 = vunpack.c.h.b16 %v3267
        %v3409 = vunpack.c.l.b16 %v3268
        %v3410 = vunpack.c.h.b16 %v3268
        %v3411 = vunpack.c.l.b16 %v3269
        %v3412 = vunpack.c.h.b16 %v3269
        %v3413 = vunpack.c.l.b16 %v3270
        %v3414 = vunpack.c.h.b16 %v3270
        %v3415 = vunpack.c.l.b16 %v3271
        %v3416 = vunpack.c.h.b16 %v3271
        %v3417 = vunpack.c.l.b16 %v3272
        %v3418 = vunpack.c.h.b16 %v3272
        %v3419 = vunpack.c.l.b16 %v3273
        %v3420 = vunpack.c.h.b16 %v3273
        %v3421 = vunpack.c.l.b16 %v3274
        %v3422 = vunpack.c.h.b16 %v3274
        %v3423 = vunpack.c.l.b16 %v3275
        %v3424 = vunpack.c.h.b16 %v3275
        %v3425 = vunpack.c.l.b16 %v3276
        %v3426 = vunpack.c.h.b16 %v3276
        %v3427 = vpack.c.b16 %v3333, %v3331
        %v3428 = vpack.c.b16 %v3334, %v3332
        %v3429 = vpack.c.b16 %v3337, %v3335
        %v3430 = vpack.c.b16 %v3338, %v3336
        %v3431 = vpack.c.b16 %v3341, %v3339
        %v3432 = vpack.c.b16 %v3342, %v3340
        %v3433 = vpack.c.b16 %v3345, %v3343
        %v3434 = vpack.c.b16 %v3346, %v3344
        %v3435 = vpack.c.b16 %v3349, %v3347
        %v3436 = vpack.c.b16 %v3350, %v3348
        %v3437 = vpack.c.b16 %v3353, %v3351
        %v3438 = vpack.c.b16 %v3354, %v3352
        %v3439 = vpack.c.b16 %v3357, %v3355
        %v3440 = vpack.c.b16 %v3358, %v3356
        %v3441 = vpack.c.b16 %v3361, %v3359
        %v3442 = vpack.c.b16 %v3362, %v3360
        %v3443 = vpack.c.b16 %v3365, %v3363
        %v3444 = vpack.c.b16 %v3366, %v3364
        %v3445 = vpack.c.b16 %v3369, %v3367
        %v3446 = vpack.c.b16 %v3370, %v3368
        %v3447 = vpack.c.b16 %v3373, %v3371
        %v3448 = vpack.c.b16 %v3374, %v3372
        %v3449 = vpack.c.b16 %v3377, %v3375
        %v3450 = vpack.c.b16 %v3378, %v3376
        %v3451 = vpack.c.b16 %v3381, %v3379
        %v3452 = vpack.c.b16 %v3382, %v3380
        %v3453 = vpack.c.b16 %v3385, %v3383
        %v3454 = vpack.c.b16 %v3386, %v3384
        %v3455 = vpack.c.b16 %v3389, %v3387
        %v3456 = vpack.c.b16 %v3390, %v3388
        %v3457 = vpack.c.b16 %v3393, %v3391
        %v3458 = vpack.c.b16 %v3394, %v3392
        %v3459 = vpack.c.b16 %v3397, %v3395
        %v3460 = vpack.c.b16 %v3398, %v3396
        %v3461 = vpack.c.b16 %v3401, %v3399
        %v3462 = vpack.c.b16 %v3402, %v3400
        %v3463 = vpack.c.b16 %v3405, %v3403
        %v3464 = vpack.c.b16 %v3406, %v3404
        %v3465 = vpack.c.b16 %v3409, %v3407
        %v3466 = vpack.c.b16 %v3410, %v3408
        %v3467 = vpack.c.b16 %v3413, %v3411
        %v3468 = vpack.c.b16 %v3414, %v3412
        %v3469 = vpack.c.b16 %v3417, %v3415
        %v3470 = vpack.c.b16 %v3418, %v3416
        %v3471 = vpack.c.b16 %v3421, %v3419
        %v3472 = vpack.c.b16 %v3422, %v3420
        %v3473 = vpack.c.b16 %v3425, %v3423
        %v3474 = vpack.c.b16 %v3426, %v3424
        %3523 = vmatpush.bf16.msra.mxu0 %v3441
        %3524 = vmatpush.bf16.msra.mxu0 %v3439
        %3525 = vmatpush.bf16.msra.mxu0 %v3437
        %3526 = vmatpush.bf16.msra.mxu0 %v3435
        %3527 = vmatpush.bf16.msra.mxu0 %v3433
        %3528 = vmatpush.bf16.msra.mxu0 %v3431
        %3529 = vmatpush.bf16.msra.mxu0 %v3429
        %3530 = vmatpush.bf16.msra.mxu0 %v3427
        %3531 = vmatmul.bf16.gmra.mxu0 %v2781
        %v3532 = vpop.f32.mrf.mxu0
        %v3533 = vadd.f32 %v3279, %v3532
        %v3534 = vpop.f32.mrf.mxu0
        %v3535 = vadd.f32 %v3279, %v3534
        %3536 = vmatmul.bf16.gmra.mxu0 %v2782
        %v3537 = vpop.f32.mrf.mxu0
        %v3538 = vadd.f32 %v3279, %v3537
        %v3539 = vpop.f32.mrf.mxu0
        %v3540 = vadd.f32 %v3279, %v3539
        %3541 = vmatmul.bf16.gmra.mxu0 %v2783
        %v3542 = vpop.f32.mrf.mxu0
        %v3543 = vadd.f32 %v3279, %v3542
        %v3544 = vpop.f32.mrf.mxu0
        %v3545 = vadd.f32 %v3279, %v3544
        %3546 = vmatmul.bf16.gmra.mxu0 %v2784
        %v3547 = vpop.f32.mrf.mxu0
        %v3548 = vadd.f32 %v3279, %v3547
        %v3549 = vpop.f32.mrf.mxu0
        %v3550 = vadd.f32 %v3279, %v3549
        %3551 = vmatmul.bf16.gmra.mxu0 %v2785
        %v3552 = vpop.f32.mrf.mxu0
        %v3553 = vadd.f32 %v3279, %v3552
        %v3554 = vpop.f32.mrf.mxu0
        %v3555 = vadd.f32 %v3279, %v3554
        %3556 = vmatmul.bf16.gmra.mxu0 %v2786
        %v3557 = vpop.f32.mrf.mxu0
        %v3558 = vadd.f32 %v3279, %v3557
        %v3559 = vpop.f32.mrf.mxu0
        %v3560 = vadd.f32 %v3279, %v3559
        %3561 = vmatmul.bf16.gmra.mxu0 %v2787
        %v3562 = vpop.f32.mrf.mxu0
        %v3563 = vadd.f32 %v3279, %v3562
        %v3564 = vpop.f32.mrf.mxu0
        %v3565 = vadd.f32 %v3279, %v3564
        %3566 = vmatmul.bf16.gmra.mxu0 %v2788
        %v3567 = vpop.f32.mrf.mxu0
        %v3568 = vadd.f32 %v3279, %v3567
        %v3569 = vpop.f32.mrf.mxu0
        %v3570 = vadd.f32 %v3279, %v3569
        %3571 = vmatmul.bf16.gmra.mxu0 %v2789
        %v3572 = vpop.f32.mrf.mxu0
        %v3573 = vadd.f32 %v3279, %v3572
        %v3574 = vpop.f32.mrf.mxu0
        %v3575 = vadd.f32 %v3279, %v3574
        %3576 = vmatmul.bf16.gmra.mxu0 %v2790
        %v3577 = vpop.f32.mrf.mxu0
        %v3578 = vadd.f32 %v3279, %v3577
        %v3579 = vpop.f32.mrf.mxu0
        %v3580 = vadd.f32 %v3279, %v3579
        %3581 = vmatmul.bf16.gmra.mxu0 %v2791
        %v3582 = vpop.f32.mrf.mxu0
        %v3583 = vadd.f32 %v3279, %v3582
        %v3584 = vpop.f32.mrf.mxu0
        %v3585 = vadd.f32 %v3279, %v3584
        %3586 = vmatmul.bf16.gmra.mxu0 %v2792
        %v3587 = vpop.f32.mrf.mxu0
        %v3588 = vadd.f32 %v3279, %v3587
        %v3589 = vpop.f32.mrf.mxu0
        %v3590 = vadd.f32 %v3279, %v3589
        %3591 = vmatmul.bf16.gmra.mxu0 %v2793
        %v3592 = vpop.f32.mrf.mxu0
        %v3593 = vadd.f32 %v3279, %v3592
        %v3594 = vpop.f32.mrf.mxu0
        %v3595 = vadd.f32 %v3279, %v3594
        %3596 = vmatmul.bf16.gmra.mxu0 %v2794
        %v3597 = vpop.f32.mrf.mxu0
        %v3598 = vadd.f32 %v3279, %v3597
        %v3599 = vpop.f32.mrf.mxu0
        %v3600 = vadd.f32 %v3279, %v3599
        %3601 = vmatmul.bf16.gmra.mxu0 %v2795
        %v3602 = vpop.f32.mrf.mxu0
        %v3603 = vadd.f32 %v3279, %v3602
        %v3604 = vpop.f32.mrf.mxu0
        %v3605 = vadd.f32 %v3279, %v3604
        %3606 = vmatmul.bf16.gmra.mxu0 %v2796
        %v3607 = vpop.f32.mrf.mxu0
        %v3608 = vadd.f32 %v3279, %v3607
        %v3609 = vpop.f32.mrf.mxu0
        %v3610 = vadd.f32 %v3279, %v3609
        %3611 = vmatmul.bf16.gmra.mxu0 %v2797
        %v3612 = vpop.f32.mrf.mxu0
        %v3613 = vadd.f32 %v3279, %v3612
        %v3614 = vpop.f32.mrf.mxu0
        %v3615 = vadd.f32 %v3279, %v3614
        %3616 = vmatmul.bf16.gmra.mxu0 %v2798
        %v3617 = vpop.f32.mrf.mxu0
        %v3618 = vadd.f32 %v3279, %v3617
        %v3619 = vpop.f32.mrf.mxu0
        %v3620 = vadd.f32 %v3279, %v3619
        %3621 = vmatmul.bf16.gmra.mxu0 %v2799
        %v3622 = vpop.f32.mrf.mxu0
        %v3623 = vadd.f32 %v3279, %v3622
        %v3624 = vpop.f32.mrf.mxu0
        %v3625 = vadd.f32 %v3279, %v3624
        %3626 = vmatmul.bf16.gmra.mxu0 %v2800
        %v3627 = vpop.f32.mrf.mxu0
        %v3628 = vadd.f32 %v3279, %v3627
        %v3629 = vpop.f32.mrf.mxu0
        %v3630 = vadd.f32 %v3279, %v3629
        %3631 = vmatmul.bf16.gmra.mxu0 %v2801
        %v3632 = vpop.f32.mrf.mxu0
        %v3633 = vadd.f32 %v3279, %v3632
        %v3634 = vpop.f32.mrf.mxu0
        %v3635 = vadd.f32 %v3279, %v3634
        %3636 = vmatmul.bf16.gmra.mxu0 %v2802
        %v3637 = vpop.f32.mrf.mxu0
        %v3638 = vadd.f32 %v3279, %v3637
        %v3639 = vpop.f32.mrf.mxu0
        %v3640 = vadd.f32 %v3279, %v3639
        %3641 = vmatmul.bf16.gmra.mxu0 %v2803
        %v3642 = vpop.f32.mrf.mxu0
        %v3643 = vadd.f32 %v3279, %v3642
        %v3644 = vpop.f32.mrf.mxu0
        %v3645 = vadd.f32 %v3279, %v3644
        %3646 = vmatmul.bf16.gmra.mxu0 %v2804
        %v3647 = vpop.f32.mrf.mxu0
        %v3648 = vadd.f32 %v3279, %v3647
        %v3649 = vpop.f32.mrf.mxu0
        %v3650 = vadd.f32 %v3279, %v3649
        %3651 = vmatmul.bf16.gmra.mxu0 %v2805
        %v3652 = vpop.f32.mrf.mxu0
        %v3653 = vadd.f32 %v3279, %v3652
        %v3654 = vpop.f32.mrf.mxu0
        %v3655 = vadd.f32 %v3279, %v3654
        %3656 = vmatmul.bf16.gmra.mxu0 %v2806
        %v3657 = vpop.f32.mrf.mxu0
        %v3658 = vadd.f32 %v3279, %v3657
        %v3659 = vpop.f32.mrf.mxu0
        %v3660 = vadd.f32 %v3279, %v3659
        %3661 = vmatmul.bf16.gmra.mxu0 %v2807
        %v3662 = vpop.f32.mrf.mxu0
        %v3663 = vadd.f32 %v3279, %v3662
        %v3664 = vpop.f32.mrf.mxu0
        %v3665 = vadd.f32 %v3279, %v3664
        %3666 = vmatmul.bf16.gmra.mxu0 %v2808
        %v3667 = vpop.f32.mrf.mxu0
        %v3668 = vadd.f32 %v3279, %v3667
        %v3669 = vpop.f32.mrf.mxu0
        %v3670 = vadd.f32 %v3279, %v3669
        %3671 = vmatmul.bf16.gmra.mxu0 %v2809
        %v3672 = vpop.f32.mrf.mxu0
        %v3673 = vadd.f32 %v3279, %v3672
        %v3674 = vpop.f32.mrf.mxu0
        %v3675 = vadd.f32 %v3279, %v3674
        %3676 = vmatmul.bf16.gmra.mxu0 %v2810
        %v3677 = vpop.f32.mrf.mxu0
        %v3678 = vadd.f32 %v3279, %v3677
        %v3679 = vpop.f32.mrf.mxu0
        %v3680 = vadd.f32 %v3279, %v3679
        %3681 = vmatmul.bf16.gmra.mxu0 %v2811
        %v3682 = vpop.f32.mrf.mxu0
        %v3683 = vadd.f32 %v3279, %v3682
        %v3684 = vpop.f32.mrf.mxu0
        %v3685 = vadd.f32 %v3279, %v3684
        %3686 = vmatmul.bf16.gmra.mxu0 %v2812
        %v3687 = vpop.f32.mrf.mxu0
        %v3688 = vadd.f32 %v3279, %v3687
        %v3689 = vpop.f32.mrf.mxu0
        %v3690 = vadd.f32 %v3279, %v3689
        %3691 = vdwg.mxu0
        %3692 = vmatpush.bf16.msra.mxu0 %v3457
        %3693 = vmatpush.bf16.msra.mxu0 %v3455
        %3694 = vmatpush.bf16.msra.mxu0 %v3453
        %3695 = vmatpush.bf16.msra.mxu0 %v3451
        %3696 = vmatpush.bf16.msra.mxu0 %v3449
        %3697 = vmatpush.bf16.msra.mxu0 %v3447
        %3698 = vmatpush.bf16.msra.mxu0 %v3445
        %3699 = vmatpush.bf16.msra.mxu0 %v3443
        %3700 = vmatmul.bf16.gmra.mxu0 %v2973
        %v3701 = vpop.f32.mrf.mxu0
        %v3702 = vadd.f32 %v3533, %v3701
        %v3703 = vpop.f32.mrf.mxu0
        %v3704 = vadd.f32 %v3535, %v3703
        %3705 = vmatmul.bf16.gmra.mxu0 %v2974
        %v3706 = vpop.f32.mrf.mxu0
        %v3707 = vadd.f32 %v3538, %v3706
        %v3708 = vpop.f32.mrf.mxu0
        %v3709 = vadd.f32 %v3540, %v3708
        %3710 = vmatmul.bf16.gmra.mxu0 %v2975
        %v3711 = vpop.f32.mrf.mxu0
        %v3712 = vadd.f32 %v3543, %v3711
        %v3713 = vpop.f32.mrf.mxu0
        %v3714 = vadd.f32 %v3545, %v3713
        %3715 = vmatmul.bf16.gmra.mxu0 %v2976
        %v3716 = vpop.f32.mrf.mxu0
        %v3717 = vadd.f32 %v3548, %v3716
        %v3718 = vpop.f32.mrf.mxu0
        %v3719 = vadd.f32 %v3550, %v3718
        %3720 = vmatmul.bf16.gmra.mxu0 %v2977
        %v3721 = vpop.f32.mrf.mxu0
        %v3722 = vadd.f32 %v3553, %v3721
        %v3723 = vpop.f32.mrf.mxu0
        %v3724 = vadd.f32 %v3555, %v3723
        %3725 = vmatmul.bf16.gmra.mxu0 %v2978
        %v3726 = vpop.f32.mrf.mxu0
        %v3727 = vadd.f32 %v3558, %v3726
        %v3728 = vpop.f32.mrf.mxu0
        %v3729 = vadd.f32 %v3560, %v3728
        %3730 = vmatmul.bf16.gmra.mxu0 %v2979
        %v3731 = vpop.f32.mrf.mxu0
        %v3732 = vadd.f32 %v3563, %v3731
        %v3733 = vpop.f32.mrf.mxu0
        %v3734 = vadd.f32 %v3565, %v3733
        %3735 = vmatmul.bf16.gmra.mxu0 %v2980
        %v3736 = vpop.f32.mrf.mxu0
        %v3737 = vadd.f32 %v3568, %v3736
        %v3738 = vpop.f32.mrf.mxu0
        %v3739 = vadd.f32 %v3570, %v3738
        %3740 = vmatmul.bf16.gmra.mxu0 %v2981
        %v3741 = vpop.f32.mrf.mxu0
        %v3742 = vadd.f32 %v3573, %v3741
        %v3743 = vpop.f32.mrf.mxu0
        %v3744 = vadd.f32 %v3575, %v3743
        %3745 = vmatmul.bf16.gmra.mxu0 %v2982
        %v3746 = vpop.f32.mrf.mxu0
        %v3747 = vadd.f32 %v3578, %v3746
        %v3748 = vpop.f32.mrf.mxu0
        %v3749 = vadd.f32 %v3580, %v3748
        %3750 = vmatmul.bf16.gmra.mxu0 %v2983
        %v3751 = vpop.f32.mrf.mxu0
        %v3752 = vadd.f32 %v3583, %v3751
        %v3753 = vpop.f32.mrf.mxu0
        %v3754 = vadd.f32 %v3585, %v3753
        %3755 = vmatmul.bf16.gmra.mxu0 %v2984
        %v3756 = vpop.f32.mrf.mxu0
        %v3757 = vadd.f32 %v3588, %v3756
        %v3758 = vpop.f32.mrf.mxu0
        %v3759 = vadd.f32 %v3590, %v3758
        %3760 = vmatmul.bf16.gmra.mxu0 %v2985
        %v3761 = vpop.f32.mrf.mxu0
        %v3762 = vadd.f32 %v3593, %v3761
        %v3763 = vpop.f32.mrf.mxu0
        %v3764 = vadd.f32 %v3595, %v3763
        %3765 = vmatmul.bf16.gmra.mxu0 %v2986
        %v3766 = vpop.f32.mrf.mxu0
        %v3767 = vadd.f32 %v3598, %v3766
        %v3768 = vpop.f32.mrf.mxu0
        %v3769 = vadd.f32 %v3600, %v3768
        %3770 = vmatmul.bf16.gmra.mxu0 %v2987
        %v3771 = vpop.f32.mrf.mxu0
        %v3772 = vadd.f32 %v3603, %v3771
        %v3773 = vpop.f32.mrf.mxu0
        %v3774 = vadd.f32 %v3605, %v3773
        %3775 = vmatmul.bf16.gmra.mxu0 %v2988
        %v3776 = vpop.f32.mrf.mxu0
        %v3777 = vadd.f32 %v3608, %v3776
        %v3778 = vpop.f32.mrf.mxu0
        %v3779 = vadd.f32 %v3610, %v3778
        %3780 = vmatmul.bf16.gmra.mxu0 %v2989
        %v3781 = vpop.f32.mrf.mxu0
        %v3782 = vadd.f32 %v3613, %v3781
        %v3783 = vpop.f32.mrf.mxu0
        %v3784 = vadd.f32 %v3615, %v3783
        %3785 = vmatmul.bf16.gmra.mxu0 %v2990
        %v3786 = vpop.f32.mrf.mxu0
        %v3787 = vadd.f32 %v3618, %v3786
        %v3788 = vpop.f32.mrf.mxu0
        %v3789 = vadd.f32 %v3620, %v3788
        %3790 = vmatmul.bf16.gmra.mxu0 %v2991
        %v3791 = vpop.f32.mrf.mxu0
        %v3792 = vadd.f32 %v3623, %v3791
        %v3793 = vpop.f32.mrf.mxu0
        %v3794 = vadd.f32 %v3625, %v3793
        %3795 = vmatmul.bf16.gmra.mxu0 %v2992
        %v3796 = vpop.f32.mrf.mxu0
        %v3797 = vadd.f32 %v3628, %v3796
        %v3798 = vpop.f32.mrf.mxu0
        %v3799 = vadd.f32 %v3630, %v3798
        %3800 = vmatmul.bf16.gmra.mxu0 %v2993
        %v3801 = vpop.f32.mrf.mxu0
        %v3802 = vadd.f32 %v3633, %v3801
        %v3803 = vpop.f32.mrf.mxu0
        %v3804 = vadd.f32 %v3635, %v3803
        %3805 = vmatmul.bf16.gmra.mxu0 %v2994
        %v3806 = vpop.f32.mrf.mxu0
        %v3807 = vadd.f32 %v3638, %v3806
        %v3808 = vpop.f32.mrf.mxu0
        %v3809 = vadd.f32 %v3640, %v3808
        %3810 = vmatmul.bf16.gmra.mxu0 %v2995
        %v3811 = vpop.f32.mrf.mxu0
        %v3812 = vadd.f32 %v3643, %v3811
        %v3813 = vpop.f32.mrf.mxu0
        %v3814 = vadd.f32 %v3645, %v3813
        %3815 = vmatmul.bf16.gmra.mxu0 %v2996
        %v3816 = vpop.f32.mrf.mxu0
        %v3817 = vadd.f32 %v3648, %v3816
        %v3818 = vpop.f32.mrf.mxu0
        %v3819 = vadd.f32 %v3650, %v3818
        %3820 = vmatmul.bf16.gmra.mxu0 %v2997
        %v3821 = vpop.f32.mrf.mxu0
        %v3822 = vadd.f32 %v3653, %v3821
        %v3823 = vpop.f32.mrf.mxu0
        %v3824 = vadd.f32 %v3655, %v3823
        %3825 = vmatmul.bf16.gmra.mxu0 %v2998
        %v3826 = vpop.f32.mrf.mxu0
        %v3827 = vadd.f32 %v3658, %v3826
        %v3828 = vpop.f32.mrf.mxu0
        %v3829 = vadd.f32 %v3660, %v3828
        %3830 = vmatmul.bf16.gmra.mxu0 %v2999
        %v3831 = vpop.f32.mrf.mxu0
        %v3832 = vadd.f32 %v3663, %v3831
        %v3833 = vpop.f32.mrf.mxu0
        %v3834 = vadd.f32 %v3665, %v3833
        %3835 = vmatmul.bf16.gmra.mxu0 %v3000
        %v3836 = vpop.f32.mrf.mxu0
        %v3837 = vadd.f32 %v3668, %v3836
        %v3838 = vpop.f32.mrf.mxu0
        %v3839 = vadd.f32 %v3670, %v3838
        %3840 = vmatmul.bf16.gmra.mxu0 %v3001
        %v3841 = vpop.f32.mrf.mxu0
        %v3842 = vadd.f32 %v3673, %v3841
        %v3843 = vpop.f32.mrf.mxu0
        %v3844 = vadd.f32 %v3675, %v3843
        %3845 = vmatmul.bf16.gmra.mxu0 %v3002
        %v3846 = vpop.f32.mrf.mxu0
        %v3847 = vadd.f32 %v3678, %v3846
        %v3848 = vpop.f32.mrf.mxu0
        %v3849 = vadd.f32 %v3680, %v3848
        %3850 = vmatmul.bf16.gmra.mxu0 %v3003
        %v3851 = vpop.f32.mrf.mxu0
        %v3852 = vadd.f32 %v3683, %v3851
        %v3853 = vpop.f32.mrf.mxu0
        %v3854 = vadd.f32 %v3685, %v3853
        %3855 = vmatmul.bf16.gmra.mxu0 %v3004
        %v3856 = vpop.f32.mrf.mxu0
        %v3857 = vadd.f32 %v3688, %v3856
        %v3858 = vpop.f32.mrf.mxu0
        %v3859 = vadd.f32 %v3690, %v3858
        %3860 = vdwg.mxu0
        %3861 = vmatpush.bf16.msra.mxu0 %v3473
        %3862 = vmatpush.bf16.msra.mxu0 %v3471
        %3863 = vmatpush.bf16.msra.mxu0 %v3469
        %3864 = vmatpush.bf16.msra.mxu0 %v3467
        %3865 = vmatpush.bf16.msra.mxu0 %v3465
        %3866 = vmatpush.bf16.msra.mxu0 %v3463
        %3867 = vmatpush.bf16.msra.mxu0 %v3461
        %3868 = vmatpush.bf16.msra.mxu0 %v3459
        %3869 = vmatmul.bf16.gmra.mxu0 %v3165
        %v3870 = vpop.f32.mrf.mxu0
        %v3871 = vadd.f32 %v3702, %v3870
        %v3872 = vpop.f32.mrf.mxu0
        %v3873 = vadd.f32 %v3704, %v3872
        %3874 = vmatmul.bf16.gmra.mxu0 %v3166
        %v3875 = vpop.f32.mrf.mxu0
        %v3876 = vadd.f32 %v3707, %v3875
        %v3877 = vpop.f32.mrf.mxu0
        %v3878 = vadd.f32 %v3709, %v3877
        %3879 = vmatmul.bf16.gmra.mxu0 %v3167
        %v3880 = vpop.f32.mrf.mxu0
        %v3881 = vadd.f32 %v3712, %v3880
        %v3882 = vpop.f32.mrf.mxu0
        %v3883 = vadd.f32 %v3714, %v3882
        %3884 = vmatmul.bf16.gmra.mxu0 %v3168
        %v3885 = vpop.f32.mrf.mxu0
        %v3886 = vadd.f32 %v3717, %v3885
        %v3887 = vpop.f32.mrf.mxu0
        %v3888 = vadd.f32 %v3719, %v3887
        %3889 = vmatmul.bf16.gmra.mxu0 %v3169
        %v3890 = vpop.f32.mrf.mxu0
        %v3891 = vadd.f32 %v3722, %v3890
        %v3892 = vpop.f32.mrf.mxu0
        %v3893 = vadd.f32 %v3724, %v3892
        %3894 = vmatmul.bf16.gmra.mxu0 %v3170
        %v3895 = vpop.f32.mrf.mxu0
        %v3896 = vadd.f32 %v3727, %v3895
        %v3897 = vpop.f32.mrf.mxu0
        %v3898 = vadd.f32 %v3729, %v3897
        %3899 = vmatmul.bf16.gmra.mxu0 %v3171
        %v3900 = vpop.f32.mrf.mxu0
        %v3901 = vadd.f32 %v3732, %v3900
        %v3902 = vpop.f32.mrf.mxu0
        %v3903 = vadd.f32 %v3734, %v3902
        %3904 = vmatmul.bf16.gmra.mxu0 %v3172
        %v3905 = vpop.f32.mrf.mxu0
        %v3906 = vadd.f32 %v3737, %v3905
        %v3907 = vpop.f32.mrf.mxu0
        %v3908 = vadd.f32 %v3739, %v3907
        %3909 = vmatmul.bf16.gmra.mxu0 %v3173
        %v3910 = vpop.f32.mrf.mxu0
        %v3911 = vadd.f32 %v3742, %v3910
        %v3912 = vpop.f32.mrf.mxu0
        %v3913 = vadd.f32 %v3744, %v3912
        %3914 = vmatmul.bf16.gmra.mxu0 %v3174
        %v3915 = vpop.f32.mrf.mxu0
        %v3916 = vadd.f32 %v3747, %v3915
        %v3917 = vpop.f32.mrf.mxu0
        %v3918 = vadd.f32 %v3749, %v3917
        %3919 = vmatmul.bf16.gmra.mxu0 %v3175
        %v3920 = vpop.f32.mrf.mxu0
        %v3921 = vadd.f32 %v3752, %v3920
        %v3922 = vpop.f32.mrf.mxu0
        %v3923 = vadd.f32 %v3754, %v3922
        %3924 = vmatmul.bf16.gmra.mxu0 %v3176
        %v3925 = vpop.f32.mrf.mxu0
        %v3926 = vadd.f32 %v3757, %v3925
        %v3927 = vpop.f32.mrf.mxu0
        %v3928 = vadd.f32 %v3759, %v3927
        %3929 = vmatmul.bf16.gmra.mxu0 %v3177
        %v3930 = vpop.f32.mrf.mxu0
        %v3931 = vadd.f32 %v3762, %v3930
        %v3932 = vpop.f32.mrf.mxu0
        %v3933 = vadd.f32 %v3764, %v3932
        %3934 = vmatmul.bf16.gmra.mxu0 %v3178
        %v3935 = vpop.f32.mrf.mxu0
        %v3936 = vadd.f32 %v3767, %v3935
        %v3937 = vpop.f32.mrf.mxu0
        %v3938 = vadd.f32 %v3769, %v3937
        %3939 = vmatmul.bf16.gmra.mxu0 %v3179
        %v3940 = vpop.f32.mrf.mxu0
        %v3941 = vadd.f32 %v3772, %v3940
        %v3942 = vpop.f32.mrf.mxu0
        %v3943 = vadd.f32 %v3774, %v3942
        %3944 = vmatmul.bf16.gmra.mxu0 %v3180
        %v3945 = vpop.f32.mrf.mxu0
        %v3946 = vadd.f32 %v3777, %v3945
        %v3947 = vpop.f32.mrf.mxu0
        %v3948 = vadd.f32 %v3779, %v3947
        %3949 = vmatmul.bf16.gmra.mxu0 %v3181
        %v3950 = vpop.f32.mrf.mxu0
        %v3951 = vadd.f32 %v3782, %v3950
        %v3952 = vpop.f32.mrf.mxu0
        %v3953 = vadd.f32 %v3784, %v3952
        %3954 = vmatmul.bf16.gmra.mxu0 %v3182
        %v3955 = vpop.f32.mrf.mxu0
        %v3956 = vadd.f32 %v3787, %v3955
        %v3957 = vpop.f32.mrf.mxu0
        %v3958 = vadd.f32 %v3789, %v3957
        %3959 = vmatmul.bf16.gmra.mxu0 %v3183
        %v3960 = vpop.f32.mrf.mxu0
        %v3961 = vadd.f32 %v3792, %v3960
        %v3962 = vpop.f32.mrf.mxu0
        %v3963 = vadd.f32 %v3794, %v3962
        %3964 = vmatmul.bf16.gmra.mxu0 %v3184
        %v3965 = vpop.f32.mrf.mxu0
        %v3966 = vadd.f32 %v3797, %v3965
        %v3967 = vpop.f32.mrf.mxu0
        %v3968 = vadd.f32 %v3799, %v3967
        %3969 = vmatmul.bf16.gmra.mxu0 %v3185
        %v3970 = vpop.f32.mrf.mxu0
        %v3971 = vadd.f32 %v3802, %v3970
        %v3972 = vpop.f32.mrf.mxu0
        %v3973 = vadd.f32 %v3804, %v3972
        %3974 = vmatmul.bf16.gmra.mxu0 %v3186
        %v3975 = vpop.f32.mrf.mxu0
        %v3976 = vadd.f32 %v3807, %v3975
        %v3977 = vpop.f32.mrf.mxu0
        %v3978 = vadd.f32 %v3809, %v3977
        %3979 = vmatmul.bf16.gmra.mxu0 %v3187
        %v3980 = vpop.f32.mrf.mxu0
        %v3981 = vadd.f32 %v3812, %v3980
        %v3982 = vpop.f32.mrf.mxu0
        %v3983 = vadd.f32 %v3814, %v3982
        %3984 = vmatmul.bf16.gmra.mxu0 %v3188
        %v3985 = vpop.f32.mrf.mxu0
        %v3986 = vadd.f32 %v3817, %v3985
        %v3987 = vpop.f32.mrf.mxu0
        %v3988 = vadd.f32 %v3819, %v3987
        %3989 = vmatmul.bf16.gmra.mxu0 %v3189
        %v3990 = vpop.f32.mrf.mxu0
        %v3991 = vadd.f32 %v3822, %v3990
        %v3992 = vpop.f32.mrf.mxu0
        %v3993 = vadd.f32 %v3824, %v3992
        %3994 = vmatmul.bf16.gmra.mxu0 %v3190
        %v3995 = vpop.f32.mrf.mxu0
        %v3996 = vadd.f32 %v3827, %v3995
        %v3997 = vpop.f32.mrf.mxu0
        %v3998 = vadd.f32 %v3829, %v3997
        %3999 = vmatmul.bf16.gmra.mxu0 %v3191
        %v4000 = vpop.f32.mrf.mxu0
        %v4001 = vadd.f32 %v3832, %v4000
        %v4002 = vpop.f32.mrf.mxu0
        %v4003 = vadd.f32 %v3834, %v4002
        %4004 = vmatmul.bf16.gmra.mxu0 %v3192
        %v4005 = vpop.f32.mrf.mxu0
        %v4006 = vadd.f32 %v3837, %v4005
        %v4007 = vpop.f32.mrf.mxu0
        %v4008 = vadd.f32 %v3839, %v4007
        %4009 = vmatmul.bf16.gmra.mxu0 %v3193
        %v4010 = vpop.f32.mrf.mxu0
        %v4011 = vadd.f32 %v3842, %v4010
        %v4012 = vpop.f32.mrf.mxu0
        %v4013 = vadd.f32 %v3844, %v4012
        %4014 = vmatmul.bf16.gmra.mxu0 %v3194
        %v4015 = vpop.f32.mrf.mxu0
        %v4016 = vadd.f32 %v3847, %v4015
        %v4017 = vpop.f32.mrf.mxu0
        %v4018 = vadd.f32 %v3849, %v4017
        %4019 = vmatmul.bf16.gmra.mxu0 %v3195
        %v4020 = vpop.f32.mrf.mxu0
        %v4021 = vadd.f32 %v3852, %v4020
        %v4022 = vpop.f32.mrf.mxu0
        %v4023 = vadd.f32 %v3854, %v4022
        %4024 = vmatmul.bf16.gmra.mxu0 %v3196
        %v4025 = vpop.f32.mrf.mxu0
        %v4026 = vadd.f32 %v3857, %v4025
        %v4027 = vpop.f32.mrf.mxu0
        %v4028 = vadd.f32 %v3859, %v4027
        %4029 = vdwg.mxu0
        %4030 = vmatpush.bf16.msra.mxu0 %v3442
        %4031 = vmatpush.bf16.msra.mxu0 %v3440
        %4032 = vmatpush.bf16.msra.mxu0 %v3438
        %4033 = vmatpush.bf16.msra.mxu0 %v3436
        %4034 = vmatpush.bf16.msra.mxu0 %v3434
        %4035 = vmatpush.bf16.msra.mxu0 %v3432
        %4036 = vmatpush.bf16.msra.mxu0 %v3430
        %4037 = vmatpush.bf16.msra.mxu0 %v3428
        %4038 = vmatmul.bf16.gmra.mxu0 %v2781
        %v4039 = vpop.f32.mrf.mxu0
        %v4040 = vadd.f32 %v3280, %v4039
        %v4041 = vpop.f32.mrf.mxu0
        %v4042 = vadd.f32 %v3280, %v4041
        %4043 = vmatmul.bf16.gmra.mxu0 %v2782
        %v4044 = vpop.f32.mrf.mxu0
        %v4045 = vadd.f32 %v3280, %v4044
        %v4046 = vpop.f32.mrf.mxu0
        %v4047 = vadd.f32 %v3280, %v4046
        %4048 = vmatmul.bf16.gmra.mxu0 %v2783
        %v4049 = vpop.f32.mrf.mxu0
        %v4050 = vadd.f32 %v3280, %v4049
        %v4051 = vpop.f32.mrf.mxu0
        %v4052 = vadd.f32 %v3280, %v4051
        %4053 = vmatmul.bf16.gmra.mxu0 %v2784
        %v4054 = vpop.f32.mrf.mxu0
        %v4055 = vadd.f32 %v3280, %v4054
        %v4056 = vpop.f32.mrf.mxu0
        %v4057 = vadd.f32 %v3280, %v4056
        %4058 = vmatmul.bf16.gmra.mxu0 %v2785
        %v4059 = vpop.f32.mrf.mxu0
        %v4060 = vadd.f32 %v3280, %v4059
        %v4061 = vpop.f32.mrf.mxu0
        %v4062 = vadd.f32 %v3280, %v4061
        %4063 = vmatmul.bf16.gmra.mxu0 %v2786
        %v4064 = vpop.f32.mrf.mxu0
        %v4065 = vadd.f32 %v3280, %v4064
        %v4066 = vpop.f32.mrf.mxu0
        %v4067 = vadd.f32 %v3280, %v4066
        %4068 = vmatmul.bf16.gmra.mxu0 %v2787
        %v4069 = vpop.f32.mrf.mxu0
        %v4070 = vadd.f32 %v3280, %v4069
        %v4071 = vpop.f32.mrf.mxu0
        %v4072 = vadd.f32 %v3280, %v4071
        %4073 = vmatmul.bf16.gmra.mxu0 %v2788
        %v4074 = vpop.f32.mrf.mxu0
        %v4075 = vadd.f32 %v3280, %v4074
        %v4076 = vpop.f32.mrf.mxu0
        %v4077 = vadd.f32 %v3280, %v4076
        %4078 = vmatmul.bf16.gmra.mxu0 %v2789
        %v4079 = vpop.f32.mrf.mxu0
        %v4080 = vadd.f32 %v3280, %v4079
        %v4081 = vpop.f32.mrf.mxu0
        %v4082 = vadd.f32 %v3280, %v4081
        %4083 = vmatmul.bf16.gmra.mxu0 %v2790
        %v4084 = vpop.f32.mrf.mxu0
        %v4085 = vadd.f32 %v3280, %v4084
        %v4086 = vpop.f32.mrf.mxu0
        %v4087 = vadd.f32 %v3280, %v4086
        %4088 = vmatmul.bf16.gmra.mxu0 %v2791
        %v4089 = vpop.f32.mrf.mxu0
        %v4090 = vadd.f32 %v3280, %v4089
        %v4091 = vpop.f32.mrf.mxu0
        %v4092 = vadd.f32 %v3280, %v4091
        %4093 = vmatmul.bf16.gmra.mxu0 %v2792
        %v4094 = vpop.f32.mrf.mxu0
        %v4095 = vadd.f32 %v3280, %v4094
        %v4096 = vpop.f32.mrf.mxu0
        %v4097 = vadd.f32 %v3280, %v4096
        %4098 = vmatmul.bf16.gmra.mxu0 %v2793
        %v4099 = vpop.f32.mrf.mxu0
        %v4100 = vadd.f32 %v3280, %v4099
        %v4101 = vpop.f32.mrf.mxu0
        %v4102 = vadd.f32 %v3280, %v4101
        %4103 = vmatmul.bf16.gmra.mxu0 %v2794
        %v4104 = vpop.f32.mrf.mxu0
        %v4105 = vadd.f32 %v3280, %v4104
        %v4106 = vpop.f32.mrf.mxu0
        %v4107 = vadd.f32 %v3280, %v4106
        %4108 = vmatmul.bf16.gmra.mxu0 %v2795
        %v4109 = vpop.f32.mrf.mxu0
        %v4110 = vadd.f32 %v3280, %v4109
        %v4111 = vpop.f32.mrf.mxu0
        %v4112 = vadd.f32 %v3280, %v4111
        %4113 = vmatmul.bf16.gmra.mxu0 %v2796
        %v4114 = vpop.f32.mrf.mxu0
        %v4115 = vadd.f32 %v3280, %v4114
        %v4116 = vpop.f32.mrf.mxu0
        %v4117 = vadd.f32 %v3280, %v4116
        %4118 = vmatmul.bf16.gmra.mxu0 %v2797
        %v4119 = vpop.f32.mrf.mxu0
        %v4120 = vadd.f32 %v3280, %v4119
        %v4121 = vpop.f32.mrf.mxu0
        %v4122 = vadd.f32 %v3280, %v4121
        %4123 = vmatmul.bf16.gmra.mxu0 %v2798
        %v4124 = vpop.f32.mrf.mxu0
        %v4125 = vadd.f32 %v3280, %v4124
        %v4126 = vpop.f32.mrf.mxu0
        %v4127 = vadd.f32 %v3280, %v4126
        %4128 = vmatmul.bf16.gmra.mxu0 %v2799
        %v4129 = vpop.f32.mrf.mxu0
        %v4130 = vadd.f32 %v3280, %v4129
        %v4131 = vpop.f32.mrf.mxu0
        %v4132 = vadd.f32 %v3280, %v4131
        %4133 = vmatmul.bf16.gmra.mxu0 %v2800
        %v4134 = vpop.f32.mrf.mxu0
        %v4135 = vadd.f32 %v3280, %v4134
        %v4136 = vpop.f32.mrf.mxu0
        %v4137 = vadd.f32 %v3280, %v4136
        %4138 = vmatmul.bf16.gmra.mxu0 %v2801
        %v4139 = vpop.f32.mrf.mxu0
        %v4140 = vadd.f32 %v3280, %v4139
        %v4141 = vpop.f32.mrf.mxu0
        %v4142 = vadd.f32 %v3280, %v4141
        %4143 = vmatmul.bf16.gmra.mxu0 %v2802
        %v4144 = vpop.f32.mrf.mxu0
        %v4145 = vadd.f32 %v3280, %v4144
        %v4146 = vpop.f32.mrf.mxu0
        %v4147 = vadd.f32 %v3280, %v4146
        %4148 = vmatmul.bf16.gmra.mxu0 %v2803
        %v4149 = vpop.f32.mrf.mxu0
        %v4150 = vadd.f32 %v3280, %v4149
        %v4151 = vpop.f32.mrf.mxu0
        %v4152 = vadd.f32 %v3280, %v4151
        %4153 = vmatmul.bf16.gmra.mxu0 %v2804
        %v4154 = vpop.f32.mrf.mxu0
        %v4155 = vadd.f32 %v3280, %v4154
        %v4156 = vpop.f32.mrf.mxu0
        %v4157 = vadd.f32 %v3280, %v4156
        %4158 = vmatmul.bf16.gmra.mxu0 %v2805
        %v4159 = vpop.f32.mrf.mxu0
        %v4160 = vadd.f32 %v3280, %v4159
        %v4161 = vpop.f32.mrf.mxu0
        %v4162 = vadd.f32 %v3280, %v4161
        %4163 = vmatmul.bf16.gmra.mxu0 %v2806
        %v4164 = vpop.f32.mrf.mxu0
        %v4165 = vadd.f32 %v3280, %v4164
        %v4166 = vpop.f32.mrf.mxu0
        %v4167 = vadd.f32 %v3280, %v4166
        %4168 = vmatmul.bf16.gmra.mxu0 %v2807
        %v4169 = vpop.f32.mrf.mxu0
        %v4170 = vadd.f32 %v3280, %v4169
        %v4171 = vpop.f32.mrf.mxu0
        %v4172 = vadd.f32 %v3280, %v4171
        %4173 = vmatmul.bf16.gmra.mxu0 %v2808
        %v4174 = vpop.f32.mrf.mxu0
        %v4175 = vadd.f32 %v3280, %v4174
        %v4176 = vpop.f32.mrf.mxu0
        %v4177 = vadd.f32 %v3280, %v4176
        %4178 = vmatmul.bf16.gmra.mxu0 %v2809
        %v4179 = vpop.f32.mrf.mxu0
        %v4180 = vadd.f32 %v3280, %v4179
        %v4181 = vpop.f32.mrf.mxu0
        %v4182 = vadd.f32 %v3280, %v4181
        %4183 = vmatmul.bf16.gmra.mxu0 %v2810
        %v4184 = vpop.f32.mrf.mxu0
        %v4185 = vadd.f32 %v3280, %v4184
        %v4186 = vpop.f32.mrf.mxu0
        %v4187 = vadd.f32 %v3280, %v4186
        %4188 = vmatmul.bf16.gmra.mxu0 %v2811
        %v4189 = vpop.f32.mrf.mxu0
        %v4190 = vadd.f32 %v3280, %v4189
        %v4191 = vpop.f32.mrf.mxu0
        %v4192 = vadd.f32 %v3280, %v4191
        %4193 = vmatmul.bf16.gmra.mxu0 %v2812
        %v4194 = vpop.f32.mrf.mxu0
        %v4195 = vadd.f32 %v3280, %v4194
        %v4196 = vpop.f32.mrf.mxu0
        %v4197 = vadd.f32 %v3280, %v4196
        %4198 = vdwg.mxu0
        %4199 = vmatpush.bf16.msra.mxu0 %v3458
        %4200 = vmatpush.bf16.msra.mxu0 %v3456
        %4201 = vmatpush.bf16.msra.mxu0 %v3454
        %4202 = vmatpush.bf16.msra.mxu0 %v3452
        %4203 = vmatpush.bf16.msra.mxu0 %v3450
        %4204 = vmatpush.bf16.msra.mxu0 %v3448
        %4205 = vmatpush.bf16.msra.mxu0 %v3446
        %4206 = vmatpush.bf16.msra.mxu0 %v3444
        %4207 = vmatmul.bf16.gmra.mxu0 %v2973
        %v4208 = vpop.f32.mrf.mxu0
        %v4209 = vadd.f32 %v4040, %v4208
        %v4210 = vpop.f32.mrf.mxu0
        %v4211 = vadd.f32 %v4042, %v4210
        %4212 = vmatmul.bf16.gmra.mxu0 %v2974
        %v4213 = vpop.f32.mrf.mxu0
        %v4214 = vadd.f32 %v4045, %v4213
        %v4215 = vpop.f32.mrf.mxu0
        %v4216 = vadd.f32 %v4047, %v4215
        %4217 = vmatmul.bf16.gmra.mxu0 %v2975
        %v4218 = vpop.f32.mrf.mxu0
        %v4219 = vadd.f32 %v4050, %v4218
        %v4220 = vpop.f32.mrf.mxu0
        %v4221 = vadd.f32 %v4052, %v4220
        %4222 = vmatmul.bf16.gmra.mxu0 %v2976
        %v4223 = vpop.f32.mrf.mxu0
        %v4224 = vadd.f32 %v4055, %v4223
        %v4225 = vpop.f32.mrf.mxu0
        %v4226 = vadd.f32 %v4057, %v4225
        %4227 = vmatmul.bf16.gmra.mxu0 %v2977
        %v4228 = vpop.f32.mrf.mxu0
        %v4229 = vadd.f32 %v4060, %v4228
        %v4230 = vpop.f32.mrf.mxu0
        %v4231 = vadd.f32 %v4062, %v4230
        %4232 = vmatmul.bf16.gmra.mxu0 %v2978
        %v4233 = vpop.f32.mrf.mxu0
        %v4234 = vadd.f32 %v4065, %v4233
        %v4235 = vpop.f32.mrf.mxu0
        %v4236 = vadd.f32 %v4067, %v4235
        %4237 = vmatmul.bf16.gmra.mxu0 %v2979
        %v4238 = vpop.f32.mrf.mxu0
        %v4239 = vadd.f32 %v4070, %v4238
        %v4240 = vpop.f32.mrf.mxu0
        %v4241 = vadd.f32 %v4072, %v4240
        %4242 = vmatmul.bf16.gmra.mxu0 %v2980
        %v4243 = vpop.f32.mrf.mxu0
        %v4244 = vadd.f32 %v4075, %v4243
        %v4245 = vpop.f32.mrf.mxu0
        %v4246 = vadd.f32 %v4077, %v4245
        %4247 = vmatmul.bf16.gmra.mxu0 %v2981
        %v4248 = vpop.f32.mrf.mxu0
        %v4249 = vadd.f32 %v4080, %v4248
        %v4250 = vpop.f32.mrf.mxu0
        %v4251 = vadd.f32 %v4082, %v4250
        %4252 = vmatmul.bf16.gmra.mxu0 %v2982
        %v4253 = vpop.f32.mrf.mxu0
        %v4254 = vadd.f32 %v4085, %v4253
        %v4255 = vpop.f32.mrf.mxu0
        %v4256 = vadd.f32 %v4087, %v4255
        %4257 = vmatmul.bf16.gmra.mxu0 %v2983
        %v4258 = vpop.f32.mrf.mxu0
        %v4259 = vadd.f32 %v4090, %v4258
        %v4260 = vpop.f32.mrf.mxu0
        %v4261 = vadd.f32 %v4092, %v4260
        %4262 = vmatmul.bf16.gmra.mxu0 %v2984
        %v4263 = vpop.f32.mrf.mxu0
        %v4264 = vadd.f32 %v4095, %v4263
        %v4265 = vpop.f32.mrf.mxu0
        %v4266 = vadd.f32 %v4097, %v4265
        %4267 = vmatmul.bf16.gmra.mxu0 %v2985
        %v4268 = vpop.f32.mrf.mxu0
        %v4269 = vadd.f32 %v4100, %v4268
        %v4270 = vpop.f32.mrf.mxu0
        %v4271 = vadd.f32 %v4102, %v4270
        %4272 = vmatmul.bf16.gmra.mxu0 %v2986
        %v4273 = vpop.f32.mrf.mxu0
        %v4274 = vadd.f32 %v4105, %v4273
        %v4275 = vpop.f32.mrf.mxu0
        %v4276 = vadd.f32 %v4107, %v4275
        %4277 = vmatmul.bf16.gmra.mxu0 %v2987
        %v4278 = vpop.f32.mrf.mxu0
        %v4279 = vadd.f32 %v4110, %v4278
        %v4280 = vpop.f32.mrf.mxu0
        %v4281 = vadd.f32 %v4112, %v4280
        %4282 = vmatmul.bf16.gmra.mxu0 %v2988
        %v4283 = vpop.f32.mrf.mxu0
        %v4284 = vadd.f32 %v4115, %v4283
        %v4285 = vpop.f32.mrf.mxu0
        %v4286 = vadd.f32 %v4117, %v4285
        %4287 = vmatmul.bf16.gmra.mxu0 %v2989
        %v4288 = vpop.f32.mrf.mxu0
        %v4289 = vadd.f32 %v4120, %v4288
        %v4290 = vpop.f32.mrf.mxu0
        %v4291 = vadd.f32 %v4122, %v4290
        %4292 = vmatmul.bf16.gmra.mxu0 %v2990
        %v4293 = vpop.f32.mrf.mxu0
        %v4294 = vadd.f32 %v4125, %v4293
        %v4295 = vpop.f32.mrf.mxu0
        %v4296 = vadd.f32 %v4127, %v4295
        %4297 = vmatmul.bf16.gmra.mxu0 %v2991
        %v4298 = vpop.f32.mrf.mxu0
        %v4299 = vadd.f32 %v4130, %v4298
        %v4300 = vpop.f32.mrf.mxu0
        %v4301 = vadd.f32 %v4132, %v4300
        %4302 = vmatmul.bf16.gmra.mxu0 %v2992
        %v4303 = vpop.f32.mrf.mxu0
        %v4304 = vadd.f32 %v4135, %v4303
        %v4305 = vpop.f32.mrf.mxu0
        %v4306 = vadd.f32 %v4137, %v4305
        %4307 = vmatmul.bf16.gmra.mxu0 %v2993
        %v4308 = vpop.f32.mrf.mxu0
        %v4309 = vadd.f32 %v4140, %v4308
        %v4310 = vpop.f32.mrf.mxu0
        %v4311 = vadd.f32 %v4142, %v4310
        %4312 = vmatmul.bf16.gmra.mxu0 %v2994
        %v4313 = vpop.f32.mrf.mxu0
        %v4314 = vadd.f32 %v4145, %v4313
        %v4315 = vpop.f32.mrf.mxu0
        %v4316 = vadd.f32 %v4147, %v4315
        %4317 = vmatmul.bf16.gmra.mxu0 %v2995
        %v4318 = vpop.f32.mrf.mxu0
        %v4319 = vadd.f32 %v4150, %v4318
        %v4320 = vpop.f32.mrf.mxu0
        %v4321 = vadd.f32 %v4152, %v4320
        %4322 = vmatmul.bf16.gmra.mxu0 %v2996
        %v4323 = vpop.f32.mrf.mxu0
        %v4324 = vadd.f32 %v4155, %v4323
        %v4325 = vpop.f32.mrf.mxu0
        %v4326 = vadd.f32 %v4157, %v4325
        %4327 = vmatmul.bf16.gmra.mxu0 %v2997
        %v4328 = vpop.f32.mrf.mxu0
        %v4329 = vadd.f32 %v4160, %v4328
        %v4330 = vpop.f32.mrf.mxu0
        %v4331 = vadd.f32 %v4162, %v4330
        %4332 = vmatmul.bf16.gmra.mxu0 %v2998
        %v4333 = vpop.f32.mrf.mxu0
        %v4334 = vadd.f32 %v4165, %v4333
        %v4335 = vpop.f32.mrf.mxu0
        %v4336 = vadd.f32 %v4167, %v4335
        %4337 = vmatmul.bf16.gmra.mxu0 %v2999
        %v4338 = vpop.f32.mrf.mxu0
        %v4339 = vadd.f32 %v4170, %v4338
        %v4340 = vpop.f32.mrf.mxu0
        %v4341 = vadd.f32 %v4172, %v4340
        %4342 = vmatmul.bf16.gmra.mxu0 %v3000
        %v4343 = vpop.f32.mrf.mxu0
        %v4344 = vadd.f32 %v4175, %v4343
        %v4345 = vpop.f32.mrf.mxu0
        %v4346 = vadd.f32 %v4177, %v4345
        %4347 = vmatmul.bf16.gmra.mxu0 %v3001
        %v4348 = vpop.f32.mrf.mxu0
        %v4349 = vadd.f32 %v4180, %v4348
        %v4350 = vpop.f32.mrf.mxu0
        %v4351 = vadd.f32 %v4182, %v4350
        %4352 = vmatmul.bf16.gmra.mxu0 %v3002
        %v4353 = vpop.f32.mrf.mxu0
        %v4354 = vadd.f32 %v4185, %v4353
        %v4355 = vpop.f32.mrf.mxu0
        %v4356 = vadd.f32 %v4187, %v4355
        %4357 = vmatmul.bf16.gmra.mxu0 %v3003
        %v4358 = vpop.f32.mrf.mxu0
        %v4359 = vadd.f32 %v4190, %v4358
        %v4360 = vpop.f32.mrf.mxu0
        %v4361 = vadd.f32 %v4192, %v4360
        %4362 = vmatmul.bf16.gmra.mxu0 %v3004
        %v4363 = vpop.f32.mrf.mxu0
        %v4364 = vadd.f32 %v4195, %v4363
        %v4365 = vpop.f32.mrf.mxu0
        %v4366 = vadd.f32 %v4197, %v4365
        %4367 = vdwg.mxu0
        %4368 = vmatpush.bf16.msra.mxu0 %v3474
        %4369 = vmatpush.bf16.msra.mxu0 %v3472
        %4370 = vmatpush.bf16.msra.mxu0 %v3470
        %4371 = vmatpush.bf16.msra.mxu0 %v3468
        %4372 = vmatpush.bf16.msra.mxu0 %v3466
        %4373 = vmatpush.bf16.msra.mxu0 %v3464
        %4374 = vmatpush.bf16.msra.mxu0 %v3462
        %4375 = vmatpush.bf16.msra.mxu0 %v3460
        %4376 = vmatmul.bf16.gmra.mxu0 %v3165
        %v4377 = vpop.f32.mrf.mxu0
        %v4378 = vadd.f32 %v4209, %v4377
        %v4379 = vpop.f32.mrf.mxu0
        %v4380 = vadd.f32 %v4211, %v4379
        %4381 = vmatmul.bf16.gmra.mxu0 %v3166
        %v4382 = vpop.f32.mrf.mxu0
        %v4383 = vadd.f32 %v4214, %v4382
        %v4384 = vpop.f32.mrf.mxu0
        %v4385 = vadd.f32 %v4216, %v4384
        %4386 = vmatmul.bf16.gmra.mxu0 %v3167
        %v4387 = vpop.f32.mrf.mxu0
        %v4388 = vadd.f32 %v4219, %v4387
        %v4389 = vpop.f32.mrf.mxu0
        %v4390 = vadd.f32 %v4221, %v4389
        %4391 = vmatmul.bf16.gmra.mxu0 %v3168
        %v4392 = vpop.f32.mrf.mxu0
        %v4393 = vadd.f32 %v4224, %v4392
        %v4394 = vpop.f32.mrf.mxu0
        %v4395 = vadd.f32 %v4226, %v4394
        %4396 = vmatmul.bf16.gmra.mxu0 %v3169
        %v4397 = vpop.f32.mrf.mxu0
        %v4398 = vadd.f32 %v4229, %v4397
        %v4399 = vpop.f32.mrf.mxu0
        %v4400 = vadd.f32 %v4231, %v4399
        %4401 = vmatmul.bf16.gmra.mxu0 %v3170
        %v4402 = vpop.f32.mrf.mxu0
        %v4403 = vadd.f32 %v4234, %v4402
        %v4404 = vpop.f32.mrf.mxu0
        %v4405 = vadd.f32 %v4236, %v4404
        %4406 = vmatmul.bf16.gmra.mxu0 %v3171
        %v4407 = vpop.f32.mrf.mxu0
        %v4408 = vadd.f32 %v4239, %v4407
        %v4409 = vpop.f32.mrf.mxu0
        %v4410 = vadd.f32 %v4241, %v4409
        %4411 = vmatmul.bf16.gmra.mxu0 %v3172
        %v4412 = vpop.f32.mrf.mxu0
        %v4413 = vadd.f32 %v4244, %v4412
        %v4414 = vpop.f32.mrf.mxu0
        %v4415 = vadd.f32 %v4246, %v4414
        %4416 = vmatmul.bf16.gmra.mxu0 %v3173
        %v4417 = vpop.f32.mrf.mxu0
        %v4418 = vadd.f32 %v4249, %v4417
        %v4419 = vpop.f32.mrf.mxu0
        %v4420 = vadd.f32 %v4251, %v4419
        %4421 = vmatmul.bf16.gmra.mxu0 %v3174
        %v4422 = vpop.f32.mrf.mxu0
        %v4423 = vadd.f32 %v4254, %v4422
        %v4424 = vpop.f32.mrf.mxu0
        %v4425 = vadd.f32 %v4256, %v4424
        %4426 = vmatmul.bf16.gmra.mxu0 %v3175
        %v4427 = vpop.f32.mrf.mxu0
        %v4428 = vadd.f32 %v4259, %v4427
        %v4429 = vpop.f32.mrf.mxu0
        %v4430 = vadd.f32 %v4261, %v4429
        %4431 = vmatmul.bf16.gmra.mxu0 %v3176
        %v4432 = vpop.f32.mrf.mxu0
        %v4433 = vadd.f32 %v4264, %v4432
        %v4434 = vpop.f32.mrf.mxu0
        %v4435 = vadd.f32 %v4266, %v4434
        %4436 = vmatmul.bf16.gmra.mxu0 %v3177
        %v4437 = vpop.f32.mrf.mxu0
        %v4438 = vadd.f32 %v4269, %v4437
        %v4439 = vpop.f32.mrf.mxu0
        %v4440 = vadd.f32 %v4271, %v4439
        %4441 = vmatmul.bf16.gmra.mxu0 %v3178
        %v4442 = vpop.f32.mrf.mxu0
        %v4443 = vadd.f32 %v4274, %v4442
        %v4444 = vpop.f32.mrf.mxu0
        %v4445 = vadd.f32 %v4276, %v4444
        %4446 = vmatmul.bf16.gmra.mxu0 %v3179
        %v4447 = vpop.f32.mrf.mxu0
        %v4448 = vadd.f32 %v4279, %v4447
        %v4449 = vpop.f32.mrf.mxu0
        %v4450 = vadd.f32 %v4281, %v4449
        %4451 = vmatmul.bf16.gmra.mxu0 %v3180
        %v4452 = vpop.f32.mrf.mxu0
        %v4453 = vadd.f32 %v4284, %v4452
        %v4454 = vpop.f32.mrf.mxu0
        %v4455 = vadd.f32 %v4286, %v4454
        %4456 = vmatmul.bf16.gmra.mxu0 %v3181
        %v4457 = vpop.f32.mrf.mxu0
        %v4458 = vadd.f32 %v4289, %v4457
        %v4459 = vpop.f32.mrf.mxu0
        %v4460 = vadd.f32 %v4291, %v4459
        %4461 = vmatmul.bf16.gmra.mxu0 %v3182
        %v4462 = vpop.f32.mrf.mxu0
        %v4463 = vadd.f32 %v4294, %v4462
        %v4464 = vpop.f32.mrf.mxu0
        %v4465 = vadd.f32 %v4296, %v4464
        %4466 = vmatmul.bf16.gmra.mxu0 %v3183
        %v4467 = vpop.f32.mrf.mxu0
        %v4468 = vadd.f32 %v4299, %v4467
        %v4469 = vpop.f32.mrf.mxu0
        %v4470 = vadd.f32 %v4301, %v4469
        %4471 = vmatmul.bf16.gmra.mxu0 %v3184
        %v4472 = vpop.f32.mrf.mxu0
        %v4473 = vadd.f32 %v4304, %v4472
        %v4474 = vpop.f32.mrf.mxu0
        %v4475 = vadd.f32 %v4306, %v4474
        %4476 = vmatmul.bf16.gmra.mxu0 %v3185
        %v4477 = vpop.f32.mrf.mxu0
        %v4478 = vadd.f32 %v4309, %v4477
        %v4479 = vpop.f32.mrf.mxu0
        %v4480 = vadd.f32 %v4311, %v4479
        %4481 = vmatmul.bf16.gmra.mxu0 %v3186
        %v4482 = vpop.f32.mrf.mxu0
        %v4483 = vadd.f32 %v4314, %v4482
        %v4484 = vpop.f32.mrf.mxu0
        %v4485 = vadd.f32 %v4316, %v4484
        %4486 = vmatmul.bf16.gmra.mxu0 %v3187
        %v4487 = vpop.f32.mrf.mxu0
        %v4488 = vadd.f32 %v4319, %v4487
        %v4489 = vpop.f32.mrf.mxu0
        %v4490 = vadd.f32 %v4321, %v4489
        %4491 = vmatmul.bf16.gmra.mxu0 %v3188
        %v4492 = vpop.f32.mrf.mxu0
        %v4493 = vadd.f32 %v4324, %v4492
        %v4494 = vpop.f32.mrf.mxu0
        %v4495 = vadd.f32 %v4326, %v4494
        %4496 = vmatmul.bf16.gmra.mxu0 %v3189
        %v4497 = vpop.f32.mrf.mxu0
        %v4498 = vadd.f32 %v4329, %v4497
        %v4499 = vpop.f32.mrf.mxu0
        %v4500 = vadd.f32 %v4331, %v4499
        %4501 = vmatmul.bf16.gmra.mxu0 %v3190
        %v4502 = vpop.f32.mrf.mxu0
        %v4503 = vadd.f32 %v4334, %v4502
        %v4504 = vpop.f32.mrf.mxu0
        %v4505 = vadd.f32 %v4336, %v4504
        %4506 = vmatmul.bf16.gmra.mxu0 %v3191
        %v4507 = vpop.f32.mrf.mxu0
        %v4508 = vadd.f32 %v4339, %v4507
        %v4509 = vpop.f32.mrf.mxu0
        %v4510 = vadd.f32 %v4341, %v4509
        %4511 = vmatmul.bf16.gmra.mxu0 %v3192
        %v4512 = vpop.f32.mrf.mxu0
        %v4513 = vadd.f32 %v4344, %v4512
        %v4514 = vpop.f32.mrf.mxu0
        %v4515 = vadd.f32 %v4346, %v4514
        %4516 = vmatmul.bf16.gmra.mxu0 %v3193
        %v4517 = vpop.f32.mrf.mxu0
        %v4518 = vadd.f32 %v4349, %v4517
        %v4519 = vpop.f32.mrf.mxu0
        %v4520 = vadd.f32 %v4351, %v4519
        %4521 = vmatmul.bf16.gmra.mxu0 %v3194
        %v4522 = vpop.f32.mrf.mxu0
        %v4523 = vadd.f32 %v4354, %v4522
        %v4524 = vpop.f32.mrf.mxu0
        %v4525 = vadd.f32 %v4356, %v4524
        %4526 = vmatmul.bf16.gmra.mxu0 %v3195
        %v4527 = vpop.f32.mrf.mxu0
        %v4528 = vadd.f32 %v4359, %v4527
        %v4529 = vpop.f32.mrf.mxu0
        %v4530 = vadd.f32 %v4361, %v4529
        %4531 = vmatmul.bf16.gmra.mxu0 %v3196
        %v4532 = vpop.f32.mrf.mxu0
        %v4533 = vadd.f32 %v4364, %v4532
        %v4534 = vpop.f32.mrf.mxu0
        %v4535 = vadd.f32 %v4366, %v4534
        %4536 = vdwg.mxu0
        %v4537 = vadd.f32 %v3871, %v4378
        %4538 = vadd.xlane.f32.xlu0 %v4537
        %v4539 = vpop.xlane.xlu0 %4538
        %v4540 = vadd.f32 %v3873, %v4380
        %4541 = vadd.xlane.f32.xlu0 %v4540
        %v4542 = vpop.xlane.xlu0 %4541
        %v4543 = vadd.f32 %v3876, %v4383
        %4544 = vadd.xlane.f32.xlu0 %v4543
        %v4545 = vpop.xlane.xlu0 %4544
        %v4546 = vadd.f32 %v3878, %v4385
        %4547 = vadd.xlane.f32.xlu0 %v4546
        %v4548 = vpop.xlane.xlu0 %4547
        %v4549 = vadd.f32 %v3881, %v4388
        %4550 = vadd.xlane.f32.xlu0 %v4549
        %v4551 = vpop.xlane.xlu0 %4550
        %v4552 = vadd.f32 %v3883, %v4390
        %4553 = vadd.xlane.f32.xlu0 %v4552
        %v4554 = vpop.xlane.xlu0 %4553
        %v4555 = vadd.f32 %v3886, %v4393
        %4556 = vadd.xlane.f32.xlu0 %v4555
        %v4557 = vpop.xlane.xlu0 %4556
        %v4558 = vadd.f32 %v3888, %v4395
        %4559 = vadd.xlane.f32.xlu0 %v4558
        %v4560 = vpop.xlane.xlu0 %4559
        %v4561 = vadd.f32 %v3891, %v4398
        %4562 = vadd.xlane.f32.xlu0 %v4561
        %v4563 = vpop.xlane.xlu0 %4562
        %v4564 = vadd.f32 %v3893, %v4400
        %4565 = vadd.xlane.f32.xlu0 %v4564
        %v4566 = vpop.xlane.xlu0 %4565
        %v4567 = vadd.f32 %v3896, %v4403
        %4568 = vadd.xlane.f32.xlu0 %v4567
        %v4569 = vpop.xlane.xlu0 %4568
        %v4570 = vadd.f32 %v3898, %v4405
        %4571 = vadd.xlane.f32.xlu0 %v4570
        %v4572 = vpop.xlane.xlu0 %4571
        %v4573 = vadd.f32 %v3901, %v4408
        %4574 = vadd.xlane.f32.xlu0 %v4573
        %v4575 = vpop.xlane.xlu0 %4574
        %v4576 = vadd.f32 %v3903, %v4410
        %4577 = vadd.xlane.f32.xlu0 %v4576
        %v4578 = vpop.xlane.xlu0 %4577
        %v4579 = vadd.f32 %v3906, %v4413
        %4580 = vadd.xlane.f32.xlu0 %v4579
        %v4581 = vpop.xlane.xlu0 %4580
        %v4582 = vadd.f32 %v3908, %v4415
        %4583 = vadd.xlane.f32.xlu0 %v4582
        %v4584 = vpop.xlane.xlu0 %4583
        %v4585 = vadd.f32 %v3911, %v4418
        %4586 = vadd.xlane.f32.xlu0 %v4585
        %v4587 = vpop.xlane.xlu0 %4586
        %v4588 = vadd.f32 %v3913, %v4420
        %4589 = vadd.xlane.f32.xlu0 %v4588
        %v4590 = vpop.xlane.xlu0 %4589
        %v4591 = vadd.f32 %v3916, %v4423
        %4592 = vadd.xlane.f32.xlu0 %v4591
        %v4593 = vpop.xlane.xlu0 %4592
        %v4594 = vadd.f32 %v3918, %v4425
        %4595 = vadd.xlane.f32.xlu0 %v4594
        %v4596 = vpop.xlane.xlu0 %4595
        %v4597 = vadd.f32 %v3921, %v4428
        %4598 = vadd.xlane.f32.xlu0 %v4597
        %v4599 = vpop.xlane.xlu0 %4598
        %v4600 = vadd.f32 %v3923, %v4430
        %4601 = vadd.xlane.f32.xlu0 %v4600
        %v4602 = vpop.xlane.xlu0 %4601
        %v4603 = vadd.f32 %v3926, %v4433
        %4604 = vadd.xlane.f32.xlu0 %v4603
        %v4605 = vpop.xlane.xlu0 %4604
        %v4606 = vadd.f32 %v3928, %v4435
        %4607 = vadd.xlane.f32.xlu0 %v4606
        %v4608 = vpop.xlane.xlu0 %4607
        %v4609 = vadd.f32 %v3931, %v4438
        %4610 = vadd.xlane.f32.xlu0 %v4609
        %v4611 = vpop.xlane.xlu0 %4610
        %v4612 = vadd.f32 %v3933, %v4440
        %4613 = vadd.xlane.f32.xlu0 %v4612
        %v4614 = vpop.xlane.xlu0 %4613
        %v4615 = vadd.f32 %v3936, %v4443
        %4616 = vadd.xlane.f32.xlu0 %v4615
        %v4617 = vpop.xlane.xlu0 %4616
        %v4618 = vadd.f32 %v3938, %v4445
        %4619 = vadd.xlane.f32.xlu0 %v4618
        %v4620 = vpop.xlane.xlu0 %4619
        %v4621 = vadd.f32 %v3941, %v4448
        %4622 = vadd.xlane.f32.xlu0 %v4621
        %v4623 = vpop.xlane.xlu0 %4622
        %v4624 = vadd.f32 %v3943, %v4450
        %4625 = vadd.xlane.f32.xlu0 %v4624
        %v4626 = vpop.xlane.xlu0 %4625
        %v4627 = vadd.f32 %v3946, %v4453
        %4628 = vadd.xlane.f32.xlu0 %v4627
        %v4629 = vpop.xlane.xlu0 %4628
        %v4630 = vadd.f32 %v3948, %v4455
        %4631 = vadd.xlane.f32.xlu0 %v4630
        %v4632 = vpop.xlane.xlu0 %4631
        %v4633 = vadd.f32 %v3951, %v4458
        %4634 = vadd.xlane.f32.xlu0 %v4633
        %v4635 = vpop.xlane.xlu0 %4634
        %v4636 = vadd.f32 %v3953, %v4460
        %4637 = vadd.xlane.f32.xlu0 %v4636
        %v4638 = vpop.xlane.xlu0 %4637
        %v4639 = vadd.f32 %v3956, %v4463
        %4640 = vadd.xlane.f32.xlu0 %v4639
        %v4641 = vpop.xlane.xlu0 %4640
        %v4642 = vadd.f32 %v3958, %v4465
        %4643 = vadd.xlane.f32.xlu0 %v4642
        %v4644 = vpop.xlane.xlu0 %4643
        %v4645 = vadd.f32 %v3961, %v4468
        %4646 = vadd.xlane.f32.xlu0 %v4645
        %v4647 = vpop.xlane.xlu0 %4646
        %v4648 = vadd.f32 %v3963, %v4470
        %4649 = vadd.xlane.f32.xlu0 %v4648
        %v4650 = vpop.xlane.xlu0 %4649
        %v4651 = vadd.f32 %v3966, %v4473
        %4652 = vadd.xlane.f32.xlu0 %v4651
        %v4653 = vpop.xlane.xlu0 %4652
        %v4654 = vadd.f32 %v3968, %v4475
        %4655 = vadd.xlane.f32.xlu0 %v4654
        %v4656 = vpop.xlane.xlu0 %4655
        %v4657 = vadd.f32 %v3971, %v4478
        %4658 = vadd.xlane.f32.xlu0 %v4657
        %v4659 = vpop.xlane.xlu0 %4658
        %v4660 = vadd.f32 %v3973, %v4480
        %4661 = vadd.xlane.f32.xlu0 %v4660
        %v4662 = vpop.xlane.xlu0 %4661
        %v4663 = vadd.f32 %v3976, %v4483
        %4664 = vadd.xlane.f32.xlu0 %v4663
        %v4665 = vpop.xlane.xlu0 %4664
        %v4666 = vadd.f32 %v3978, %v4485
        %4667 = vadd.xlane.f32.xlu0 %v4666
        %v4668 = vpop.xlane.xlu0 %4667
        %v4669 = vadd.f32 %v3981, %v4488
        %4670 = vadd.xlane.f32.xlu0 %v4669
        %v4671 = vpop.xlane.xlu0 %4670
        %v4672 = vadd.f32 %v3983, %v4490
        %4673 = vadd.xlane.f32.xlu0 %v4672
        %v4674 = vpop.xlane.xlu0 %4673
        %v4675 = vadd.f32 %v3986, %v4493
        %4676 = vadd.xlane.f32.xlu0 %v4675
        %v4677 = vpop.xlane.xlu0 %4676
        %v4678 = vadd.f32 %v3988, %v4495
        %4679 = vadd.xlane.f32.xlu0 %v4678
        %v4680 = vpop.xlane.xlu0 %4679
        %v4681 = vadd.f32 %v3991, %v4498
        %4682 = vadd.xlane.f32.xlu0 %v4681
        %v4683 = vpop.xlane.xlu0 %4682
        %v4684 = vadd.f32 %v3993, %v4500
        %4685 = vadd.xlane.f32.xlu0 %v4684
        %v4686 = vpop.xlane.xlu0 %4685
        %v4687 = vadd.f32 %v3996, %v4503
        %4688 = vadd.xlane.f32.xlu0 %v4687
        %v4689 = vpop.xlane.xlu0 %4688
        %v4690 = vadd.f32 %v3998, %v4505
        %4691 = vadd.xlane.f32.xlu0 %v4690
        %v4692 = vpop.xlane.xlu0 %4691
        %v4693 = vadd.f32 %v4001, %v4508
        %4694 = vadd.xlane.f32.xlu0 %v4693
        %v4695 = vpop.xlane.xlu0 %4694
        %v4696 = vadd.f32 %v4003, %v4510
        %4697 = vadd.xlane.f32.xlu0 %v4696
        %v4698 = vpop.xlane.xlu0 %4697
        %v4699 = vadd.f32 %v4006, %v4513
        %4700 = vadd.xlane.f32.xlu0 %v4699
        %v4701 = vpop.xlane.xlu0 %4700
        %v4702 = vadd.f32 %v4008, %v4515
        %4703 = vadd.xlane.f32.xlu0 %v4702
        %v4704 = vpop.xlane.xlu0 %4703
        %v4705 = vadd.f32 %v4011, %v4518
        %4706 = vadd.xlane.f32.xlu0 %v4705
        %v4707 = vpop.xlane.xlu0 %4706
        %v4708 = vadd.f32 %v4013, %v4520
        %4709 = vadd.xlane.f32.xlu0 %v4708
        %v4710 = vpop.xlane.xlu0 %4709
        %v4711 = vadd.f32 %v4016, %v4523
        %4712 = vadd.xlane.f32.xlu0 %v4711
        %v4713 = vpop.xlane.xlu0 %4712
        %v4714 = vadd.f32 %v4018, %v4525
        %4715 = vadd.xlane.f32.xlu0 %v4714
        %v4716 = vpop.xlane.xlu0 %4715
        %v4717 = vadd.f32 %v4021, %v4528
        %4718 = vadd.xlane.f32.xlu0 %v4717
        %v4719 = vpop.xlane.xlu0 %4718
        %v4720 = vadd.f32 %v4023, %v4530
        %4721 = vadd.xlane.f32.xlu0 %v4720
        %v4722 = vpop.xlane.xlu0 %4721
        %v4723 = vadd.f32 %v4026, %v4533
        %4724 = vadd.xlane.f32.xlu0 %v4723
        %v4725 = vpop.xlane.xlu0 %4724
        %v4726 = vadd.f32 %v4028, %v4535
        %4727 = vadd.xlane.f32.xlu0 %v4726
        %v4728 = vpop.xlane.xlu0 %4727
        %v4729 = vmul.f32 %v3871, %v3871
        %v4730 = vmul.f32 %v4378, %v4378
        %v4731 = vmul.f32 %v3873, %v3873
        %v4732 = vmul.f32 %v4380, %v4380
        %v4733 = vmul.f32 %v3876, %v3876
        %v4734 = vmul.f32 %v4383, %v4383
        %v4735 = vmul.f32 %v3878, %v3878
        %v4736 = vmul.f32 %v4385, %v4385
        %v4737 = vmul.f32 %v3881, %v3881
        %v4738 = vmul.f32 %v4388, %v4388
        %v4739 = vmul.f32 %v3883, %v3883
        %v4740 = vmul.f32 %v4390, %v4390
        %v4741 = vmul.f32 %v3886, %v3886
        %v4742 = vmul.f32 %v4393, %v4393
        %v4743 = vmul.f32 %v3888, %v3888
        %v4744 = vmul.f32 %v4395, %v4395
        %v4745 = vmul.f32 %v3891, %v3891
        %v4746 = vmul.f32 %v4398, %v4398
        %v4747 = vmul.f32 %v3893, %v3893
        %v4748 = vmul.f32 %v4400, %v4400
        %v4749 = vmul.f32 %v3896, %v3896
        %v4750 = vmul.f32 %v4403, %v4403
        %v4751 = vmul.f32 %v3898, %v3898
        %v4752 = vmul.f32 %v4405, %v4405
        %v4753 = vmul.f32 %v3901, %v3901
        %v4754 = vmul.f32 %v4408, %v4408
        %v4755 = vmul.f32 %v3903, %v3903
        %v4756 = vmul.f32 %v4410, %v4410
        %v4757 = vmul.f32 %v3906, %v3906
        %v4758 = vmul.f32 %v4413, %v4413
        %v4759 = vmul.f32 %v3908, %v3908
        %v4760 = vmul.f32 %v4415, %v4415
        %v4761 = vmul.f32 %v3911, %v3911
        %v4762 = vmul.f32 %v4418, %v4418
        %v4763 = vmul.f32 %v3913, %v3913
        %v4764 = vmul.f32 %v4420, %v4420
        %v4765 = vmul.f32 %v3916, %v3916
        %v4766 = vmul.f32 %v4423, %v4423
        %v4767 = vmul.f32 %v3918, %v3918
        %v4768 = vmul.f32 %v4425, %v4425
        %v4769 = vmul.f32 %v3921, %v3921
        %v4770 = vmul.f32 %v4428, %v4428
        %v4771 = vmul.f32 %v3923, %v3923
        %v4772 = vmul.f32 %v4430, %v4430
        %v4773 = vmul.f32 %v3926, %v3926
        %v4774 = vmul.f32 %v4433, %v4433
        %v4775 = vmul.f32 %v3928, %v3928
        %v4776 = vmul.f32 %v4435, %v4435
        %v4777 = vmul.f32 %v3931, %v3931
        %v4778 = vmul.f32 %v4438, %v4438
        %v4779 = vmul.f32 %v3933, %v3933
        %v4780 = vmul.f32 %v4440, %v4440
        %v4781 = vmul.f32 %v3936, %v3936
        %v4782 = vmul.f32 %v4443, %v4443
        %v4783 = vmul.f32 %v3938, %v3938
        %v4784 = vmul.f32 %v4445, %v4445
        %v4785 = vmul.f32 %v3941, %v3941
        %v4786 = vmul.f32 %v4448, %v4448
        %v4787 = vmul.f32 %v3943, %v3943
        %v4788 = vmul.f32 %v4450, %v4450
        %v4789 = vmul.f32 %v3946, %v3946
        %v4790 = vmul.f32 %v4453, %v4453
        %v4791 = vmul.f32 %v3948, %v3948
        %v4792 = vmul.f32 %v4455, %v4455
        %v4793 = vmul.f32 %v3951, %v3951
        %v4794 = vmul.f32 %v4458, %v4458
        %v4795 = vmul.f32 %v3953, %v3953
        %v4796 = vmul.f32 %v4460, %v4460
        %v4797 = vmul.f32 %v3956, %v3956
        %v4798 = vmul.f32 %v4463, %v4463
        %v4799 = vmul.f32 %v3958, %v3958
        %v4800 = vmul.f32 %v4465, %v4465
        %v4801 = vmul.f32 %v3961, %v3961
        %v4802 = vmul.f32 %v4468, %v4468
        %v4803 = vmul.f32 %v3963, %v3963
        %v4804 = vmul.f32 %v4470, %v4470
        %v4805 = vmul.f32 %v3966, %v3966
        %v4806 = vmul.f32 %v4473, %v4473
        %v4807 = vmul.f32 %v3968, %v3968
        %v4808 = vmul.f32 %v4475, %v4475
        %v4809 = vmul.f32 %v3971, %v3971
        %v4810 = vmul.f32 %v4478, %v4478
        %v4811 = vmul.f32 %v3973, %v3973
        %v4812 = vmul.f32 %v4480, %v4480
        %v4813 = vmul.f32 %v3976, %v3976
        %v4814 = vmul.f32 %v4483, %v4483
        %v4815 = vmul.f32 %v3978, %v3978
        %v4816 = vmul.f32 %v4485, %v4485
        %v4817 = vmul.f32 %v3981, %v3981
        %v4818 = vmul.f32 %v4488, %v4488
        %v4819 = vmul.f32 %v3983, %v3983
        %v4820 = vmul.f32 %v4490, %v4490
        %v4821 = vmul.f32 %v3986, %v3986
        %v4822 = vmul.f32 %v4493, %v4493
        %v4823 = vmul.f32 %v3988, %v3988
        %v4824 = vmul.f32 %v4495, %v4495
        %v4825 = vmul.f32 %v3991, %v3991
        %v4826 = vmul.f32 %v4498, %v4498
        %v4827 = vmul.f32 %v3993, %v3993
        %v4828 = vmul.f32 %v4500, %v4500
        %v4829 = vmul.f32 %v3996, %v3996
        %v4830 = vmul.f32 %v4503, %v4503
        %v4831 = vmul.f32 %v3998, %v3998
        %v4832 = vmul.f32 %v4505, %v4505
        %v4833 = vmul.f32 %v4001, %v4001
        %v4834 = vmul.f32 %v4508, %v4508
        %v4835 = vmul.f32 %v4003, %v4003
        %v4836 = vmul.f32 %v4510, %v4510
        %v4837 = vmul.f32 %v4006, %v4006
        %v4838 = vmul.f32 %v4513, %v4513
        %v4839 = vmul.f32 %v4008, %v4008
        %v4840 = vmul.f32 %v4515, %v4515
        %v4841 = vmul.f32 %v4011, %v4011
        %v4842 = vmul.f32 %v4518, %v4518
        %v4843 = vmul.f32 %v4013, %v4013
        %v4844 = vmul.f32 %v4520, %v4520
        %v4845 = vmul.f32 %v4016, %v4016
        %v4846 = vmul.f32 %v4523, %v4523
        %v4847 = vmul.f32 %v4018, %v4018
        %v4848 = vmul.f32 %v4525, %v4525
        %v4849 = vmul.f32 %v4021, %v4021
        %v4850 = vmul.f32 %v4528, %v4528
        %v4851 = vmul.f32 %v4023, %v4023
        %v4852 = vmul.f32 %v4530, %v4530
        %v4853 = vmul.f32 %v4026, %v4026
        %v4854 = vmul.f32 %v4533, %v4533
        %v4855 = vmul.f32 %v4028, %v4028
        %v4856 = vmul.f32 %v4535, %v4535
        %v4857 = vadd.f32 %v4729, %v4730
        %4858 = vadd.xlane.f32.xlu0 %v4857
        %v4859 = vpop.xlane.xlu0 %4858
        %v4860 = vadd.f32 %v4731, %v4732
        %4861 = vadd.xlane.f32.xlu0 %v4860
        %v4862 = vpop.xlane.xlu0 %4861
        %v4863 = vadd.f32 %v4733, %v4734
        %4864 = vadd.xlane.f32.xlu0 %v4863
        %v4865 = vpop.xlane.xlu0 %4864
        %v4866 = vadd.f32 %v4735, %v4736
        %4867 = vadd.xlane.f32.xlu0 %v4866
        %v4868 = vpop.xlane.xlu0 %4867
        %v4869 = vadd.f32 %v4737, %v4738
        %4870 = vadd.xlane.f32.xlu0 %v4869
        %v4871 = vpop.xlane.xlu0 %4870
        %v4872 = vadd.f32 %v4739, %v4740
        %4873 = vadd.xlane.f32.xlu0 %v4872
        %v4874 = vpop.xlane.xlu0 %4873
        %v4875 = vadd.f32 %v4741, %v4742
        %4876 = vadd.xlane.f32.xlu0 %v4875
        %v4877 = vpop.xlane.xlu0 %4876
        %v4878 = vadd.f32 %v4743, %v4744
        %4879 = vadd.xlane.f32.xlu0 %v4878
        %v4880 = vpop.xlane.xlu0 %4879
        %v4881 = vadd.f32 %v4745, %v4746
        %4882 = vadd.xlane.f32.xlu0 %v4881
        %v4883 = vpop.xlane.xlu0 %4882
        %v4884 = vadd.f32 %v4747, %v4748
        %4885 = vadd.xlane.f32.xlu0 %v4884
        %v4886 = vpop.xlane.xlu0 %4885
        %v4887 = vadd.f32 %v4749, %v4750
        %4888 = vadd.xlane.f32.xlu0 %v4887
        %v4889 = vpop.xlane.xlu0 %4888
        %v4890 = vadd.f32 %v4751, %v4752
        %4891 = vadd.xlane.f32.xlu0 %v4890
        %v4892 = vpop.xlane.xlu0 %4891
        %v4893 = vadd.f32 %v4753, %v4754
        %4894 = vadd.xlane.f32.xlu0 %v4893
        %v4895 = vpop.xlane.xlu0 %4894
        %v4896 = vadd.f32 %v4755, %v4756
        %4897 = vadd.xlane.f32.xlu0 %v4896
        %v4898 = vpop.xlane.xlu0 %4897
        %v4899 = vadd.f32 %v4757, %v4758
        %4900 = vadd.xlane.f32.xlu0 %v4899
        %v4901 = vpop.xlane.xlu0 %4900
        %v4902 = vadd.f32 %v4759, %v4760
        %4903 = vadd.xlane.f32.xlu0 %v4902
        %v4904 = vpop.xlane.xlu0 %4903
        %v4905 = vadd.f32 %v4761, %v4762
        %4906 = vadd.xlane.f32.xlu0 %v4905
        %v4907 = vpop.xlane.xlu0 %4906
        %v4908 = vadd.f32 %v4763, %v4764
        %4909 = vadd.xlane.f32.xlu0 %v4908
        %v4910 = vpop.xlane.xlu0 %4909
        %v4911 = vadd.f32 %v4765, %v4766
        %4912 = vadd.xlane.f32.xlu0 %v4911
        %v4913 = vpop.xlane.xlu0 %4912
        %v4914 = vadd.f32 %v4767, %v4768
        %4915 = vadd.xlane.f32.xlu0 %v4914
        %v4916 = vpop.xlane.xlu0 %4915
        %v4917 = vadd.f32 %v4769, %v4770
        %4918 = vadd.xlane.f32.xlu0 %v4917
        %v4919 = vpop.xlane.xlu0 %4918
        %v4920 = vadd.f32 %v4771, %v4772
        %4921 = vadd.xlane.f32.xlu0 %v4920
        %v4922 = vpop.xlane.xlu0 %4921
        %v4923 = vadd.f32 %v4773, %v4774
        %4924 = vadd.xlane.f32.xlu0 %v4923
        %v4925 = vpop.xlane.xlu0 %4924
        %v4926 = vadd.f32 %v4775, %v4776
        %4927 = vadd.xlane.f32.xlu0 %v4926
        %v4928 = vpop.xlane.xlu0 %4927
        %v4929 = vadd.f32 %v4777, %v4778
        %4930 = vadd.xlane.f32.xlu0 %v4929
        %v4931 = vpop.xlane.xlu0 %4930
        %v4932 = vadd.f32 %v4779, %v4780
        %4933 = vadd.xlane.f32.xlu0 %v4932
        %v4934 = vpop.xlane.xlu0 %4933
        %v4935 = vadd.f32 %v4781, %v4782
        %4936 = vadd.xlane.f32.xlu0 %v4935
        %v4937 = vpop.xlane.xlu0 %4936
        %v4938 = vadd.f32 %v4783, %v4784
        %4939 = vadd.xlane.f32.xlu0 %v4938
        %v4940 = vpop.xlane.xlu0 %4939
        %v4941 = vadd.f32 %v4785, %v4786
        %4942 = vadd.xlane.f32.xlu0 %v4941
        %v4943 = vpop.xlane.xlu0 %4942
        %v4944 = vadd.f32 %v4787, %v4788
        %4945 = vadd.xlane.f32.xlu0 %v4944
        %v4946 = vpop.xlane.xlu0 %4945
        %v4947 = vadd.f32 %v4789, %v4790
        %4948 = vadd.xlane.f32.xlu0 %v4947
        %v4949 = vpop.xlane.xlu0 %4948
        %v4950 = vadd.f32 %v4791, %v4792
        %4951 = vadd.xlane.f32.xlu0 %v4950
        %v4952 = vpop.xlane.xlu0 %4951
        %v4953 = vadd.f32 %v4793, %v4794
        %4954 = vadd.xlane.f32.xlu0 %v4953
        %v4955 = vpop.xlane.xlu0 %4954
        %v4956 = vadd.f32 %v4795, %v4796
        %4957 = vadd.xlane.f32.xlu0 %v4956
        %v4958 = vpop.xlane.xlu0 %4957
        %v4959 = vadd.f32 %v4797, %v4798
        %4960 = vadd.xlane.f32.xlu0 %v4959
        %v4961 = vpop.xlane.xlu0 %4960
        %v4962 = vadd.f32 %v4799, %v4800
        %4963 = vadd.xlane.f32.xlu0 %v4962
        %v4964 = vpop.xlane.xlu0 %4963
        %v4965 = vadd.f32 %v4801, %v4802
        %4966 = vadd.xlane.f32.xlu0 %v4965
        %v4967 = vpop.xlane.xlu0 %4966
        %v4968 = vadd.f32 %v4803, %v4804
        %4969 = vadd.xlane.f32.xlu0 %v4968
        %v4970 = vpop.xlane.xlu0 %4969
        %v4971 = vadd.f32 %v4805, %v4806
        %4972 = vadd.xlane.f32.xlu0 %v4971
        %v4973 = vpop.xlane.xlu0 %4972
        %v4974 = vadd.f32 %v4807, %v4808
        %4975 = vadd.xlane.f32.xlu0 %v4974
        %v4976 = vpop.xlane.xlu0 %4975
        %v4977 = vadd.f32 %v4809, %v4810
        %4978 = vadd.xlane.f32.xlu0 %v4977
        %v4979 = vpop.xlane.xlu0 %4978
        %v4980 = vadd.f32 %v4811, %v4812
        %4981 = vadd.xlane.f32.xlu0 %v4980
        %v4982 = vpop.xlane.xlu0 %4981
        %v4983 = vadd.f32 %v4813, %v4814
        %4984 = vadd.xlane.f32.xlu0 %v4983
        %v4985 = vpop.xlane.xlu0 %4984
        %v4986 = vadd.f32 %v4815, %v4816
        %4987 = vadd.xlane.f32.xlu0 %v4986
        %v4988 = vpop.xlane.xlu0 %4987
        %v4989 = vadd.f32 %v4817, %v4818
        %4990 = vadd.xlane.f32.xlu0 %v4989
        %v4991 = vpop.xlane.xlu0 %4990
        %v4992 = vadd.f32 %v4819, %v4820
        %4993 = vadd.xlane.f32.xlu0 %v4992
        %v4994 = vpop.xlane.xlu0 %4993
        %v4995 = vadd.f32 %v4821, %v4822
        %4996 = vadd.xlane.f32.xlu0 %v4995
        %v4997 = vpop.xlane.xlu0 %4996
        %v4998 = vadd.f32 %v4823, %v4824
        %4999 = vadd.xlane.f32.xlu0 %v4998
        %v5000 = vpop.xlane.xlu0 %4999
        %v5001 = vadd.f32 %v4825, %v4826
        %5002 = vadd.xlane.f32.xlu0 %v5001
        %v5003 = vpop.xlane.xlu0 %5002
        %v5004 = vadd.f32 %v4827, %v4828
        %5005 = vadd.xlane.f32.xlu0 %v5004
        %v5006 = vpop.xlane.xlu0 %5005
        %v5007 = vadd.f32 %v4829, %v4830
        %5008 = vadd.xlane.f32.xlu0 %v5007
        %v5009 = vpop.xlane.xlu0 %5008
        %v5010 = vadd.f32 %v4831, %v4832
        %5011 = vadd.xlane.f32.xlu0 %v5010
        %v5012 = vpop.xlane.xlu0 %5011
        %v5013 = vadd.f32 %v4833, %v4834
        %5014 = vadd.xlane.f32.xlu0 %v5013
        %v5015 = vpop.xlane.xlu0 %5014
        %v5016 = vadd.f32 %v4835, %v4836
        %5017 = vadd.xlane.f32.xlu0 %v5016
        %v5018 = vpop.xlane.xlu0 %5017
        %v5019 = vadd.f32 %v4837, %v4838
        %5020 = vadd.xlane.f32.xlu0 %v5019
        %v5021 = vpop.xlane.xlu0 %5020
        %v5022 = vadd.f32 %v4839, %v4840
        %5023 = vadd.xlane.f32.xlu0 %v5022
        %v5024 = vpop.xlane.xlu0 %5023
        %v5025 = vadd.f32 %v4841, %v4842
        %5026 = vadd.xlane.f32.xlu0 %v5025
        %v5027 = vpop.xlane.xlu0 %5026
        %v5028 = vadd.f32 %v4843, %v4844
        %5029 = vadd.xlane.f32.xlu0 %v5028
        %v5030 = vpop.xlane.xlu0 %5029
        %v5031 = vadd.f32 %v4845, %v4846
        %5032 = vadd.xlane.f32.xlu0 %v5031
        %v5033 = vpop.xlane.xlu0 %5032
        %v5034 = vadd.f32 %v4847, %v4848
        %5035 = vadd.xlane.f32.xlu0 %v5034
        %v5036 = vpop.xlane.xlu0 %5035
        %v5037 = vadd.f32 %v4849, %v4850
        %5038 = vadd.xlane.f32.xlu0 %v5037
        %v5039 = vpop.xlane.xlu0 %5038
        %v5040 = vadd.f32 %v4851, %v4852
        %5041 = vadd.xlane.f32.xlu0 %v5040
        %v5042 = vpop.xlane.xlu0 %5041
        %v5043 = vadd.f32 %v4853, %v4854
        %5044 = vadd.xlane.f32.xlu0 %v5043
        %v5045 = vpop.xlane.xlu0 %5044
        %v5046 = vadd.f32 %v4855, %v4856
        %5047 = vadd.xlane.f32.xlu0 %v5046
        %v5048 = vpop.xlane.xlu0 %5047
        %v5049 = vmul.f32 %v4539, 0.00390625
        %v5050 = vmul.f32 %v4542, 0.00390625
        %v5051 = vmul.f32 %v4545, 0.00390625
        %v5052 = vmul.f32 %v4548, 0.00390625
        %v5053 = vmul.f32 %v4551, 0.00390625
        %v5054 = vmul.f32 %v4554, 0.00390625
        %v5055 = vmul.f32 %v4557, 0.00390625
        %v5056 = vmul.f32 %v4560, 0.00390625
        %v5057 = vmul.f32 %v4563, 0.00390625
        %v5058 = vmul.f32 %v4566, 0.00390625
        %v5059 = vmul.f32 %v4569, 0.00390625
        %v5060 = vmul.f32 %v4572, 0.00390625
        %v5061 = vmul.f32 %v4575, 0.00390625
        %v5062 = vmul.f32 %v4578, 0.00390625
        %v5063 = vmul.f32 %v4581, 0.00390625
        %v5064 = vmul.f32 %v4584, 0.00390625
        %v5065 = vmul.f32 %v4587, 0.00390625
        %v5066 = vmul.f32 %v4590, 0.00390625
        %v5067 = vmul.f32 %v4593, 0.00390625
        %v5068 = vmul.f32 %v4596, 0.00390625
        %v5069 = vmul.f32 %v4599, 0.00390625
        %v5070 = vmul.f32 %v4602, 0.00390625
        %v5071 = vmul.f32 %v4605, 0.00390625
        %v5072 = vmul.f32 %v4608, 0.00390625
        %v5073 = vmul.f32 %v4611, 0.00390625
        %v5074 = vmul.f32 %v4614, 0.00390625
        %v5075 = vmul.f32 %v4617, 0.00390625
        %v5076 = vmul.f32 %v4620, 0.00390625
        %v5077 = vmul.f32 %v4623, 0.00390625
        %v5078 = vmul.f32 %v4626, 0.00390625
        %v5079 = vmul.f32 %v4629, 0.00390625
        %v5080 = vmul.f32 %v4632, 0.00390625
        %v5081 = vmul.f32 %v4635, 0.00390625
        %v5082 = vmul.f32 %v4638, 0.00390625
        %v5083 = vmul.f32 %v4641, 0.00390625
        %v5084 = vmul.f32 %v4644, 0.00390625
        %v5085 = vmul.f32 %v4647, 0.00390625
        %v5086 = vmul.f32 %v4650, 0.00390625
        %v5087 = vmul.f32 %v4653, 0.00390625
        %v5088 = vmul.f32 %v4656, 0.00390625
        %v5089 = vmul.f32 %v4659, 0.00390625
        %v5090 = vmul.f32 %v4662, 0.00390625
        %v5091 = vmul.f32 %v4665, 0.00390625
        %v5092 = vmul.f32 %v4668, 0.00390625
        %v5093 = vmul.f32 %v4671, 0.00390625
        %v5094 = vmul.f32 %v4674, 0.00390625
        %v5095 = vmul.f32 %v4677, 0.00390625
        %v5096 = vmul.f32 %v4680, 0.00390625
        %v5097 = vmul.f32 %v4683, 0.00390625
        %v5098 = vmul.f32 %v4686, 0.00390625
        %v5099 = vmul.f32 %v4689, 0.00390625
        %v5100 = vmul.f32 %v4692, 0.00390625
        %v5101 = vmul.f32 %v4695, 0.00390625
        %v5102 = vmul.f32 %v4698, 0.00390625
        %v5103 = vmul.f32 %v4701, 0.00390625
        %v5104 = vmul.f32 %v4704, 0.00390625
        %v5105 = vmul.f32 %v4707, 0.00390625
        %v5106 = vmul.f32 %v4710, 0.00390625
        %v5107 = vmul.f32 %v4713, 0.00390625
        %v5108 = vmul.f32 %v4716, 0.00390625
        %v5109 = vmul.f32 %v4719, 0.00390625
        %v5110 = vmul.f32 %v4722, 0.00390625
        %v5111 = vmul.f32 %v4725, 0.00390625
        %v5112 = vmul.f32 %v4728, 0.00390625
        %v5113 = vmul.f32 %v4859, 0.00390625
        %v5114 = vmul.f32 %v4862, 0.00390625
        %v5115 = vmul.f32 %v4865, 0.00390625
        %v5116 = vmul.f32 %v4868, 0.00390625
        %v5117 = vmul.f32 %v4871, 0.00390625
        %v5118 = vmul.f32 %v4874, 0.00390625
        %v5119 = vmul.f32 %v4877, 0.00390625
        %v5120 = vmul.f32 %v4880, 0.00390625
        %v5121 = vmul.f32 %v4883, 0.00390625
        %v5122 = vmul.f32 %v4886, 0.00390625
        %v5123 = vmul.f32 %v4889, 0.00390625
        %v5124 = vmul.f32 %v4892, 0.00390625
        %v5125 = vmul.f32 %v4895, 0.00390625
        %v5126 = vmul.f32 %v4898, 0.00390625
        %v5127 = vmul.f32 %v4901, 0.00390625
        %v5128 = vmul.f32 %v4904, 0.00390625
        %v5129 = vmul.f32 %v4907, 0.00390625
        %v5130 = vmul.f32 %v4910, 0.00390625
        %v5131 = vmul.f32 %v4913, 0.00390625
        %v5132 = vmul.f32 %v4916, 0.00390625
        %v5133 = vmul.f32 %v4919, 0.00390625
        %v5134 = vmul.f32 %v4922, 0.00390625
        %v5135 = vmul.f32 %v4925, 0.00390625
        %v5136 = vmul.f32 %v4928, 0.00390625
        %v5137 = vmul.f32 %v4931, 0.00390625
        %v5138 = vmul.f32 %v4934, 0.00390625
        %v5139 = vmul.f32 %v4937, 0.00390625
        %v5140 = vmul.f32 %v4940, 0.00390625
        %v5141 = vmul.f32 %v4943, 0.00390625
        %v5142 = vmul.f32 %v4946, 0.00390625
        %v5143 = vmul.f32 %v4949, 0.00390625
        %v5144 = vmul.f32 %v4952, 0.00390625
        %v5145 = vmul.f32 %v4955, 0.00390625
        %v5146 = vmul.f32 %v4958, 0.00390625
        %v5147 = vmul.f32 %v4961, 0.00390625
        %v5148 = vmul.f32 %v4964, 0.00390625
        %v5149 = vmul.f32 %v4967, 0.00390625
        %v5150 = vmul.f32 %v4970, 0.00390625
        %v5151 = vmul.f32 %v4973, 0.00390625
        %v5152 = vmul.f32 %v4976, 0.00390625
        %v5153 = vmul.f32 %v4979, 0.00390625
        %v5154 = vmul.f32 %v4982, 0.00390625
        %v5155 = vmul.f32 %v4985, 0.00390625
        %v5156 = vmul.f32 %v4988, 0.00390625
        %v5157 = vmul.f32 %v4991, 0.00390625
        %v5158 = vmul.f32 %v4994, 0.00390625
        %v5159 = vmul.f32 %v4997, 0.00390625
        %v5160 = vmul.f32 %v5000, 0.00390625
        %v5161 = vmul.f32 %v5003, 0.00390625
        %v5162 = vmul.f32 %v5006, 0.00390625
        %v5163 = vmul.f32 %v5009, 0.00390625
        %v5164 = vmul.f32 %v5012, 0.00390625
        %v5165 = vmul.f32 %v5015, 0.00390625
        %v5166 = vmul.f32 %v5018, 0.00390625
        %v5167 = vmul.f32 %v5021, 0.00390625
        %v5168 = vmul.f32 %v5024, 0.00390625
        %v5169 = vmul.f32 %v5027, 0.00390625
        %v5170 = vmul.f32 %v5030, 0.00390625
        %v5171 = vmul.f32 %v5033, 0.00390625
        %v5172 = vmul.f32 %v5036, 0.00390625
        %v5173 = vmul.f32 %v5039, 0.00390625
        %v5174 = vmul.f32 %v5042, 0.00390625
        %v5175 = vmul.f32 %v5045, 0.00390625
        %v5176 = vmul.f32 %v5048, 0.00390625
        %v5177 = vmul.f32 %v5049, %v5049
        %v5178 = vmul.f32 %v5050, %v5050
        %v5179 = vmul.f32 %v5051, %v5051
        %v5180 = vmul.f32 %v5052, %v5052
        %v5181 = vmul.f32 %v5053, %v5053
        %v5182 = vmul.f32 %v5054, %v5054
        %v5183 = vmul.f32 %v5055, %v5055
        %v5184 = vmul.f32 %v5056, %v5056
        %v5185 = vmul.f32 %v5057, %v5057
        %v5186 = vmul.f32 %v5058, %v5058
        %v5187 = vmul.f32 %v5059, %v5059
        %v5188 = vmul.f32 %v5060, %v5060
        %v5189 = vmul.f32 %v5061, %v5061
        %v5190 = vmul.f32 %v5062, %v5062
        %v5191 = vmul.f32 %v5063, %v5063
        %v5192 = vmul.f32 %v5064, %v5064
        %v5193 = vmul.f32 %v5065, %v5065
        %v5194 = vmul.f32 %v5066, %v5066
        %v5195 = vmul.f32 %v5067, %v5067
        %v5196 = vmul.f32 %v5068, %v5068
        %v5197 = vmul.f32 %v5069, %v5069
        %v5198 = vmul.f32 %v5070, %v5070
        %v5199 = vmul.f32 %v5071, %v5071
        %v5200 = vmul.f32 %v5072, %v5072
        %v5201 = vmul.f32 %v5073, %v5073
        %v5202 = vmul.f32 %v5074, %v5074
        %v5203 = vmul.f32 %v5075, %v5075
        %v5204 = vmul.f32 %v5076, %v5076
        %v5205 = vmul.f32 %v5077, %v5077
        %v5206 = vmul.f32 %v5078, %v5078
        %v5207 = vmul.f32 %v5079, %v5079
        %v5208 = vmul.f32 %v5080, %v5080
        %v5209 = vmul.f32 %v5081, %v5081
        %v5210 = vmul.f32 %v5082, %v5082
        %v5211 = vmul.f32 %v5083, %v5083
        %v5212 = vmul.f32 %v5084, %v5084
        %v5213 = vmul.f32 %v5085, %v5085
        %v5214 = vmul.f32 %v5086, %v5086
        %v5215 = vmul.f32 %v5087, %v5087
        %v5216 = vmul.f32 %v5088, %v5088
        %v5217 = vmul.f32 %v5089, %v5089
        %v5218 = vmul.f32 %v5090, %v5090
        %v5219 = vmul.f32 %v5091, %v5091
        %v5220 = vmul.f32 %v5092, %v5092
        %v5221 = vmul.f32 %v5093, %v5093
        %v5222 = vmul.f32 %v5094, %v5094
        %v5223 = vmul.f32 %v5095, %v5095
        %v5224 = vmul.f32 %v5096, %v5096
        %v5225 = vmul.f32 %v5097, %v5097
        %v5226 = vmul.f32 %v5098, %v5098
        %v5227 = vmul.f32 %v5099, %v5099
        %v5228 = vmul.f32 %v5100, %v5100
        %v5229 = vmul.f32 %v5101, %v5101
        %v5230 = vmul.f32 %v5102, %v5102
        %v5231 = vmul.f32 %v5103, %v5103
        %v5232 = vmul.f32 %v5104, %v5104
        %v5233 = vmul.f32 %v5105, %v5105
        %v5234 = vmul.f32 %v5106, %v5106
        %v5235 = vmul.f32 %v5107, %v5107
        %v5236 = vmul.f32 %v5108, %v5108
        %v5237 = vmul.f32 %v5109, %v5109
        %v5238 = vmul.f32 %v5110, %v5110
        %v5239 = vmul.f32 %v5111, %v5111
        %v5240 = vmul.f32 %v5112, %v5112
        %v5241 = vsub.f32 %v5113, %v5177
        %v5242 = vsub.f32 %v5114, %v5178
        %v5243 = vsub.f32 %v5115, %v5179
        %v5244 = vsub.f32 %v5116, %v5180
        %v5245 = vsub.f32 %v5117, %v5181
        %v5246 = vsub.f32 %v5118, %v5182
        %v5247 = vsub.f32 %v5119, %v5183
        %v5248 = vsub.f32 %v5120, %v5184
        %v5249 = vsub.f32 %v5121, %v5185
        %v5250 = vsub.f32 %v5122, %v5186
        %v5251 = vsub.f32 %v5123, %v5187
        %v5252 = vsub.f32 %v5124, %v5188
        %v5253 = vsub.f32 %v5125, %v5189
        %v5254 = vsub.f32 %v5126, %v5190
        %v5255 = vsub.f32 %v5127, %v5191
        %v5256 = vsub.f32 %v5128, %v5192
        %v5257 = vsub.f32 %v5129, %v5193
        %v5258 = vsub.f32 %v5130, %v5194
        %v5259 = vsub.f32 %v5131, %v5195
        %v5260 = vsub.f32 %v5132, %v5196
        %v5261 = vsub.f32 %v5133, %v5197
        %v5262 = vsub.f32 %v5134, %v5198
        %v5263 = vsub.f32 %v5135, %v5199
        %v5264 = vsub.f32 %v5136, %v5200
        %v5265 = vsub.f32 %v5137, %v5201
        %v5266 = vsub.f32 %v5138, %v5202
        %v5267 = vsub.f32 %v5139, %v5203
        %v5268 = vsub.f32 %v5140, %v5204
        %v5269 = vsub.f32 %v5141, %v5205
        %v5270 = vsub.f32 %v5142, %v5206
        %v5271 = vsub.f32 %v5143, %v5207
        %v5272 = vsub.f32 %v5144, %v5208
        %v5273 = vsub.f32 %v5145, %v5209
        %v5274 = vsub.f32 %v5146, %v5210
        %v5275 = vsub.f32 %v5147, %v5211
        %v5276 = vsub.f32 %v5148, %v5212
        %v5277 = vsub.f32 %v5149, %v5213
        %v5278 = vsub.f32 %v5150, %v5214
        %v5279 = vsub.f32 %v5151, %v5215
        %v5280 = vsub.f32 %v5152, %v5216
        %v5281 = vsub.f32 %v5153, %v5217
        %v5282 = vsub.f32 %v5154, %v5218
        %v5283 = vsub.f32 %v5155, %v5219
        %v5284 = vsub.f32 %v5156, %v5220
        %v5285 = vsub.f32 %v5157, %v5221
        %v5286 = vsub.f32 %v5158, %v5222
        %v5287 = vsub.f32 %v5159, %v5223
        %v5288 = vsub.f32 %v5160, %v5224
        %v5289 = vsub.f32 %v5161, %v5225
        %v5290 = vsub.f32 %v5162, %v5226
        %v5291 = vsub.f32 %v5163, %v5227
        %v5292 = vsub.f32 %v5164, %v5228
        %v5293 = vsub.f32 %v5165, %v5229
        %v5294 = vsub.f32 %v5166, %v5230
        %v5295 = vsub.f32 %v5167, %v5231
        %v5296 = vsub.f32 %v5168, %v5232
        %v5297 = vsub.f32 %v5169, %v5233
        %v5298 = vsub.f32 %v5170, %v5234
        %v5299 = vsub.f32 %v5171, %v5235
        %v5300 = vsub.f32 %v5172, %v5236
        %v5301 = vsub.f32 %v5173, %v5237
        %v5302 = vsub.f32 %v5174, %v5238
        %v5303 = vsub.f32 %v5175, %v5239
        %v5304 = vsub.f32 %v5176, %v5240
        %v5305 = vmax.f32 %v5241, 0.0
        %v5306 = vmax.f32 %v5242, 0.0
        %v5307 = vmax.f32 %v5243, 0.0
        %v5308 = vmax.f32 %v5244, 0.0
        %v5309 = vmax.f32 %v5245, 0.0
        %v5310 = vmax.f32 %v5246, 0.0
        %v5311 = vmax.f32 %v5247, 0.0
        %v5312 = vmax.f32 %v5248, 0.0
        %v5313 = vmax.f32 %v5249, 0.0
        %v5314 = vmax.f32 %v5250, 0.0
        %v5315 = vmax.f32 %v5251, 0.0
        %v5316 = vmax.f32 %v5252, 0.0
        %v5317 = vmax.f32 %v5253, 0.0
        %v5318 = vmax.f32 %v5254, 0.0
        %v5319 = vmax.f32 %v5255, 0.0
        %v5320 = vmax.f32 %v5256, 0.0
        %v5321 = vmax.f32 %v5257, 0.0
        %v5322 = vmax.f32 %v5258, 0.0
        %v5323 = vmax.f32 %v5259, 0.0
        %v5324 = vmax.f32 %v5260, 0.0
        %v5325 = vmax.f32 %v5261, 0.0
        %v5326 = vmax.f32 %v5262, 0.0
        %v5327 = vmax.f32 %v5263, 0.0
        %v5328 = vmax.f32 %v5264, 0.0
        %v5329 = vmax.f32 %v5265, 0.0
        %v5330 = vmax.f32 %v5266, 0.0
        %v5331 = vmax.f32 %v5267, 0.0
        %v5332 = vmax.f32 %v5268, 0.0
        %v5333 = vmax.f32 %v5269, 0.0
        %v5334 = vmax.f32 %v5270, 0.0
        %v5335 = vmax.f32 %v5271, 0.0
        %v5336 = vmax.f32 %v5272, 0.0
        %v5337 = vmax.f32 %v5273, 0.0
        %v5338 = vmax.f32 %v5274, 0.0
        %v5339 = vmax.f32 %v5275, 0.0
        %v5340 = vmax.f32 %v5276, 0.0
        %v5341 = vmax.f32 %v5277, 0.0
        %v5342 = vmax.f32 %v5278, 0.0
        %v5343 = vmax.f32 %v5279, 0.0
        %v5344 = vmax.f32 %v5280, 0.0
        %v5345 = vmax.f32 %v5281, 0.0
        %v5346 = vmax.f32 %v5282, 0.0
        %v5347 = vmax.f32 %v5283, 0.0
        %v5348 = vmax.f32 %v5284, 0.0
        %v5349 = vmax.f32 %v5285, 0.0
        %v5350 = vmax.f32 %v5286, 0.0
        %v5351 = vmax.f32 %v5287, 0.0
        %v5352 = vmax.f32 %v5288, 0.0
        %v5353 = vmax.f32 %v5289, 0.0
        %v5354 = vmax.f32 %v5290, 0.0
        %v5355 = vmax.f32 %v5291, 0.0
        %v5356 = vmax.f32 %v5292, 0.0
        %v5357 = vmax.f32 %v5293, 0.0
        %v5358 = vmax.f32 %v5294, 0.0
        %v5359 = vmax.f32 %v5295, 0.0
        %v5360 = vmax.f32 %v5296, 0.0
        %v5361 = vmax.f32 %v5297, 0.0
        %v5362 = vmax.f32 %v5298, 0.0
        %v5363 = vmax.f32 %v5299, 0.0
        %v5364 = vmax.f32 %v5300, 0.0
        %v5365 = vmax.f32 %v5301, 0.0
        %v5366 = vmax.f32 %v5302, 0.0
        %v5367 = vmax.f32 %v5303, 0.0
        %v5368 = vmax.f32 %v5304, 0.0
        %v5369 = vsub.f32 %v3871, %v5049
        %v5370 = vsub.f32 %v4378, %v5049
        %v5371 = vsub.f32 %v3873, %v5050
        %v5372 = vsub.f32 %v4380, %v5050
        %v5373 = vsub.f32 %v3876, %v5051
        %v5374 = vsub.f32 %v4383, %v5051
        %v5375 = vsub.f32 %v3878, %v5052
        %v5376 = vsub.f32 %v4385, %v5052
        %v5377 = vsub.f32 %v3881, %v5053
        %v5378 = vsub.f32 %v4388, %v5053
        %v5379 = vsub.f32 %v3883, %v5054
        %v5380 = vsub.f32 %v4390, %v5054
        %v5381 = vsub.f32 %v3886, %v5055
        %v5382 = vsub.f32 %v4393, %v5055
        %v5383 = vsub.f32 %v3888, %v5056
        %v5384 = vsub.f32 %v4395, %v5056
        %v5385 = vsub.f32 %v3891, %v5057
        %v5386 = vsub.f32 %v4398, %v5057
        %v5387 = vsub.f32 %v3893, %v5058
        %v5388 = vsub.f32 %v4400, %v5058
        %v5389 = vsub.f32 %v3896, %v5059
        %v5390 = vsub.f32 %v4403, %v5059
        %v5391 = vsub.f32 %v3898, %v5060
        %v5392 = vsub.f32 %v4405, %v5060
        %v5393 = vsub.f32 %v3901, %v5061
        %v5394 = vsub.f32 %v4408, %v5061
        %v5395 = vsub.f32 %v3903, %v5062
        %v5396 = vsub.f32 %v4410, %v5062
        %v5397 = vsub.f32 %v3906, %v5063
        %v5398 = vsub.f32 %v4413, %v5063
        %v5399 = vsub.f32 %v3908, %v5064
        %v5400 = vsub.f32 %v4415, %v5064
        %v5401 = vsub.f32 %v3911, %v5065
        %v5402 = vsub.f32 %v4418, %v5065
        %v5403 = vsub.f32 %v3913, %v5066
        %v5404 = vsub.f32 %v4420, %v5066
        %v5405 = vsub.f32 %v3916, %v5067
        %v5406 = vsub.f32 %v4423, %v5067
        %v5407 = vsub.f32 %v3918, %v5068
        %v5408 = vsub.f32 %v4425, %v5068
        %v5409 = vsub.f32 %v3921, %v5069
        %v5410 = vsub.f32 %v4428, %v5069
        %v5411 = vsub.f32 %v3923, %v5070
        %v5412 = vsub.f32 %v4430, %v5070
        %v5413 = vsub.f32 %v3926, %v5071
        %v5414 = vsub.f32 %v4433, %v5071
        %v5415 = vsub.f32 %v3928, %v5072
        %v5416 = vsub.f32 %v4435, %v5072
        %v5417 = vsub.f32 %v3931, %v5073
        %v5418 = vsub.f32 %v4438, %v5073
        %v5419 = vsub.f32 %v3933, %v5074
        %v5420 = vsub.f32 %v4440, %v5074
        %v5421 = vsub.f32 %v3936, %v5075
        %v5422 = vsub.f32 %v4443, %v5075
        %v5423 = vsub.f32 %v3938, %v5076
        %v5424 = vsub.f32 %v4445, %v5076
        %v5425 = vsub.f32 %v3941, %v5077
        %v5426 = vsub.f32 %v4448, %v5077
        %v5427 = vsub.f32 %v3943, %v5078
        %v5428 = vsub.f32 %v4450, %v5078
        %v5429 = vsub.f32 %v3946, %v5079
        %v5430 = vsub.f32 %v4453, %v5079
        %v5431 = vsub.f32 %v3948, %v5080
        %v5432 = vsub.f32 %v4455, %v5080
        %v5433 = vsub.f32 %v3951, %v5081
        %v5434 = vsub.f32 %v4458, %v5081
        %v5435 = vsub.f32 %v3953, %v5082
        %v5436 = vsub.f32 %v4460, %v5082
        %v5437 = vsub.f32 %v3956, %v5083
        %v5438 = vsub.f32 %v4463, %v5083
        %v5439 = vsub.f32 %v3958, %v5084
        %v5440 = vsub.f32 %v4465, %v5084
        %v5441 = vsub.f32 %v3961, %v5085
        %v5442 = vsub.f32 %v4468, %v5085
        %v5443 = vsub.f32 %v3963, %v5086
        %v5444 = vsub.f32 %v4470, %v5086
        %v5445 = vsub.f32 %v3966, %v5087
        %v5446 = vsub.f32 %v4473, %v5087
        %v5447 = vsub.f32 %v3968, %v5088
        %v5448 = vsub.f32 %v4475, %v5088
        %v5449 = vsub.f32 %v3971, %v5089
        %v5450 = vsub.f32 %v4478, %v5089
        %v5451 = vsub.f32 %v3973, %v5090
        %v5452 = vsub.f32 %v4480, %v5090
        %v5453 = vsub.f32 %v3976, %v5091
        %v5454 = vsub.f32 %v4483, %v5091
        %v5455 = vsub.f32 %v3978, %v5092
        %v5456 = vsub.f32 %v4485, %v5092
        %v5457 = vsub.f32 %v3981, %v5093
        %v5458 = vsub.f32 %v4488, %v5093
        %v5459 = vsub.f32 %v3983, %v5094
        %v5460 = vsub.f32 %v4490, %v5094
        %v5461 = vsub.f32 %v3986, %v5095
        %v5462 = vsub.f32 %v4493, %v5095
        %v5463 = vsub.f32 %v3988, %v5096
        %v5464 = vsub.f32 %v4495, %v5096
        %v5465 = vsub.f32 %v3991, %v5097
        %v5466 = vsub.f32 %v4498, %v5097
        %v5467 = vsub.f32 %v3993, %v5098
        %v5468 = vsub.f32 %v4500, %v5098
        %v5469 = vsub.f32 %v3996, %v5099
        %v5470 = vsub.f32 %v4503, %v5099
        %v5471 = vsub.f32 %v3998, %v5100
        %v5472 = vsub.f32 %v4505, %v5100
        %v5473 = vsub.f32 %v4001, %v5101
        %v5474 = vsub.f32 %v4508, %v5101
        %v5475 = vsub.f32 %v4003, %v5102
        %v5476 = vsub.f32 %v4510, %v5102
        %v5477 = vsub.f32 %v4006, %v5103
        %v5478 = vsub.f32 %v4513, %v5103
        %v5479 = vsub.f32 %v4008, %v5104
        %v5480 = vsub.f32 %v4515, %v5104
        %v5481 = vsub.f32 %v4011, %v5105
        %v5482 = vsub.f32 %v4518, %v5105
        %v5483 = vsub.f32 %v4013, %v5106
        %v5484 = vsub.f32 %v4520, %v5106
        %v5485 = vsub.f32 %v4016, %v5107
        %v5486 = vsub.f32 %v4523, %v5107
        %v5487 = vsub.f32 %v4018, %v5108
        %v5488 = vsub.f32 %v4525, %v5108
        %v5489 = vsub.f32 %v4021, %v5109
        %v5490 = vsub.f32 %v4528, %v5109
        %v5491 = vsub.f32 %v4023, %v5110
        %v5492 = vsub.f32 %v4530, %v5110
        %v5493 = vsub.f32 %v4026, %v5111
        %v5494 = vsub.f32 %v4533, %v5111
        %v5495 = vsub.f32 %v4028, %v5112
        %v5496 = vsub.f32 %v4535, %v5112
        %v5497 = vadd.f32 %v5305, 1e-12
        %v5498 = vadd.f32 %v5306, 1e-12
        %v5499 = vadd.f32 %v5307, 1e-12
        %v5500 = vadd.f32 %v5308, 1e-12
        %v5501 = vadd.f32 %v5309, 1e-12
        %v5502 = vadd.f32 %v5310, 1e-12
        %v5503 = vadd.f32 %v5311, 1e-12
        %v5504 = vadd.f32 %v5312, 1e-12
        %v5505 = vadd.f32 %v5313, 1e-12
        %v5506 = vadd.f32 %v5314, 1e-12
        %v5507 = vadd.f32 %v5315, 1e-12
        %v5508 = vadd.f32 %v5316, 1e-12
        %v5509 = vadd.f32 %v5317, 1e-12
        %v5510 = vadd.f32 %v5318, 1e-12
        %v5511 = vadd.f32 %v5319, 1e-12
        %v5512 = vadd.f32 %v5320, 1e-12
        %v5513 = vadd.f32 %v5321, 1e-12
        %v5514 = vadd.f32 %v5322, 1e-12
        %v5515 = vadd.f32 %v5323, 1e-12
        %v5516 = vadd.f32 %v5324, 1e-12
        %v5517 = vadd.f32 %v5325, 1e-12
        %v5518 = vadd.f32 %v5326, 1e-12
        %v5519 = vadd.f32 %v5327, 1e-12
        %v5520 = vadd.f32 %v5328, 1e-12
        %v5521 = vadd.f32 %v5329, 1e-12
        %v5522 = vadd.f32 %v5330, 1e-12
        %v5523 = vadd.f32 %v5331, 1e-12
        %v5524 = vadd.f32 %v5332, 1e-12
        %v5525 = vadd.f32 %v5333, 1e-12
        %v5526 = vadd.f32 %v5334, 1e-12
        %v5527 = vadd.f32 %v5335, 1e-12
        %v5528 = vadd.f32 %v5336, 1e-12
        %v5529 = vadd.f32 %v5337, 1e-12
        %v5530 = vadd.f32 %v5338, 1e-12
        %v5531 = vadd.f32 %v5339, 1e-12
        %v5532 = vadd.f32 %v5340, 1e-12
        %v5533 = vadd.f32 %v5341, 1e-12
        %v5534 = vadd.f32 %v5342, 1e-12
        %v5535 = vadd.f32 %v5343, 1e-12
        %v5536 = vadd.f32 %v5344, 1e-12
        %v5537 = vadd.f32 %v5345, 1e-12
        %v5538 = vadd.f32 %v5346, 1e-12
        %v5539 = vadd.f32 %v5347, 1e-12
        %v5540 = vadd.f32 %v5348, 1e-12
        %v5541 = vadd.f32 %v5349, 1e-12
        %v5542 = vadd.f32 %v5350, 1e-12
        %v5543 = vadd.f32 %v5351, 1e-12
        %v5544 = vadd.f32 %v5352, 1e-12
        %v5545 = vadd.f32 %v5353, 1e-12
        %v5546 = vadd.f32 %v5354, 1e-12
        %v5547 = vadd.f32 %v5355, 1e-12
        %v5548 = vadd.f32 %v5356, 1e-12
        %v5549 = vadd.f32 %v5357, 1e-12
        %v5550 = vadd.f32 %v5358, 1e-12
        %v5551 = vadd.f32 %v5359, 1e-12
        %v5552 = vadd.f32 %v5360, 1e-12
        %v5553 = vadd.f32 %v5361, 1e-12
        %v5554 = vadd.f32 %v5362, 1e-12
        %v5555 = vadd.f32 %v5363, 1e-12
        %v5556 = vadd.f32 %v5364, 1e-12
        %v5557 = vadd.f32 %v5365, 1e-12
        %v5558 = vadd.f32 %v5366, 1e-12
        %v5559 = vadd.f32 %v5367, 1e-12
        %v5560 = vadd.f32 %v5368, 1e-12
        %v5561 = vrsqrt.pop %v5497
        %v5562 = vmul.f32 %v5561, %v5497
        %v5563 = vmul.f32 %v5562, %v5561
        %v5564 = vmul.f32 0.5, %v5563
        %v5565 = vsub.f32 1.5, %v5564
        %v5566 = vmul.f32 %v5561, %v5565
        %vm5567 = vweird.f32 %v5497
        %vm5568 = vweird.f32 %v5561
        %vm5569 = vmor %vm5567, %vm5568
        %v5570 = vsel %vm5569, %v5561, %v5566
        %v5571 = vrsqrt.pop %v5498
        %v5572 = vmul.f32 %v5571, %v5498
        %v5573 = vmul.f32 %v5572, %v5571
        %v5574 = vmul.f32 0.5, %v5573
        %v5575 = vsub.f32 1.5, %v5574
        %v5576 = vmul.f32 %v5571, %v5575
        %vm5577 = vweird.f32 %v5498
        %vm5578 = vweird.f32 %v5571
        %vm5579 = vmor %vm5577, %vm5578
        %v5580 = vsel %vm5579, %v5571, %v5576
        %v5581 = vrsqrt.pop %v5499
        %v5582 = vmul.f32 %v5581, %v5499
        %v5583 = vmul.f32 %v5582, %v5581
        %v5584 = vmul.f32 0.5, %v5583
        %v5585 = vsub.f32 1.5, %v5584
        %v5586 = vmul.f32 %v5581, %v5585
        %vm5587 = vweird.f32 %v5499
        %vm5588 = vweird.f32 %v5581
        %vm5589 = vmor %vm5587, %vm5588
        %v5590 = vsel %vm5589, %v5581, %v5586
        %v5591 = vrsqrt.pop %v5500
        %v5592 = vmul.f32 %v5591, %v5500
        %v5593 = vmul.f32 %v5592, %v5591
        %v5594 = vmul.f32 0.5, %v5593
        %v5595 = vsub.f32 1.5, %v5594
        %v5596 = vmul.f32 %v5591, %v5595
        %vm5597 = vweird.f32 %v5500
        %vm5598 = vweird.f32 %v5591
        %vm5599 = vmor %vm5597, %vm5598
        %v5600 = vsel %vm5599, %v5591, %v5596
        %v5601 = vrsqrt.pop %v5501
        %v5602 = vmul.f32 %v5601, %v5501
        %v5603 = vmul.f32 %v5602, %v5601
        %v5604 = vmul.f32 0.5, %v5603
        %v5605 = vsub.f32 1.5, %v5604
        %v5606 = vmul.f32 %v5601, %v5605
        %vm5607 = vweird.f32 %v5501
        %vm5608 = vweird.f32 %v5601
        %vm5609 = vmor %vm5607, %vm5608
        %v5610 = vsel %vm5609, %v5601, %v5606
        %v5611 = vrsqrt.pop %v5502
        %v5612 = vmul.f32 %v5611, %v5502
        %v5613 = vmul.f32 %v5612, %v5611
        %v5614 = vmul.f32 0.5, %v5613
        %v5615 = vsub.f32 1.5, %v5614
        %v5616 = vmul.f32 %v5611, %v5615
        %vm5617 = vweird.f32 %v5502
        %vm5618 = vweird.f32 %v5611
        %vm5619 = vmor %vm5617, %vm5618
        %v5620 = vsel %vm5619, %v5611, %v5616
        %v5621 = vrsqrt.pop %v5503
        %v5622 = vmul.f32 %v5621, %v5503
        %v5623 = vmul.f32 %v5622, %v5621
        %v5624 = vmul.f32 0.5, %v5623
        %v5625 = vsub.f32 1.5, %v5624
        %v5626 = vmul.f32 %v5621, %v5625
        %vm5627 = vweird.f32 %v5503
        %vm5628 = vweird.f32 %v5621
        %vm5629 = vmor %vm5627, %vm5628
        %v5630 = vsel %vm5629, %v5621, %v5626
        %v5631 = vrsqrt.pop %v5504
        %v5632 = vmul.f32 %v5631, %v5504
        %v5633 = vmul.f32 %v5632, %v5631
        %v5634 = vmul.f32 0.5, %v5633
        %v5635 = vsub.f32 1.5, %v5634
        %v5636 = vmul.f32 %v5631, %v5635
        %vm5637 = vweird.f32 %v5504
        %vm5638 = vweird.f32 %v5631
        %vm5639 = vmor %vm5637, %vm5638
        %v5640 = vsel %vm5639, %v5631, %v5636
        %v5641 = vrsqrt.pop %v5505
        %v5642 = vmul.f32 %v5641, %v5505
        %v5643 = vmul.f32 %v5642, %v5641
        %v5644 = vmul.f32 0.5, %v5643
        %v5645 = vsub.f32 1.5, %v5644
        %v5646 = vmul.f32 %v5641, %v5645
        %vm5647 = vweird.f32 %v5505
        %vm5648 = vweird.f32 %v5641
        %vm5649 = vmor %vm5647, %vm5648
        %v5650 = vsel %vm5649, %v5641, %v5646
        %v5651 = vrsqrt.pop %v5506
        %v5652 = vmul.f32 %v5651, %v5506
        %v5653 = vmul.f32 %v5652, %v5651
        %v5654 = vmul.f32 0.5, %v5653
        %v5655 = vsub.f32 1.5, %v5654
        %v5656 = vmul.f32 %v5651, %v5655
        %vm5657 = vweird.f32 %v5506
        %vm5658 = vweird.f32 %v5651
        %vm5659 = vmor %vm5657, %vm5658
        %v5660 = vsel %vm5659, %v5651, %v5656
        %v5661 = vrsqrt.pop %v5507
        %v5662 = vmul.f32 %v5661, %v5507
        %v5663 = vmul.f32 %v5662, %v5661
        %v5664 = vmul.f32 0.5, %v5663
        %v5665 = vsub.f32 1.5, %v5664
        %v5666 = vmul.f32 %v5661, %v5665
        %vm5667 = vweird.f32 %v5507
        %vm5668 = vweird.f32 %v5661
        %vm5669 = vmor %vm5667, %vm5668
        %v5670 = vsel %vm5669, %v5661, %v5666
        %v5671 = vrsqrt.pop %v5508
        %v5672 = vmul.f32 %v5671, %v5508
        %v5673 = vmul.f32 %v5672, %v5671
        %v5674 = vmul.f32 0.5, %v5673
        %v5675 = vsub.f32 1.5, %v5674
        %v5676 = vmul.f32 %v5671, %v5675
        %vm5677 = vweird.f32 %v5508
        %vm5678 = vweird.f32 %v5671
        %vm5679 = vmor %vm5677, %vm5678
        %v5680 = vsel %vm5679, %v5671, %v5676
        %v5681 = vrsqrt.pop %v5509
        %v5682 = vmul.f32 %v5681, %v5509
        %v5683 = vmul.f32 %v5682, %v5681
        %v5684 = vmul.f32 0.5, %v5683
        %v5685 = vsub.f32 1.5, %v5684
        %v5686 = vmul.f32 %v5681, %v5685
        %vm5687 = vweird.f32 %v5509
        %vm5688 = vweird.f32 %v5681
        %vm5689 = vmor %vm5687, %vm5688
        %v5690 = vsel %vm5689, %v5681, %v5686
        %v5691 = vrsqrt.pop %v5510
        %v5692 = vmul.f32 %v5691, %v5510
        %v5693 = vmul.f32 %v5692, %v5691
        %v5694 = vmul.f32 0.5, %v5693
        %v5695 = vsub.f32 1.5, %v5694
        %v5696 = vmul.f32 %v5691, %v5695
        %vm5697 = vweird.f32 %v5510
        %vm5698 = vweird.f32 %v5691
        %vm5699 = vmor %vm5697, %vm5698
        %v5700 = vsel %vm5699, %v5691, %v5696
        %v5701 = vrsqrt.pop %v5511
        %v5702 = vmul.f32 %v5701, %v5511
        %v5703 = vmul.f32 %v5702, %v5701
        %v5704 = vmul.f32 0.5, %v5703
        %v5705 = vsub.f32 1.5, %v5704
        %v5706 = vmul.f32 %v5701, %v5705
        %vm5707 = vweird.f32 %v5511
        %vm5708 = vweird.f32 %v5701
        %vm5709 = vmor %vm5707, %vm5708
        %v5710 = vsel %vm5709, %v5701, %v5706
        %v5711 = vrsqrt.pop %v5512
        %v5712 = vmul.f32 %v5711, %v5512
        %v5713 = vmul.f32 %v5712, %v5711
        %v5714 = vmul.f32 0.5, %v5713
        %v5715 = vsub.f32 1.5, %v5714
        %v5716 = vmul.f32 %v5711, %v5715
        %vm5717 = vweird.f32 %v5512
        %vm5718 = vweird.f32 %v5711
        %vm5719 = vmor %vm5717, %vm5718
        %v5720 = vsel %vm5719, %v5711, %v5716
        %v5721 = vrsqrt.pop %v5513
        %v5722 = vmul.f32 %v5721, %v5513
        %v5723 = vmul.f32 %v5722, %v5721
        %v5724 = vmul.f32 0.5, %v5723
        %v5725 = vsub.f32 1.5, %v5724
        %v5726 = vmul.f32 %v5721, %v5725
        %vm5727 = vweird.f32 %v5513
        %vm5728 = vweird.f32 %v5721
        %vm5729 = vmor %vm5727, %vm5728
        %v5730 = vsel %vm5729, %v5721, %v5726
        %v5731 = vrsqrt.pop %v5514
        %v5732 = vmul.f32 %v5731, %v5514
        %v5733 = vmul.f32 %v5732, %v5731
        %v5734 = vmul.f32 0.5, %v5733
        %v5735 = vsub.f32 1.5, %v5734
        %v5736 = vmul.f32 %v5731, %v5735
        %vm5737 = vweird.f32 %v5514
        %vm5738 = vweird.f32 %v5731
        %vm5739 = vmor %vm5737, %vm5738
        %v5740 = vsel %vm5739, %v5731, %v5736
        %v5741 = vrsqrt.pop %v5515
        %v5742 = vmul.f32 %v5741, %v5515
        %v5743 = vmul.f32 %v5742, %v5741
        %v5744 = vmul.f32 0.5, %v5743
        %v5745 = vsub.f32 1.5, %v5744
        %v5746 = vmul.f32 %v5741, %v5745
        %vm5747 = vweird.f32 %v5515
        %vm5748 = vweird.f32 %v5741
        %vm5749 = vmor %vm5747, %vm5748
        %v5750 = vsel %vm5749, %v5741, %v5746
        %v5751 = vrsqrt.pop %v5516
        %v5752 = vmul.f32 %v5751, %v5516
        %v5753 = vmul.f32 %v5752, %v5751
        %v5754 = vmul.f32 0.5, %v5753
        %v5755 = vsub.f32 1.5, %v5754
        %v5756 = vmul.f32 %v5751, %v5755
        %vm5757 = vweird.f32 %v5516
        %vm5758 = vweird.f32 %v5751
        %vm5759 = vmor %vm5757, %vm5758
        %v5760 = vsel %vm5759, %v5751, %v5756
        %v5761 = vrsqrt.pop %v5517
        %v5762 = vmul.f32 %v5761, %v5517
        %v5763 = vmul.f32 %v5762, %v5761
        %v5764 = vmul.f32 0.5, %v5763
        %v5765 = vsub.f32 1.5, %v5764
        %v5766 = vmul.f32 %v5761, %v5765
        %vm5767 = vweird.f32 %v5517
        %vm5768 = vweird.f32 %v5761
        %vm5769 = vmor %vm5767, %vm5768
        %v5770 = vsel %vm5769, %v5761, %v5766
        %v5771 = vrsqrt.pop %v5518
        %v5772 = vmul.f32 %v5771, %v5518
        %v5773 = vmul.f32 %v5772, %v5771
        %v5774 = vmul.f32 0.5, %v5773
        %v5775 = vsub.f32 1.5, %v5774
        %v5776 = vmul.f32 %v5771, %v5775
        %vm5777 = vweird.f32 %v5518
        %vm5778 = vweird.f32 %v5771
        %vm5779 = vmor %vm5777, %vm5778
        %v5780 = vsel %vm5779, %v5771, %v5776
        %v5781 = vrsqrt.pop %v5519
        %v5782 = vmul.f32 %v5781, %v5519
        %v5783 = vmul.f32 %v5782, %v5781
        %v5784 = vmul.f32 0.5, %v5783
        %v5785 = vsub.f32 1.5, %v5784
        %v5786 = vmul.f32 %v5781, %v5785
        %vm5787 = vweird.f32 %v5519
        %vm5788 = vweird.f32 %v5781
        %vm5789 = vmor %vm5787, %vm5788
        %v5790 = vsel %vm5789, %v5781, %v5786
        %v5791 = vrsqrt.pop %v5520
        %v5792 = vmul.f32 %v5791, %v5520
        %v5793 = vmul.f32 %v5792, %v5791
        %v5794 = vmul.f32 0.5, %v5793
        %v5795 = vsub.f32 1.5, %v5794
        %v5796 = vmul.f32 %v5791, %v5795
        %vm5797 = vweird.f32 %v5520
        %vm5798 = vweird.f32 %v5791
        %vm5799 = vmor %vm5797, %vm5798
        %v5800 = vsel %vm5799, %v5791, %v5796
        %v5801 = vrsqrt.pop %v5521
        %v5802 = vmul.f32 %v5801, %v5521
        %v5803 = vmul.f32 %v5802, %v5801
        %v5804 = vmul.f32 0.5, %v5803
        %v5805 = vsub.f32 1.5, %v5804
        %v5806 = vmul.f32 %v5801, %v5805
        %vm5807 = vweird.f32 %v5521
        %vm5808 = vweird.f32 %v5801
        %vm5809 = vmor %vm5807, %vm5808
        %v5810 = vsel %vm5809, %v5801, %v5806
        %v5811 = vrsqrt.pop %v5522
        %v5812 = vmul.f32 %v5811, %v5522
        %v5813 = vmul.f32 %v5812, %v5811
        %v5814 = vmul.f32 0.5, %v5813
        %v5815 = vsub.f32 1.5, %v5814
        %v5816 = vmul.f32 %v5811, %v5815
        %vm5817 = vweird.f32 %v5522
        %vm5818 = vweird.f32 %v5811
        %vm5819 = vmor %vm5817, %vm5818
        %v5820 = vsel %vm5819, %v5811, %v5816
        %v5821 = vrsqrt.pop %v5523
        %v5822 = vmul.f32 %v5821, %v5523
        %v5823 = vmul.f32 %v5822, %v5821
        %v5824 = vmul.f32 0.5, %v5823
        %v5825 = vsub.f32 1.5, %v5824
        %v5826 = vmul.f32 %v5821, %v5825
        %vm5827 = vweird.f32 %v5523
        %vm5828 = vweird.f32 %v5821
        %vm5829 = vmor %vm5827, %vm5828
        %v5830 = vsel %vm5829, %v5821, %v5826
        %v5831 = vrsqrt.pop %v5524
        %v5832 = vmul.f32 %v5831, %v5524
        %v5833 = vmul.f32 %v5832, %v5831
        %v5834 = vmul.f32 0.5, %v5833
        %v5835 = vsub.f32 1.5, %v5834
        %v5836 = vmul.f32 %v5831, %v5835
        %vm5837 = vweird.f32 %v5524
        %vm5838 = vweird.f32 %v5831
        %vm5839 = vmor %vm5837, %vm5838
        %v5840 = vsel %vm5839, %v5831, %v5836
        %v5841 = vrsqrt.pop %v5525
        %v5842 = vmul.f32 %v5841, %v5525
        %v5843 = vmul.f32 %v5842, %v5841
        %v5844 = vmul.f32 0.5, %v5843
        %v5845 = vsub.f32 1.5, %v5844
        %v5846 = vmul.f32 %v5841, %v5845
        %vm5847 = vweird.f32 %v5525
        %vm5848 = vweird.f32 %v5841
        %vm5849 = vmor %vm5847, %vm5848
        %v5850 = vsel %vm5849, %v5841, %v5846
        %v5851 = vrsqrt.pop %v5526
        %v5852 = vmul.f32 %v5851, %v5526
        %v5853 = vmul.f32 %v5852, %v5851
        %v5854 = vmul.f32 0.5, %v5853
        %v5855 = vsub.f32 1.5, %v5854
        %v5856 = vmul.f32 %v5851, %v5855
        %vm5857 = vweird.f32 %v5526
        %vm5858 = vweird.f32 %v5851
        %vm5859 = vmor %vm5857, %vm5858
        %v5860 = vsel %vm5859, %v5851, %v5856
        %v5861 = vrsqrt.pop %v5527
        %v5862 = vmul.f32 %v5861, %v5527
        %v5863 = vmul.f32 %v5862, %v5861
        %v5864 = vmul.f32 0.5, %v5863
        %v5865 = vsub.f32 1.5, %v5864
        %v5866 = vmul.f32 %v5861, %v5865
        %vm5867 = vweird.f32 %v5527
        %vm5868 = vweird.f32 %v5861
        %vm5869 = vmor %vm5867, %vm5868
        %v5870 = vsel %vm5869, %v5861, %v5866
        %v5871 = vrsqrt.pop %v5528
        %v5872 = vmul.f32 %v5871, %v5528
        %v5873 = vmul.f32 %v5872, %v5871
        %v5874 = vmul.f32 0.5, %v5873
        %v5875 = vsub.f32 1.5, %v5874
        %v5876 = vmul.f32 %v5871, %v5875
        %vm5877 = vweird.f32 %v5528
        %vm5878 = vweird.f32 %v5871
        %vm5879 = vmor %vm5877, %vm5878
        %v5880 = vsel %vm5879, %v5871, %v5876
        %v5881 = vrsqrt.pop %v5529
        %v5882 = vmul.f32 %v5881, %v5529
        %v5883 = vmul.f32 %v5882, %v5881
        %v5884 = vmul.f32 0.5, %v5883
        %v5885 = vsub.f32 1.5, %v5884
        %v5886 = vmul.f32 %v5881, %v5885
        %vm5887 = vweird.f32 %v5529
        %vm5888 = vweird.f32 %v5881
        %vm5889 = vmor %vm5887, %vm5888
        %v5890 = vsel %vm5889, %v5881, %v5886
        %v5891 = vrsqrt.pop %v5530
        %v5892 = vmul.f32 %v5891, %v5530
        %v5893 = vmul.f32 %v5892, %v5891
        %v5894 = vmul.f32 0.5, %v5893
        %v5895 = vsub.f32 1.5, %v5894
        %v5896 = vmul.f32 %v5891, %v5895
        %vm5897 = vweird.f32 %v5530
        %vm5898 = vweird.f32 %v5891
        %vm5899 = vmor %vm5897, %vm5898
        %v5900 = vsel %vm5899, %v5891, %v5896
        %v5901 = vrsqrt.pop %v5531
        %v5902 = vmul.f32 %v5901, %v5531
        %v5903 = vmul.f32 %v5902, %v5901
        %v5904 = vmul.f32 0.5, %v5903
        %v5905 = vsub.f32 1.5, %v5904
        %v5906 = vmul.f32 %v5901, %v5905
        %vm5907 = vweird.f32 %v5531
        %vm5908 = vweird.f32 %v5901
        %vm5909 = vmor %vm5907, %vm5908
        %v5910 = vsel %vm5909, %v5901, %v5906
        %v5911 = vrsqrt.pop %v5532
        %v5912 = vmul.f32 %v5911, %v5532
        %v5913 = vmul.f32 %v5912, %v5911
        %v5914 = vmul.f32 0.5, %v5913
        %v5915 = vsub.f32 1.5, %v5914
        %v5916 = vmul.f32 %v5911, %v5915
        %vm5917 = vweird.f32 %v5532
        %vm5918 = vweird.f32 %v5911
        %vm5919 = vmor %vm5917, %vm5918
        %v5920 = vsel %vm5919, %v5911, %v5916
        %v5921 = vrsqrt.pop %v5533
        %v5922 = vmul.f32 %v5921, %v5533
        %v5923 = vmul.f32 %v5922, %v5921
        %v5924 = vmul.f32 0.5, %v5923
        %v5925 = vsub.f32 1.5, %v5924
        %v5926 = vmul.f32 %v5921, %v5925
        %vm5927 = vweird.f32 %v5533
        %vm5928 = vweird.f32 %v5921
        %vm5929 = vmor %vm5927, %vm5928
        %v5930 = vsel %vm5929, %v5921, %v5926
        %v5931 = vrsqrt.pop %v5534
        %v5932 = vmul.f32 %v5931, %v5534
        %v5933 = vmul.f32 %v5932, %v5931
        %v5934 = vmul.f32 0.5, %v5933
        %v5935 = vsub.f32 1.5, %v5934
        %v5936 = vmul.f32 %v5931, %v5935
        %vm5937 = vweird.f32 %v5534
        %vm5938 = vweird.f32 %v5931
        %vm5939 = vmor %vm5937, %vm5938
        %v5940 = vsel %vm5939, %v5931, %v5936
        %v5941 = vrsqrt.pop %v5535
        %v5942 = vmul.f32 %v5941, %v5535
        %v5943 = vmul.f32 %v5942, %v5941
        %v5944 = vmul.f32 0.5, %v5943
        %v5945 = vsub.f32 1.5, %v5944
        %v5946 = vmul.f32 %v5941, %v5945
        %vm5947 = vweird.f32 %v5535
        %vm5948 = vweird.f32 %v5941
        %vm5949 = vmor %vm5947, %vm5948
        %v5950 = vsel %vm5949, %v5941, %v5946
        %v5951 = vrsqrt.pop %v5536
        %v5952 = vmul.f32 %v5951, %v5536
        %v5953 = vmul.f32 %v5952, %v5951
        %v5954 = vmul.f32 0.5, %v5953
        %v5955 = vsub.f32 1.5, %v5954
        %v5956 = vmul.f32 %v5951, %v5955
        %vm5957 = vweird.f32 %v5536
        %vm5958 = vweird.f32 %v5951
        %vm5959 = vmor %vm5957, %vm5958
        %v5960 = vsel %vm5959, %v5951, %v5956
        %v5961 = vrsqrt.pop %v5537
        %v5962 = vmul.f32 %v5961, %v5537
        %v5963 = vmul.f32 %v5962, %v5961
        %v5964 = vmul.f32 0.5, %v5963
        %v5965 = vsub.f32 1.5, %v5964
        %v5966 = vmul.f32 %v5961, %v5965
        %vm5967 = vweird.f32 %v5537
        %vm5968 = vweird.f32 %v5961
        %vm5969 = vmor %vm5967, %vm5968
        %v5970 = vsel %vm5969, %v5961, %v5966
        %v5971 = vrsqrt.pop %v5538
        %v5972 = vmul.f32 %v5971, %v5538
        %v5973 = vmul.f32 %v5972, %v5971
        %v5974 = vmul.f32 0.5, %v5973
        %v5975 = vsub.f32 1.5, %v5974
        %v5976 = vmul.f32 %v5971, %v5975
        %vm5977 = vweird.f32 %v5538
        %vm5978 = vweird.f32 %v5971
        %vm5979 = vmor %vm5977, %vm5978
        %v5980 = vsel %vm5979, %v5971, %v5976
        %v5981 = vrsqrt.pop %v5539
        %v5982 = vmul.f32 %v5981, %v5539
        %v5983 = vmul.f32 %v5982, %v5981
        %v5984 = vmul.f32 0.5, %v5983
        %v5985 = vsub.f32 1.5, %v5984
        %v5986 = vmul.f32 %v5981, %v5985
        %vm5987 = vweird.f32 %v5539
        %vm5988 = vweird.f32 %v5981
        %vm5989 = vmor %vm5987, %vm5988
        %v5990 = vsel %vm5989, %v5981, %v5986
        %v5991 = vrsqrt.pop %v5540
        %v5992 = vmul.f32 %v5991, %v5540
        %v5993 = vmul.f32 %v5992, %v5991
        %v5994 = vmul.f32 0.5, %v5993
        %v5995 = vsub.f32 1.5, %v5994
        %v5996 = vmul.f32 %v5991, %v5995
        %vm5997 = vweird.f32 %v5540
        %vm5998 = vweird.f32 %v5991
        %vm5999 = vmor %vm5997, %vm5998
        %v6000 = vsel %vm5999, %v5991, %v5996
        %v6001 = vrsqrt.pop %v5541
        %v6002 = vmul.f32 %v6001, %v5541
        %v6003 = vmul.f32 %v6002, %v6001
        %v6004 = vmul.f32 0.5, %v6003
        %v6005 = vsub.f32 1.5, %v6004
        %v6006 = vmul.f32 %v6001, %v6005
        %vm6007 = vweird.f32 %v5541
        %vm6008 = vweird.f32 %v6001
        %vm6009 = vmor %vm6007, %vm6008
        %v6010 = vsel %vm6009, %v6001, %v6006
        %v6011 = vrsqrt.pop %v5542
        %v6012 = vmul.f32 %v6011, %v5542
        %v6013 = vmul.f32 %v6012, %v6011
        %v6014 = vmul.f32 0.5, %v6013
        %v6015 = vsub.f32 1.5, %v6014
        %v6016 = vmul.f32 %v6011, %v6015
        %vm6017 = vweird.f32 %v5542
        %vm6018 = vweird.f32 %v6011
        %vm6019 = vmor %vm6017, %vm6018
        %v6020 = vsel %vm6019, %v6011, %v6016
        %v6021 = vrsqrt.pop %v5543
        %v6022 = vmul.f32 %v6021, %v5543
        %v6023 = vmul.f32 %v6022, %v6021
        %v6024 = vmul.f32 0.5, %v6023
        %v6025 = vsub.f32 1.5, %v6024
        %v6026 = vmul.f32 %v6021, %v6025
        %vm6027 = vweird.f32 %v5543
        %vm6028 = vweird.f32 %v6021
        %vm6029 = vmor %vm6027, %vm6028
        %v6030 = vsel %vm6029, %v6021, %v6026
        %v6031 = vrsqrt.pop %v5544
        %v6032 = vmul.f32 %v6031, %v5544
        %v6033 = vmul.f32 %v6032, %v6031
        %v6034 = vmul.f32 0.5, %v6033
        %v6035 = vsub.f32 1.5, %v6034
        %v6036 = vmul.f32 %v6031, %v6035
        %vm6037 = vweird.f32 %v5544
        %vm6038 = vweird.f32 %v6031
        %vm6039 = vmor %vm6037, %vm6038
        %v6040 = vsel %vm6039, %v6031, %v6036
        %v6041 = vrsqrt.pop %v5545
        %v6042 = vmul.f32 %v6041, %v5545
        %v6043 = vmul.f32 %v6042, %v6041
        %v6044 = vmul.f32 0.5, %v6043
        %v6045 = vsub.f32 1.5, %v6044
        %v6046 = vmul.f32 %v6041, %v6045
        %vm6047 = vweird.f32 %v5545
        %vm6048 = vweird.f32 %v6041
        %vm6049 = vmor %vm6047, %vm6048
        %v6050 = vsel %vm6049, %v6041, %v6046
        %v6051 = vrsqrt.pop %v5546
        %v6052 = vmul.f32 %v6051, %v5546
        %v6053 = vmul.f32 %v6052, %v6051
        %v6054 = vmul.f32 0.5, %v6053
        %v6055 = vsub.f32 1.5, %v6054
        %v6056 = vmul.f32 %v6051, %v6055
        %vm6057 = vweird.f32 %v5546
        %vm6058 = vweird.f32 %v6051
        %vm6059 = vmor %vm6057, %vm6058
        %v6060 = vsel %vm6059, %v6051, %v6056
        %v6061 = vrsqrt.pop %v5547
        %v6062 = vmul.f32 %v6061, %v5547
        %v6063 = vmul.f32 %v6062, %v6061
        %v6064 = vmul.f32 0.5, %v6063
        %v6065 = vsub.f32 1.5, %v6064
        %v6066 = vmul.f32 %v6061, %v6065
        %vm6067 = vweird.f32 %v5547
        %vm6068 = vweird.f32 %v6061
        %vm6069 = vmor %vm6067, %vm6068
        %v6070 = vsel %vm6069, %v6061, %v6066
        %v6071 = vrsqrt.pop %v5548
        %v6072 = vmul.f32 %v6071, %v5548
        %v6073 = vmul.f32 %v6072, %v6071
        %v6074 = vmul.f32 0.5, %v6073
        %v6075 = vsub.f32 1.5, %v6074
        %v6076 = vmul.f32 %v6071, %v6075
        %vm6077 = vweird.f32 %v5548
        %vm6078 = vweird.f32 %v6071
        %vm6079 = vmor %vm6077, %vm6078
        %v6080 = vsel %vm6079, %v6071, %v6076
        %v6081 = vrsqrt.pop %v5549
        %v6082 = vmul.f32 %v6081, %v5549
        %v6083 = vmul.f32 %v6082, %v6081
        %v6084 = vmul.f32 0.5, %v6083
        %v6085 = vsub.f32 1.5, %v6084
        %v6086 = vmul.f32 %v6081, %v6085
        %vm6087 = vweird.f32 %v5549
        %vm6088 = vweird.f32 %v6081
        %vm6089 = vmor %vm6087, %vm6088
        %v6090 = vsel %vm6089, %v6081, %v6086
        %v6091 = vrsqrt.pop %v5550
        %v6092 = vmul.f32 %v6091, %v5550
        %v6093 = vmul.f32 %v6092, %v6091
        %v6094 = vmul.f32 0.5, %v6093
        %v6095 = vsub.f32 1.5, %v6094
        %v6096 = vmul.f32 %v6091, %v6095
        %vm6097 = vweird.f32 %v5550
        %vm6098 = vweird.f32 %v6091
        %vm6099 = vmor %vm6097, %vm6098
        %v6100 = vsel %vm6099, %v6091, %v6096
        %v6101 = vrsqrt.pop %v5551
        %v6102 = vmul.f32 %v6101, %v5551
        %v6103 = vmul.f32 %v6102, %v6101
        %v6104 = vmul.f32 0.5, %v6103
        %v6105 = vsub.f32 1.5, %v6104
        %v6106 = vmul.f32 %v6101, %v6105
        %vm6107 = vweird.f32 %v5551
        %vm6108 = vweird.f32 %v6101
        %vm6109 = vmor %vm6107, %vm6108
        %v6110 = vsel %vm6109, %v6101, %v6106
        %v6111 = vrsqrt.pop %v5552
        %v6112 = vmul.f32 %v6111, %v5552
        %v6113 = vmul.f32 %v6112, %v6111
        %v6114 = vmul.f32 0.5, %v6113
        %v6115 = vsub.f32 1.5, %v6114
        %v6116 = vmul.f32 %v6111, %v6115
        %vm6117 = vweird.f32 %v5552
        %vm6118 = vweird.f32 %v6111
        %vm6119 = vmor %vm6117, %vm6118
        %v6120 = vsel %vm6119, %v6111, %v6116
        %v6121 = vrsqrt.pop %v5553
        %v6122 = vmul.f32 %v6121, %v5553
        %v6123 = vmul.f32 %v6122, %v6121
        %v6124 = vmul.f32 0.5, %v6123
        %v6125 = vsub.f32 1.5, %v6124
        %v6126 = vmul.f32 %v6121, %v6125
        %vm6127 = vweird.f32 %v5553
        %vm6128 = vweird.f32 %v6121
        %vm6129 = vmor %vm6127, %vm6128
        %v6130 = vsel %vm6129, %v6121, %v6126
        %v6131 = vrsqrt.pop %v5554
        %v6132 = vmul.f32 %v6131, %v5554
        %v6133 = vmul.f32 %v6132, %v6131
        %v6134 = vmul.f32 0.5, %v6133
        %v6135 = vsub.f32 1.5, %v6134
        %v6136 = vmul.f32 %v6131, %v6135
        %vm6137 = vweird.f32 %v5554
        %vm6138 = vweird.f32 %v6131
        %vm6139 = vmor %vm6137, %vm6138
        %v6140 = vsel %vm6139, %v6131, %v6136
        %v6141 = vrsqrt.pop %v5555
        %v6142 = vmul.f32 %v6141, %v5555
        %v6143 = vmul.f32 %v6142, %v6141
        %v6144 = vmul.f32 0.5, %v6143
        %v6145 = vsub.f32 1.5, %v6144
        %v6146 = vmul.f32 %v6141, %v6145
        %vm6147 = vweird.f32 %v5555
        %vm6148 = vweird.f32 %v6141
        %vm6149 = vmor %vm6147, %vm6148
        %v6150 = vsel %vm6149, %v6141, %v6146
        %v6151 = vrsqrt.pop %v5556
        %v6152 = vmul.f32 %v6151, %v5556
        %v6153 = vmul.f32 %v6152, %v6151
        %v6154 = vmul.f32 0.5, %v6153
        %v6155 = vsub.f32 1.5, %v6154
        %v6156 = vmul.f32 %v6151, %v6155
        %vm6157 = vweird.f32 %v5556
        %vm6158 = vweird.f32 %v6151
        %vm6159 = vmor %vm6157, %vm6158
        %v6160 = vsel %vm6159, %v6151, %v6156
        %v6161 = vrsqrt.pop %v5557
        %v6162 = vmul.f32 %v6161, %v5557
        %v6163 = vmul.f32 %v6162, %v6161
        %v6164 = vmul.f32 0.5, %v6163
        %v6165 = vsub.f32 1.5, %v6164
        %v6166 = vmul.f32 %v6161, %v6165
        %vm6167 = vweird.f32 %v5557
        %vm6168 = vweird.f32 %v6161
        %vm6169 = vmor %vm6167, %vm6168
        %v6170 = vsel %vm6169, %v6161, %v6166
        %v6171 = vrsqrt.pop %v5558
        %v6172 = vmul.f32 %v6171, %v5558
        %v6173 = vmul.f32 %v6172, %v6171
        %v6174 = vmul.f32 0.5, %v6173
        %v6175 = vsub.f32 1.5, %v6174
        %v6176 = vmul.f32 %v6171, %v6175
        %vm6177 = vweird.f32 %v5558
        %vm6178 = vweird.f32 %v6171
        %vm6179 = vmor %vm6177, %vm6178
        %v6180 = vsel %vm6179, %v6171, %v6176
        %v6181 = vrsqrt.pop %v5559
        %v6182 = vmul.f32 %v6181, %v5559
        %v6183 = vmul.f32 %v6182, %v6181
        %v6184 = vmul.f32 0.5, %v6183
        %v6185 = vsub.f32 1.5, %v6184
        %v6186 = vmul.f32 %v6181, %v6185
        %vm6187 = vweird.f32 %v5559
        %vm6188 = vweird.f32 %v6181
        %vm6189 = vmor %vm6187, %vm6188
        %v6190 = vsel %vm6189, %v6181, %v6186
        %v6191 = vrsqrt.pop %v5560
        %v6192 = vmul.f32 %v6191, %v5560
        %v6193 = vmul.f32 %v6192, %v6191
        %v6194 = vmul.f32 0.5, %v6193
        %v6195 = vsub.f32 1.5, %v6194
        %v6196 = vmul.f32 %v6191, %v6195
        %vm6197 = vweird.f32 %v5560
        %vm6198 = vweird.f32 %v6191
        %vm6199 = vmor %vm6197, %vm6198
        %v6200 = vsel %vm6199, %v6191, %v6196
        %v6201 = vmul.f32 %v5369, %v5570
        %v6202 = vmul.f32 %v5370, %v5570
        %v6203 = vmul.f32 %v5371, %v5580
        %v6204 = vmul.f32 %v5372, %v5580
        %v6205 = vmul.f32 %v5373, %v5590
        %v6206 = vmul.f32 %v5374, %v5590
        %v6207 = vmul.f32 %v5375, %v5600
        %v6208 = vmul.f32 %v5376, %v5600
        %v6209 = vmul.f32 %v5377, %v5610
        %v6210 = vmul.f32 %v5378, %v5610
        %v6211 = vmul.f32 %v5379, %v5620
        %v6212 = vmul.f32 %v5380, %v5620
        %v6213 = vmul.f32 %v5381, %v5630
        %v6214 = vmul.f32 %v5382, %v5630
        %v6215 = vmul.f32 %v5383, %v5640
        %v6216 = vmul.f32 %v5384, %v5640
        %v6217 = vmul.f32 %v5385, %v5650
        %v6218 = vmul.f32 %v5386, %v5650
        %v6219 = vmul.f32 %v5387, %v5660
        %v6220 = vmul.f32 %v5388, %v5660
        %v6221 = vmul.f32 %v5389, %v5670
        %v6222 = vmul.f32 %v5390, %v5670
        %v6223 = vmul.f32 %v5391, %v5680
        %v6224 = vmul.f32 %v5392, %v5680
        %v6225 = vmul.f32 %v5393, %v5690
        %v6226 = vmul.f32 %v5394, %v5690
        %v6227 = vmul.f32 %v5395, %v5700
        %v6228 = vmul.f32 %v5396, %v5700
        %v6229 = vmul.f32 %v5397, %v5710
        %v6230 = vmul.f32 %v5398, %v5710
        %v6231 = vmul.f32 %v5399, %v5720
        %v6232 = vmul.f32 %v5400, %v5720
        %v6233 = vmul.f32 %v5401, %v5730
        %v6234 = vmul.f32 %v5402, %v5730
        %v6235 = vmul.f32 %v5403, %v5740
        %v6236 = vmul.f32 %v5404, %v5740
        %v6237 = vmul.f32 %v5405, %v5750
        %v6238 = vmul.f32 %v5406, %v5750
        %v6239 = vmul.f32 %v5407, %v5760
        %v6240 = vmul.f32 %v5408, %v5760
        %v6241 = vmul.f32 %v5409, %v5770
        %v6242 = vmul.f32 %v5410, %v5770
        %v6243 = vmul.f32 %v5411, %v5780
        %v6244 = vmul.f32 %v5412, %v5780
        %v6245 = vmul.f32 %v5413, %v5790
        %v6246 = vmul.f32 %v5414, %v5790
        %v6247 = vmul.f32 %v5415, %v5800
        %v6248 = vmul.f32 %v5416, %v5800
        %v6249 = vmul.f32 %v5417, %v5810
        %v6250 = vmul.f32 %v5418, %v5810
        %v6251 = vmul.f32 %v5419, %v5820
        %v6252 = vmul.f32 %v5420, %v5820
        %v6253 = vmul.f32 %v5421, %v5830
        %v6254 = vmul.f32 %v5422, %v5830
        %v6255 = vmul.f32 %v5423, %v5840
        %v6256 = vmul.f32 %v5424, %v5840
        %v6257 = vmul.f32 %v5425, %v5850
        %v6258 = vmul.f32 %v5426, %v5850
        %v6259 = vmul.f32 %v5427, %v5860
        %v6260 = vmul.f32 %v5428, %v5860
        %v6261 = vmul.f32 %v5429, %v5870
        %v6262 = vmul.f32 %v5430, %v5870
        %v6263 = vmul.f32 %v5431, %v5880
        %v6264 = vmul.f32 %v5432, %v5880
        %v6265 = vmul.f32 %v5433, %v5890
        %v6266 = vmul.f32 %v5434, %v5890
        %v6267 = vmul.f32 %v5435, %v5900
        %v6268 = vmul.f32 %v5436, %v5900
        %v6269 = vmul.f32 %v5437, %v5910
        %v6270 = vmul.f32 %v5438, %v5910
        %v6271 = vmul.f32 %v5439, %v5920
        %v6272 = vmul.f32 %v5440, %v5920
        %v6273 = vmul.f32 %v5441, %v5930
        %v6274 = vmul.f32 %v5442, %v5930
        %v6275 = vmul.f32 %v5443, %v5940
        %v6276 = vmul.f32 %v5444, %v5940
        %v6277 = vmul.f32 %v5445, %v5950
        %v6278 = vmul.f32 %v5446, %v5950
        %v6279 = vmul.f32 %v5447, %v5960
        %v6280 = vmul.f32 %v5448, %v5960
        %v6281 = vmul.f32 %v5449, %v5970
        %v6282 = vmul.f32 %v5450, %v5970
        %v6283 = vmul.f32 %v5451, %v5980
        %v6284 = vmul.f32 %v5452, %v5980
        %v6285 = vmul.f32 %v5453, %v5990
        %v6286 = vmul.f32 %v5454, %v5990
        %v6287 = vmul.f32 %v5455, %v6000
        %v6288 = vmul.f32 %v5456, %v6000
        %v6289 = vmul.f32 %v5457, %v6010
        %v6290 = vmul.f32 %v5458, %v6010
        %v6291 = vmul.f32 %v5459, %v6020
        %v6292 = vmul.f32 %v5460, %v6020
        %v6293 = vmul.f32 %v5461, %v6030
        %v6294 = vmul.f32 %v5462, %v6030
        %v6295 = vmul.f32 %v5463, %v6040
        %v6296 = vmul.f32 %v5464, %v6040
        %v6297 = vmul.f32 %v5465, %v6050
        %v6298 = vmul.f32 %v5466, %v6050
        %v6299 = vmul.f32 %v5467, %v6060
        %v6300 = vmul.f32 %v5468, %v6060
        %v6301 = vmul.f32 %v5469, %v6070
        %v6302 = vmul.f32 %v5470, %v6070
        %v6303 = vmul.f32 %v5471, %v6080
        %v6304 = vmul.f32 %v5472, %v6080
        %v6305 = vmul.f32 %v5473, %v6090
        %v6306 = vmul.f32 %v5474, %v6090
        %v6307 = vmul.f32 %v5475, %v6100
        %v6308 = vmul.f32 %v5476, %v6100
        %v6309 = vmul.f32 %v5477, %v6110
        %v6310 = vmul.f32 %v5478, %v6110
        %v6311 = vmul.f32 %v5479, %v6120
        %v6312 = vmul.f32 %v5480, %v6120
        %v6313 = vmul.f32 %v5481, %v6130
        %v6314 = vmul.f32 %v5482, %v6130
        %v6315 = vmul.f32 %v5483, %v6140
        %v6316 = vmul.f32 %v5484, %v6140
        %v6317 = vmul.f32 %v5485, %v6150
        %v6318 = vmul.f32 %v5486, %v6150
        %v6319 = vmul.f32 %v5487, %v6160
        %v6320 = vmul.f32 %v5488, %v6160
        %v6321 = vmul.f32 %v5489, %v6170
        %v6322 = vmul.f32 %v5490, %v6170
        %v6323 = vmul.f32 %v5491, %v6180
        %v6324 = vmul.f32 %v5492, %v6180
        %v6325 = vmul.f32 %v5493, %v6190
        %v6326 = vmul.f32 %v5494, %v6190
        %v6327 = vmul.f32 %v5495, %v6200
        %v6328 = vmul.f32 %v5496, %v6200
        %v6329 = vld [vmem:[%s8] sm:$0x3]
        %v6331 = vperm.slane %v6329, 0
        %v6332 = vperm.slane %v6329, 1
        %v6335 = vmul.f32 %v6201, %v6331
        %v6336 = vmul.f32 %v6202, %v6332
        %v6337 = vmul.f32 %v6203, %v6331
        %v6338 = vmul.f32 %v6204, %v6332
        %v6339 = vmul.f32 %v6205, %v6331
        %v6340 = vmul.f32 %v6206, %v6332
        %v6341 = vmul.f32 %v6207, %v6331
        %v6342 = vmul.f32 %v6208, %v6332
        %v6343 = vmul.f32 %v6209, %v6331
        %v6344 = vmul.f32 %v6210, %v6332
        %v6345 = vmul.f32 %v6211, %v6331
        %v6346 = vmul.f32 %v6212, %v6332
        %v6347 = vmul.f32 %v6213, %v6331
        %v6348 = vmul.f32 %v6214, %v6332
        %v6349 = vmul.f32 %v6215, %v6331
        %v6350 = vmul.f32 %v6216, %v6332
        %v6351 = vmul.f32 %v6217, %v6331
        %v6352 = vmul.f32 %v6218, %v6332
        %v6353 = vmul.f32 %v6219, %v6331
        %v6354 = vmul.f32 %v6220, %v6332
        %v6355 = vmul.f32 %v6221, %v6331
        %v6356 = vmul.f32 %v6222, %v6332
        %v6357 = vmul.f32 %v6223, %v6331
        %v6358 = vmul.f32 %v6224, %v6332
        %v6359 = vmul.f32 %v6225, %v6331
        %v6360 = vmul.f32 %v6226, %v6332
        %v6361 = vmul.f32 %v6227, %v6331
        %v6362 = vmul.f32 %v6228, %v6332
        %v6363 = vmul.f32 %v6229, %v6331
        %v6364 = vmul.f32 %v6230, %v6332
        %v6365 = vmul.f32 %v6231, %v6331
        %v6366 = vmul.f32 %v6232, %v6332
        %v6367 = vmul.f32 %v6233, %v6331
        %v6368 = vmul.f32 %v6234, %v6332
        %v6369 = vmul.f32 %v6235, %v6331
        %v6370 = vmul.f32 %v6236, %v6332
        %v6371 = vmul.f32 %v6237, %v6331
        %v6372 = vmul.f32 %v6238, %v6332
        %v6373 = vmul.f32 %v6239, %v6331
        %v6374 = vmul.f32 %v6240, %v6332
        %v6375 = vmul.f32 %v6241, %v6331
        %v6376 = vmul.f32 %v6242, %v6332
        %v6377 = vmul.f32 %v6243, %v6331
        %v6378 = vmul.f32 %v6244, %v6332
        %v6379 = vmul.f32 %v6245, %v6331
        %v6380 = vmul.f32 %v6246, %v6332
        %v6381 = vmul.f32 %v6247, %v6331
        %v6382 = vmul.f32 %v6248, %v6332
        %v6383 = vmul.f32 %v6249, %v6331
        %v6384 = vmul.f32 %v6250, %v6332
        %v6385 = vmul.f32 %v6251, %v6331
        %v6386 = vmul.f32 %v6252, %v6332
        %v6387 = vmul.f32 %v6253, %v6331
        %v6388 = vmul.f32 %v6254, %v6332
        %v6389 = vmul.f32 %v6255, %v6331
        %v6390 = vmul.f32 %v6256, %v6332
        %v6391 = vmul.f32 %v6257, %v6331
        %v6392 = vmul.f32 %v6258, %v6332
        %v6393 = vmul.f32 %v6259, %v6331
        %v6394 = vmul.f32 %v6260, %v6332
        %v6395 = vmul.f32 %v6261, %v6331
        %v6396 = vmul.f32 %v6262, %v6332
        %v6397 = vmul.f32 %v6263, %v6331
        %v6398 = vmul.f32 %v6264, %v6332
        %v6399 = vmul.f32 %v6265, %v6331
        %v6400 = vmul.f32 %v6266, %v6332
        %v6401 = vmul.f32 %v6267, %v6331
        %v6402 = vmul.f32 %v6268, %v6332
        %v6403 = vmul.f32 %v6269, %v6331
        %v6404 = vmul.f32 %v6270, %v6332
        %v6405 = vmul.f32 %v6271, %v6331
        %v6406 = vmul.f32 %v6272, %v6332
        %v6407 = vmul.f32 %v6273, %v6331
        %v6408 = vmul.f32 %v6274, %v6332
        %v6409 = vmul.f32 %v6275, %v6331
        %v6410 = vmul.f32 %v6276, %v6332
        %v6411 = vmul.f32 %v6277, %v6331
        %v6412 = vmul.f32 %v6278, %v6332
        %v6413 = vmul.f32 %v6279, %v6331
        %v6414 = vmul.f32 %v6280, %v6332
        %v6415 = vmul.f32 %v6281, %v6331
        %v6416 = vmul.f32 %v6282, %v6332
        %v6417 = vmul.f32 %v6283, %v6331
        %v6418 = vmul.f32 %v6284, %v6332
        %v6419 = vmul.f32 %v6285, %v6331
        %v6420 = vmul.f32 %v6286, %v6332
        %v6421 = vmul.f32 %v6287, %v6331
        %v6422 = vmul.f32 %v6288, %v6332
        %v6423 = vmul.f32 %v6289, %v6331
        %v6424 = vmul.f32 %v6290, %v6332
        %v6425 = vmul.f32 %v6291, %v6331
        %v6426 = vmul.f32 %v6292, %v6332
        %v6427 = vmul.f32 %v6293, %v6331
        %v6428 = vmul.f32 %v6294, %v6332
        %v6429 = vmul.f32 %v6295, %v6331
        %v6430 = vmul.f32 %v6296, %v6332
        %v6431 = vmul.f32 %v6297, %v6331
        %v6432 = vmul.f32 %v6298, %v6332
        %v6433 = vmul.f32 %v6299, %v6331
        %v6434 = vmul.f32 %v6300, %v6332
        %v6435 = vmul.f32 %v6301, %v6331
        %v6436 = vmul.f32 %v6302, %v6332
        %v6437 = vmul.f32 %v6303, %v6331
        %v6438 = vmul.f32 %v6304, %v6332
        %v6439 = vmul.f32 %v6305, %v6331
        %v6440 = vmul.f32 %v6306, %v6332
        %v6441 = vmul.f32 %v6307, %v6331
        %v6442 = vmul.f32 %v6308, %v6332
        %v6443 = vmul.f32 %v6309, %v6331
        %v6444 = vmul.f32 %v6310, %v6332
        %v6445 = vmul.f32 %v6311, %v6331
        %v6446 = vmul.f32 %v6312, %v6332
        %v6447 = vmul.f32 %v6313, %v6331
        %v6448 = vmul.f32 %v6314, %v6332
        %v6449 = vmul.f32 %v6315, %v6331
        %v6450 = vmul.f32 %v6316, %v6332
        %v6451 = vmul.f32 %v6317, %v6331
        %v6452 = vmul.f32 %v6318, %v6332
        %v6453 = vmul.f32 %v6319, %v6331
        %v6454 = vmul.f32 %v6320, %v6332
        %v6455 = vmul.f32 %v6321, %v6331
        %v6456 = vmul.f32 %v6322, %v6332
        %v6457 = vmul.f32 %v6323, %v6331
        %v6458 = vmul.f32 %v6324, %v6332
        %v6459 = vmul.f32 %v6325, %v6331
        %v6460 = vmul.f32 %v6326, %v6332
        %v6461 = vmul.f32 %v6327, %v6331
        %v6462 = vmul.f32 %v6328, %v6332
        %v6463 = vld [vmem:[%s9] sm:$0x3]
        %v6465 = vperm.slane %v6463, 0
        %v6466 = vperm.slane %v6463, 1
        %v6469 = vadd.f32 %v6335, %v6465
        %v6470 = vadd.f32 %v6336, %v6466
        %v6471 = vadd.f32 %v6337, %v6465
        %v6472 = vadd.f32 %v6338, %v6466
        %v6473 = vadd.f32 %v6339, %v6465
        %v6474 = vadd.f32 %v6340, %v6466
        %v6475 = vadd.f32 %v6341, %v6465
        %v6476 = vadd.f32 %v6342, %v6466
        %v6477 = vadd.f32 %v6343, %v6465
        %v6478 = vadd.f32 %v6344, %v6466
        %v6479 = vadd.f32 %v6345, %v6465
        %v6480 = vadd.f32 %v6346, %v6466
        %v6481 = vadd.f32 %v6347, %v6465
        %v6482 = vadd.f32 %v6348, %v6466
        %v6483 = vadd.f32 %v6349, %v6465
        %v6484 = vadd.f32 %v6350, %v6466
        %v6485 = vadd.f32 %v6351, %v6465
        %v6486 = vadd.f32 %v6352, %v6466
        %v6487 = vadd.f32 %v6353, %v6465
        %v6488 = vadd.f32 %v6354, %v6466
        %v6489 = vadd.f32 %v6355, %v6465
        %v6490 = vadd.f32 %v6356, %v6466
        %v6491 = vadd.f32 %v6357, %v6465
        %v6492 = vadd.f32 %v6358, %v6466
        %v6493 = vadd.f32 %v6359, %v6465
        %v6494 = vadd.f32 %v6360, %v6466
        %v6495 = vadd.f32 %v6361, %v6465
        %v6496 = vadd.f32 %v6362, %v6466
        %v6497 = vadd.f32 %v6363, %v6465
        %v6498 = vadd.f32 %v6364, %v6466
        %v6499 = vadd.f32 %v6365, %v6465
        %v6500 = vadd.f32 %v6366, %v6466
        %v6501 = vadd.f32 %v6367, %v6465
        %v6502 = vadd.f32 %v6368, %v6466
        %v6503 = vadd.f32 %v6369, %v6465
        %v6504 = vadd.f32 %v6370, %v6466
        %v6505 = vadd.f32 %v6371, %v6465
        %v6506 = vadd.f32 %v6372, %v6466
        %v6507 = vadd.f32 %v6373, %v6465
        %v6508 = vadd.f32 %v6374, %v6466
        %v6509 = vadd.f32 %v6375, %v6465
        %v6510 = vadd.f32 %v6376, %v6466
        %v6511 = vadd.f32 %v6377, %v6465
        %v6512 = vadd.f32 %v6378, %v6466
        %v6513 = vadd.f32 %v6379, %v6465
        %v6514 = vadd.f32 %v6380, %v6466
        %v6515 = vadd.f32 %v6381, %v6465
        %v6516 = vadd.f32 %v6382, %v6466
        %v6517 = vadd.f32 %v6383, %v6465
        %v6518 = vadd.f32 %v6384, %v6466
        %v6519 = vadd.f32 %v6385, %v6465
        %v6520 = vadd.f32 %v6386, %v6466
        %v6521 = vadd.f32 %v6387, %v6465
        %v6522 = vadd.f32 %v6388, %v6466
        %v6523 = vadd.f32 %v6389, %v6465
        %v6524 = vadd.f32 %v6390, %v6466
        %v6525 = vadd.f32 %v6391, %v6465
        %v6526 = vadd.f32 %v6392, %v6466
        %v6527 = vadd.f32 %v6393, %v6465
        %v6528 = vadd.f32 %v6394, %v6466
        %v6529 = vadd.f32 %v6395, %v6465
        %v6530 = vadd.f32 %v6396, %v6466
        %v6531 = vadd.f32 %v6397, %v6465
        %v6532 = vadd.f32 %v6398, %v6466
        %v6533 = vadd.f32 %v6399, %v6465
        %v6534 = vadd.f32 %v6400, %v6466
        %v6535 = vadd.f32 %v6401, %v6465
        %v6536 = vadd.f32 %v6402, %v6466
        %v6537 = vadd.f32 %v6403, %v6465
        %v6538 = vadd.f32 %v6404, %v6466
        %v6539 = vadd.f32 %v6405, %v6465
        %v6540 = vadd.f32 %v6406, %v6466
        %v6541 = vadd.f32 %v6407, %v6465
        %v6542 = vadd.f32 %v6408, %v6466
        %v6543 = vadd.f32 %v6409, %v6465
        %v6544 = vadd.f32 %v6410, %v6466
        %v6545 = vadd.f32 %v6411, %v6465
        %v6546 = vadd.f32 %v6412, %v6466
        %v6547 = vadd.f32 %v6413, %v6465
        %v6548 = vadd.f32 %v6414, %v6466
        %v6549 = vadd.f32 %v6415, %v6465
        %v6550 = vadd.f32 %v6416, %v6466
        %v6551 = vadd.f32 %v6417, %v6465
        %v6552 = vadd.f32 %v6418, %v6466
        %v6553 = vadd.f32 %v6419, %v6465
        %v6554 = vadd.f32 %v6420, %v6466
        %v6555 = vadd.f32 %v6421, %v6465
        %v6556 = vadd.f32 %v6422, %v6466
        %v6557 = vadd.f32 %v6423, %v6465
        %v6558 = vadd.f32 %v6424, %v6466
        %v6559 = vadd.f32 %v6425, %v6465
        %v6560 = vadd.f32 %v6426, %v6466
        %v6561 = vadd.f32 %v6427, %v6465
        %v6562 = vadd.f32 %v6428, %v6466
        %v6563 = vadd.f32 %v6429, %v6465
        %v6564 = vadd.f32 %v6430, %v6466
        %v6565 = vadd.f32 %v6431, %v6465
        %v6566 = vadd.f32 %v6432, %v6466
        %v6567 = vadd.f32 %v6433, %v6465
        %v6568 = vadd.f32 %v6434, %v6466
        %v6569 = vadd.f32 %v6435, %v6465
        %v6570 = vadd.f32 %v6436, %v6466
        %v6571 = vadd.f32 %v6437, %v6465
        %v6572 = vadd.f32 %v6438, %v6466
        %v6573 = vadd.f32 %v6439, %v6465
        %v6574 = vadd.f32 %v6440, %v6466
        %v6575 = vadd.f32 %v6441, %v6465
        %v6576 = vadd.f32 %v6442, %v6466
        %v6577 = vadd.f32 %v6443, %v6465
        %v6578 = vadd.f32 %v6444, %v6466
        %v6579 = vadd.f32 %v6445, %v6465
        %v6580 = vadd.f32 %v6446, %v6466
        %v6581 = vadd.f32 %v6447, %v6465
        %v6582 = vadd.f32 %v6448, %v6466
        %v6583 = vadd.f32 %v6449, %v6465
        %v6584 = vadd.f32 %v6450, %v6466
        %v6585 = vadd.f32 %v6451, %v6465
        %v6586 = vadd.f32 %v6452, %v6466
        %v6587 = vadd.f32 %v6453, %v6465
        %v6588 = vadd.f32 %v6454, %v6466
        %v6589 = vadd.f32 %v6455, %v6465
        %v6590 = vadd.f32 %v6456, %v6466
        %v6591 = vadd.f32 %v6457, %v6465
        %v6592 = vadd.f32 %v6458, %v6466
        %v6593 = vadd.f32 %v6459, %v6465
        %v6594 = vadd.f32 %v6460, %v6466
        %v6595 = vadd.f32 %v6461, %v6465
        %v6596 = vadd.f32 %v6462, %v6466
        %v6597 = vpack.c.bf16 %v6470, %v6469
        %v6598 = vpack.c.bf16 %v6472, %v6471
        %v6599 = vpack.c.bf16 %v6474, %v6473
        %v6600 = vpack.c.bf16 %v6476, %v6475
        %v6601 = vpack.c.bf16 %v6478, %v6477
        %v6602 = vpack.c.bf16 %v6480, %v6479
        %v6603 = vpack.c.bf16 %v6482, %v6481
        %v6604 = vpack.c.bf16 %v6484, %v6483
        %v6605 = vpack.c.bf16 %v6486, %v6485
        %v6606 = vpack.c.bf16 %v6488, %v6487
        %v6607 = vpack.c.bf16 %v6490, %v6489
        %v6608 = vpack.c.bf16 %v6492, %v6491
        %v6609 = vpack.c.bf16 %v6494, %v6493
        %v6610 = vpack.c.bf16 %v6496, %v6495
        %v6611 = vpack.c.bf16 %v6498, %v6497
        %v6612 = vpack.c.bf16 %v6500, %v6499
        %v6613 = vpack.c.bf16 %v6502, %v6501
        %v6614 = vpack.c.bf16 %v6504, %v6503
        %v6615 = vpack.c.bf16 %v6506, %v6505
        %v6616 = vpack.c.bf16 %v6508, %v6507
        %v6617 = vpack.c.bf16 %v6510, %v6509
        %v6618 = vpack.c.bf16 %v6512, %v6511
        %v6619 = vpack.c.bf16 %v6514, %v6513
        %v6620 = vpack.c.bf16 %v6516, %v6515
        %v6621 = vpack.c.bf16 %v6518, %v6517
        %v6622 = vpack.c.bf16 %v6520, %v6519
        %v6623 = vpack.c.bf16 %v6522, %v6521
        %v6624 = vpack.c.bf16 %v6524, %v6523
        %v6625 = vpack.c.bf16 %v6526, %v6525
        %v6626 = vpack.c.bf16 %v6528, %v6527
        %v6627 = vpack.c.bf16 %v6530, %v6529
        %v6628 = vpack.c.bf16 %v6532, %v6531
        %v6629 = vpack.c.bf16 %v6534, %v6533
        %v6630 = vpack.c.bf16 %v6536, %v6535
        %v6631 = vpack.c.bf16 %v6538, %v6537
        %v6632 = vpack.c.bf16 %v6540, %v6539
        %v6633 = vpack.c.bf16 %v6542, %v6541
        %v6634 = vpack.c.bf16 %v6544, %v6543
        %v6635 = vpack.c.bf16 %v6546, %v6545
        %v6636 = vpack.c.bf16 %v6548, %v6547
        %v6637 = vpack.c.bf16 %v6550, %v6549
        %v6638 = vpack.c.bf16 %v6552, %v6551
        %v6639 = vpack.c.bf16 %v6554, %v6553
        %v6640 = vpack.c.bf16 %v6556, %v6555
        %v6641 = vpack.c.bf16 %v6558, %v6557
        %v6642 = vpack.c.bf16 %v6560, %v6559
        %v6643 = vpack.c.bf16 %v6562, %v6561
        %v6644 = vpack.c.bf16 %v6564, %v6563
        %v6645 = vpack.c.bf16 %v6566, %v6565
        %v6646 = vpack.c.bf16 %v6568, %v6567
        %v6647 = vpack.c.bf16 %v6570, %v6569
        %v6648 = vpack.c.bf16 %v6572, %v6571
        %v6649 = vpack.c.bf16 %v6574, %v6573
        %v6650 = vpack.c.bf16 %v6576, %v6575
        %v6651 = vpack.c.bf16 %v6578, %v6577
        %v6652 = vpack.c.bf16 %v6580, %v6579
        %v6653 = vpack.c.bf16 %v6582, %v6581
        %v6654 = vpack.c.bf16 %v6584, %v6583
        %v6655 = vpack.c.bf16 %v6586, %v6585
        %v6656 = vpack.c.bf16 %v6588, %v6587
        %v6657 = vpack.c.bf16 %v6590, %v6589
        %v6658 = vpack.c.bf16 %v6592, %v6591
        %v6659 = vpack.c.bf16 %v6594, %v6593
        %v6660 = vpack.c.bf16 %v6596, %v6595
        %6661 = vst [vmem:[%s385] sm:$0xff] %v6597
        %6662 = vst [vmem:[%s385 + $0x8] sm:$0xff] %v6598
        %6663 = vst [vmem:[%s385 + $0x10] sm:$0xff] %v6599
        %6664 = vst [vmem:[%s385 + $0x18] sm:$0xff] %v6600
        %6665 = vst [vmem:[%s385 + $0x20] sm:$0xff] %v6601
        %6666 = vst [vmem:[%s385 + $0x28] sm:$0xff] %v6602
        %6667 = vst [vmem:[%s385 + $0x30] sm:$0xff] %v6603
        %6668 = vst [vmem:[%s385 + $0x38] sm:$0xff] %v6604
        %6669 = vst [vmem:[%s385 + $0x40] sm:$0xff] %v6605
        %6670 = vst [vmem:[%s385 + $0x48] sm:$0xff] %v6606
        %6671 = vst [vmem:[%s385 + $0x50] sm:$0xff] %v6607
        %6672 = vst [vmem:[%s385 + $0x58] sm:$0xff] %v6608
        %6673 = vst [vmem:[%s385 + $0x60] sm:$0xff] %v6609
        %6674 = vst [vmem:[%s385 + $0x68] sm:$0xff] %v6610
        %6675 = vst [vmem:[%s385 + $0x70] sm:$0xff] %v6611
        %6676 = vst [vmem:[%s385 + $0x78] sm:$0xff] %v6612
        %6677 = vst [vmem:[%s385 + $0x80] sm:$0xff] %v6613
        %6678 = vst [vmem:[%s385 + $0x88] sm:$0xff] %v6614
        %6679 = vst [vmem:[%s385 + $0x90] sm:$0xff] %v6615
        %6680 = vst [vmem:[%s385 + $0x98] sm:$0xff] %v6616
        %6681 = vst [vmem:[%s385 + $0xa0] sm:$0xff] %v6617
        %6682 = vst [vmem:[%s385 + $0xa8] sm:$0xff] %v6618
        %6683 = vst [vmem:[%s385 + $0xb0] sm:$0xff] %v6619
        %6684 = vst [vmem:[%s385 + $0xb8] sm:$0xff] %v6620
        %6685 = vst [vmem:[%s385 + $0xc0] sm:$0xff] %v6621
        %6686 = vst [vmem:[%s385 + $0xc8] sm:$0xff] %v6622
        %6687 = vst [vmem:[%s385 + $0xd0] sm:$0xff] %v6623
        %6688 = vst [vmem:[%s385 + $0xd8] sm:$0xff] %v6624
        %6689 = vst [vmem:[%s385 + $0xe0] sm:$0xff] %v6625
        %6690 = vst [vmem:[%s385 + $0xe8] sm:$0xff] %v6626
        %6691 = vst [vmem:[%s385 + $0xf0] sm:$0xff] %v6627
        %6692 = vst [vmem:[%s385 + $0xf8] sm:$0xff] %v6628
        %6693 = vst [vmem:[%s385 + $0x100] sm:$0xff] %v6629
        %6694 = vst [vmem:[%s385 + $0x108] sm:$0xff] %v6630
        %6695 = vst [vmem:[%s385 + $0x110] sm:$0xff] %v6631
        %6696 = vst [vmem:[%s385 + $0x118] sm:$0xff] %v6632
        %6697 = vst [vmem:[%s385 + $0x120] sm:$0xff] %v6633
        %6698 = vst [vmem:[%s385 + $0x128] sm:$0xff] %v6634
        %6699 = vst [vmem:[%s385 + $0x130] sm:$0xff] %v6635
        %6700 = vst [vmem:[%s385 + $0x138] sm:$0xff] %v6636
        %6701 = vst [vmem:[%s385 + $0x140] sm:$0xff] %v6637
        %6702 = vst [vmem:[%s385 + $0x148] sm:$0xff] %v6638
        %6703 = vst [vmem:[%s385 + $0x150] sm:$0xff] %v6639
        %6704 = vst [vmem:[%s385 + $0x158] sm:$0xff] %v6640
        %6705 = vst [vmem:[%s385 + $0x160] sm:$0xff] %v6641
        %6706 = vst [vmem:[%s385 + $0x168] sm:$0xff] %v6642
        %6707 = vst [vmem:[%s385 + $0x170] sm:$0xff] %v6643
        %6708 = vst [vmem:[%s385 + $0x178] sm:$0xff] %v6644
        %6709 = vst [vmem:[%s385 + $0x180] sm:$0xff] %v6645
        %6710 = vst [vmem:[%s385 + $0x188] sm:$0xff] %v6646
        %6711 = vst [vmem:[%s385 + $0x190] sm:$0xff] %v6647
        %6712 = vst [vmem:[%s385 + $0x198] sm:$0xff] %v6648
        %6713 = vst [vmem:[%s385 + $0x1a0] sm:$0xff] %v6649
        %6714 = vst [vmem:[%s385 + $0x1a8] sm:$0xff] %v6650
        %6715 = vst [vmem:[%s385 + $0x1b0] sm:$0xff] %v6651
        %6716 = vst [vmem:[%s385 + $0x1b8] sm:$0xff] %v6652
        %6717 = vst [vmem:[%s385 + $0x1c0] sm:$0xff] %v6653
        %6718 = vst [vmem:[%s385 + $0x1c8] sm:$0xff] %v6654
        %6719 = vst [vmem:[%s385 + $0x1d0] sm:$0xff] %v6655
        %6720 = vst [vmem:[%s385 + $0x1d8] sm:$0xff] %v6656
        %6721 = vst [vmem:[%s385 + $0x1e0] sm:$0xff] %v6657
        %6722 = vst [vmem:[%s385 + $0x1e8] sm:$0xff] %v6658
        %6723 = vst [vmem:[%s385 + $0x1f0] sm:$0xff] %v6659
        %6724 = vst [vmem:[%s385 + $0x1f8] sm:$0xff] %v6660
        %s6725 = sand.u32 %s257, 1
        %s6726 = scalar_lea.sflag [#allocation3], %s6725
        %s6727 = sand.u32 %s257, 1
        %s6728 = smul.addr %s6727, 512
        %s6729 = scalar_lea.vmem [#allocation2], %s6728
        // Predicated region
        $region61: #{encoder_embeddings.1} parent=59 // pred_check
          %p6730 = pneg %p267
        $region62: #{encoder_embeddings.1} parent=59 // pred_check_branch
          %6732 = sbr.rel (%p6730) target = $region64
        $region63: #{encoder_embeddings.1} parent=59 // pred_region
          %s6733 = smul.u32 64, %s24
          %6735 = vsyncadd %s6726, 0
          %s6736 = smul.addr %s6733, 2
          %s6737 = smul.addr %s6736, 4
          %s6738 = scalar_lea.hbm %s10, %s6737
          %s6739 = sshll.u32 %s6729, 4
          %s6740 = int_to_ptr.vmem [resolvable:$true] %s6739
          %s6741 = sshll.u32 %s6738, 4
          %s6742 = int_to_ptr.hbm [resolvable:$true] %s6741
          %6747 = dma.vmem_to_hbm [thread:$0]  %s6740, 8192, %s6742, %s6726, 128, 128, 8
        $region64: #{encoder_embeddings.1} parent=59 // pred_fallthru
          _
      $region60: #{encoder_embeddings.1} parent=5 // pred_fallthru
        _
      %p6748 = scmp.le.s32.totalorder 2, %s19
      // Predicated region
      $region65: #{encoder_embeddings.1} parent=5 // pred_check
        %p6749 = pneg %p6748
      $region66: #{encoder_embeddings.1} parent=5 // pred_check_branch
        %6751 = sbr.rel (%p6749) target = $region68
      $region67: #{encoder_embeddings.1} parent=5 // pred_region
        %s6752 = ssub.s32 %s19, 2
        // Predicated region
        $region69: #{encoder_embeddings.1} parent=67 // pred_check
          %p6753 = pneg %p273
        $region70: #{encoder_embeddings.1} parent=67 // pred_check_branch
          %6755 = sbr.rel (%p6753) target = $region72
        $region71: #{encoder_embeddings.1} parent=67 // pred_region
          %s6756 = sand.u32 %s258, 1
          %s6757 = scalar_lea.sflag [#allocation3], %s6756
          %s6758 = sand.u32 %s258, 1
          %s6759 = smul.addr %s6758, 512
          %s6760 = scalar_lea.vmem [#allocation2], %s6759
          %6762 = dma.done %s6757, 8192
        $region72: #{encoder_embeddings.1} parent=67 // pred_fallthru
          _
      $region68: #{encoder_embeddings.1} parent=5 // pred_fallthru
        _
    $region6: #{encoder_embeddings.1} parent=1 // loop_footer
      %s23 = sadd.s32 1, %s19
    $region7: #{encoder_embeddings.1} parent=1 // loop_footer_branch
      %18 = sbr.rel target = $region3
    $region8: #{encoder_embeddings.1} parent=1 // loop_exit
      _
    %6763 = vsyncpa [#allocation3], 1
    %s6764 = scalar_lea.sflag [#allocation3], 1
    %6765 = vsyncpa %s6764, 1

</llo_original>
